<compile_context>
chip_gen: v7x
topology: tpu7x:2x2x1
jax: 0.10.0
libtpu: 0.0.40
codegen_flags: <defaults>
</compile_context>

<pallas_src>
import jax
import jax.numpy as jnp
from jax.experimental import pallas as pl
from jax.experimental.pallas import tpu as pltpu

INPUT_DIM = 63
HIDDEN1 = 256
HIDDEN2 = 512
HIDDEN3 = 256
LATENT = 10
BN_EPS = 1e-5

INPUT_PAD = 128   # 63  -> 128 (lane-aligned)
LATENT_PAD = 128  # 10  -> 128 (lane-aligned)


def _linear(h, w_ref, b_ref):
    # MXU matmul: bf16 operands, f32 accumulation, f32 bias add.
    return jnp.dot(h.astype(jnp.bfloat16), w_ref[...],
                   preferred_element_type=jnp.float32) + b_ref[...]


def _bn_relu(h, g_ref, beta_ref):
    # BatchNorm1d (training mode): batch mean, biased variance, eps=1e-5.
    # (h - mean) is hoisted and reused for variance + normalization; gamma is
    # folded into the rsqrt scale (row vector) before the broadcast multiply.
    mean = jnp.mean(h, axis=0, keepdims=True)
    hm = h - mean
    var = jnp.mean(hm * hm, axis=0, keepdims=True)
    scale = g_ref[...] * jax.lax.rsqrt(var + BN_EPS)          # (1, H)
    return jnp.maximum(hm * scale + beta_ref[...], 0.0)


def vae_kernel(
    x_ref, eps_ref,
    w1_ref, b1_ref, g1_ref, be1_ref,
    w2_ref, b2_ref, g2_ref, be2_ref,
    w3_ref, b3_ref, g3_ref, be3_ref,
    wmu_ref, bmu_ref, wlv_ref, blv_ref,
    w5_ref, b5_ref, w6_ref, b6_ref, w7_ref, b7_ref, w8_ref, b8_ref,
    recon_ref, mu_ref, logvar_ref,
):
    x = x_ref[...]  # (B, 128) bf16, zero-padded cols 63..127

    # --- encoder ---
    h = _bn_relu(_linear(x, w1_ref, b1_ref), g1_ref, be1_ref)
    h = _bn_relu(_linear(h, w2_ref, b2_ref), g2_ref, be2_ref)
    h = _bn_relu(_linear(h, w3_ref, b3_ref), g3_ref, be3_ref)
    mu = _linear(h, wmu_ref, bmu_ref)        # (B, 128) f32, cols >= LATENT are 0
    logvar = _linear(h, wlv_ref, blv_ref)    # (B, 128) f32, cols >= LATENT are 0

    # --- reparameterize (f32 elementwise; exp on EUP) ---
    z = mu + eps_ref[...] * jnp.exp(0.5 * logvar)

    # --- decoder ---
    d = jnp.maximum(_linear(z, w5_ref, b5_ref), 0.0)
    d = jnp.maximum(_linear(d, w6_ref, b6_ref), 0.0)
    d = jnp.maximum(_linear(d, w7_ref, b7_ref), 0.0)
    recon = jax.nn.sigmoid(_linear(d, w8_ref, b8_ref))

    # Lane-dense (multiple-of-128) unmasked stores; wrapper slices valid cols.
    recon_ref[...] = recon
    mu_ref[...] = mu
    logvar_ref[...] = logvar


def init_params(key):
    """Deterministic synthetic parameters matching the torch module's shapes.

    Linear weights are stored as (in_features, out_features); biases and BN
    gamma/beta as (1, features).  All f32 (un-padded); `prepare_params`
    pads/casts them for the kernel.
    """
    dims = [
        ("fc1", INPUT_DIM, HIDDEN1),
        ("fc2", HIDDEN1, HIDDEN2),
        ("fc3", HIDDEN2, HIDDEN3),
        ("fc4_mu", HIDDEN3, LATENT),
        ("fc4_logvar", HIDDEN3, LATENT),
        ("fc5", LATENT, HIDDEN3),
        ("fc6", HIDDEN3, HIDDEN2),
        ("fc7", HIDDEN2, HIDDEN1),
        ("fc8", HIDDEN1, INPUT_DIM),
    ]
    params = {}
    for name, fan_in, fan_out in dims:
        key, kw, kb = jax.random.split(key, 3)
        bound = 1.0 / jnp.sqrt(fan_in)
        params[name + "_w"] = jax.random.uniform(
            kw, (fan_in, fan_out), jnp.float32, -bound, bound)
        params[name + "_b"] = jax.random.uniform(
            kb, (1, fan_out), jnp.float32, -bound, bound)
    for name, dim in [("bn1", HIDDEN1), ("bn2", HIDDEN2), ("bn3", HIDDEN3)]:
        params[name + "_g"] = jnp.ones((1, dim), jnp.float32)
        params[name + "_b"] = jnp.zeros((1, dim), jnp.float32)
    return params


def _pad_to(a, shape):
    return jnp.pad(a, [(0, t - s) for s, t in zip(a.shape, shape)])


def prepare_params(params):
    """Zero-pad narrow feature dims to 128 lanes; cast matmul weights to bf16.

    Zero padding keeps the matmul results equivalent on the valid columns.
    Biases and BN parameters stay f32 (applied after f32 accumulation).
    """
    pad_in = {"fc1": INPUT_PAD, "fc5": LATENT_PAD}
    pad_out = {"fc4_mu": LATENT_PAD, "fc4_logvar": LATENT_PAD, "fc8": INPUT_PAD}
    p = {}
    for name in ["fc1", "fc2", "fc3", "fc4_mu", "fc4_logvar",
                 "fc5", "fc6", "fc7", "fc8"]:
        w = params[name + "_w"]
        b = params[name + "_b"]
        fin = pad_in.get(name, w.shape[0])
        fout = pad_out.get(name, w.shape[1])
        p[name + "_w"] = _pad_to(w, (fin, fout)).astype(jnp.bfloat16)
        p[name + "_b"] = _pad_to(b, (1, fout))
    for name in ["bn1", "bn2", "bn3"]:
        p[name + "_g"] = params[name + "_g"]
        p[name + "_b"] = params[name + "_b"]
    return p


@jax.jit
def vae_forward(x, eps, params):
    """x: (batch, 63) f32, eps: (batch, 10) f32, params: prepare_params output."""
    batch = x.shape[0]

    # Lane-pad inputs; cast the matmul input to bf16, keep eps in f32.
    x_pad = _pad_to(x, (batch, INPUT_PAD)).astype(jnp.bfloat16)
    eps_pad = _pad_to(eps, (batch, LATENT_PAD))

    flat_inputs = [
        x_pad, eps_pad,
        params["fc1_w"], params["fc1_b"], params["bn1_g"], params["bn1_b"],
        params["fc2_w"], params["fc2_b"], params["bn2_g"], params["bn2_b"],
        params["fc3_w"], params["fc3_b"], params["bn3_g"], params["bn3_b"],
        params["fc4_mu_w"], params["fc4_mu_b"],
        params["fc4_logvar_w"], params["fc4_logvar_b"],
        params["fc5_w"], params["fc5_b"],
        params["fc6_w"], params["fc6_b"],
        params["fc7_w"], params["fc7_b"],
        params["fc8_w"], params["fc8_b"],
    ]

    vmem_spec = pl.BlockSpec(memory_space=pltpu.MemorySpace.VMEM)
    out_shape = (
        jax.ShapeDtypeStruct((batch, INPUT_PAD), jnp.float32),   # recon (padded)
        jax.ShapeDtypeStruct((batch, LATENT_PAD), jnp.float32),  # mu (padded)
        jax.ShapeDtypeStruct((batch, LATENT_PAD), jnp.float32),  # logvar (padded)
    )

    flops = 2 * batch * (
        INPUT_DIM * HIDDEN1 + HIDDEN1 * HIDDEN2 + HIDDEN2 * HIDDEN3
        + 2 * HIDDEN3 * LATENT + LATENT * HIDDEN3 + HIDDEN3 * HIDDEN2
        + HIDDEN2 * HIDDEN1 + HIDDEN1 * INPUT_DIM)
    param_bytes = sum(int(v.size) * v.dtype.itemsize for v in params.values())
    bytes_accessed = (param_bytes
                      + int(x_pad.size) * 2 + int(eps_pad.size) * 4
                      + batch * (INPUT_PAD + 2 * LATENT_PAD) * 4)
    cost = pl.CostEstimate(
        flops=flops,
        # exp + sigmoid per row, plus 3 BN rsqrt rows.
        transcendentals=batch * (LATENT + INPUT_DIM) + HIDDEN1 + HIDDEN2 + HIDDEN3,
        bytes_accessed=bytes_accessed)

    recon_p, mu_p, logvar_p = pl.pallas_call(
        vae_kernel,
        out_shape=out_shape,
        in_specs=[vmem_spec] * len(flat_inputs),
        out_specs=(vmem_spec, vmem_spec, vmem_spec),
        compiler_params=pltpu.CompilerParams(vmem_limit_bytes=16 << 20),
        cost_estimate=cost,
    )(*flat_inputs)

    # Slice the valid (un-padded) columns back out.
    return (recon_p[:, :INPUT_DIM],
            mu_p[:, :LATENT],
            logvar_p[:, :LATENT])


def vae_reference(x, eps, params):
    """Pure-JAX reference mirroring the kernel math (bf16 matmuls, f32 rest)."""
    def lin(h, name):
        return (jnp.dot(h.astype(jnp.bfloat16), params[name + "_w"],
                        preferred_element_type=jnp.float32)
                + params[name + "_b"])

    def bn_relu(h, name):
        mean = jnp.mean(h, axis=0, keepdims=True)
        hm = h - mean
        var = jnp.mean(hm * hm, axis=0, keepdims=True)
        scale = params[name + "_g"] * jax.lax.rsqrt(var + BN_EPS)
        return jnp.maximum(hm * scale + params[name + "_b"], 0.0)

    batch = x.shape[0]
    xp = _pad_to(x, (batch, INPUT_PAD))
    ep = _pad_to(eps, (batch, LATENT_PAD))
    h = bn_relu(lin(xp, "fc1"), "bn1")
    h = bn_relu(lin(h, "fc2"), "bn2")
    h = bn_relu(lin(h, "fc3"), "bn3")
    mu = lin(h, "fc4_mu")
    logvar = lin(h, "fc4_logvar")
    z = mu + ep * jnp.exp(0.5 * logvar)
    d = jnp.maximum(lin(z, "fc5"), 0.0)
    d = jnp.maximum(lin(d, "fc6"), 0.0)
    d = jnp.maximum(lin(d, "fc7"), 0.0)
    recon = jax.nn.sigmoid(lin(d, "fc8"))
    return (recon[:, :INPUT_DIM], mu[:, :LATENT], logvar[:, :LATENT])


if __name__ == "__main__":
    key = jax.random.PRNGKey(0)
    k_params, k_x, k_eps = jax.random.split(key, 3)

    batch = 16  # sublane-aligned; BatchNorm training-mode stats need batch > 1
    params = prepare_params(init_params(k_params))
    x = jax.random.normal(k_x, (batch, INPUT_DIM), jnp.float32)
    eps = jax.random.normal(k_eps, (batch, LATENT), jnp.float32)

    recon, mu, logvar = vae_forward(x, eps, params)
    jax.block_until_ready((recon, mu, logvar))

    assert recon.shape == (batch, INPUT_DIM)
    assert mu.shape == (batch, LATENT)
    assert logvar.shape == (batch, LATENT)
    assert bool(jnp.all(jnp.isfinite(recon)))
    assert bool(jnp.all(jnp.isfinite(mu)))
    assert bool(jnp.all(jnp.isfinite(logvar)))
    assert bool(jnp.all((recon >= 0.0) & (recon <= 1.0)))

    # Numeric check against a pure-JAX reference with matching precision.
    r_ref, m_ref, lv_ref = vae_reference(x, eps, params)
    assert bool(jnp.allclose(recon, r_ref, atol=2e-2, rtol=2e-2))
    assert bool(jnp.allclose(mu, m_ref, atol=2e-2, rtol=2e-2))
    assert bool(jnp.allclose(logvar, lv_ref, atol=2e-2, rtol=2e-2))

    print("KERNEL_OK")
</pallas_src>

<mosaic_0001>
module attributes {stable_mosaic.version = 11 : i64} {
  func.func @vae_kernel(%arg0: memref<16x128xbf16, #tpu.memory_space<vmem>>, %arg1: memref<16x128xf32, #tpu.memory_space<vmem>>, %arg2: memref<128x256xbf16, #tpu.memory_space<vmem>>, %arg3: memref<1x256xf32, #tpu.memory_space<vmem>>, %arg4: memref<1x256xf32, #tpu.memory_space<vmem>>, %arg5: memref<1x256xf32, #tpu.memory_space<vmem>>, %arg6: memref<256x512xbf16, #tpu.memory_space<vmem>>, %arg7: memref<1x512xf32, #tpu.memory_space<vmem>>, %arg8: memref<1x512xf32, #tpu.memory_space<vmem>>, %arg9: memref<1x512xf32, #tpu.memory_space<vmem>>, %arg10: memref<512x256xbf16, #tpu.memory_space<vmem>>, %arg11: memref<1x256xf32, #tpu.memory_space<vmem>>, %arg12: memref<1x256xf32, #tpu.memory_space<vmem>>, %arg13: memref<1x256xf32, #tpu.memory_space<vmem>>, %arg14: memref<256x128xbf16, #tpu.memory_space<vmem>>, %arg15: memref<1x128xf32, #tpu.memory_space<vmem>>, %arg16: memref<256x128xbf16, #tpu.memory_space<vmem>>, %arg17: memref<1x128xf32, #tpu.memory_space<vmem>>, %arg18: memref<128x256xbf16, #tpu.memory_space<vmem>>, %arg19: memref<1x256xf32, #tpu.memory_space<vmem>>, %arg20: memref<256x512xbf16, #tpu.memory_space<vmem>>, %arg21: memref<1x512xf32, #tpu.memory_space<vmem>>, %arg22: memref<512x256xbf16, #tpu.memory_space<vmem>>, %arg23: memref<1x256xf32, #tpu.memory_space<vmem>>, %arg24: memref<256x128xbf16, #tpu.memory_space<vmem>>, %arg25: memref<1x128xf32, #tpu.memory_space<vmem>>, %arg26: memref<16x128xf32, #tpu.memory_space<vmem>>, %arg27: memref<16x128xf32, #tpu.memory_space<vmem>>, %arg28: memref<16x128xf32, #tpu.memory_space<vmem>>) attributes {dimension_semantics = [], scalar_prefetch = 0 : i64, scratch_operands = 0 : i64, tpu.core_type = #tpu.core_type<tc>} {
    %c0 = arith.constant 0 : index
    %c0_0 = arith.constant 0 : index
    %0 = vector.load %arg0[%c0, %c0_0] : memref<16x128xbf16, #tpu.memory_space<vmem>>, vector<16x128xbf16>
    %c0_1 = arith.constant 0 : index
    %c0_2 = arith.constant 0 : index
    %1 = vector.load %arg2[%c0_1, %c0_2] : memref<128x256xbf16, #tpu.memory_space<vmem>>, vector<128x256xbf16>
    %cst = arith.constant dense<0.000000e+00> : vector<16x256xf32>
    %2 = tpu.matmul %0, %1, %cst {dimension_numbers = #tpu.dot_dimension_numbers<[1], [0], [0], [1], [0, 0, 1, 1], [], []>} : vector<16x128xbf16>, vector<128x256xbf16>, vector<16x256xf32> -> vector<16x256xf32>
    %c0_3 = arith.constant 0 : index
    %c0_4 = arith.constant 0 : index
    %3 = vector.load %arg3[%c0_3, %c0_4] : memref<1x256xf32, #tpu.memory_space<vmem>>, vector<1x256xf32>
    %4 = vector.broadcast %3 : vector<1x256xf32> to vector<16x256xf32>
    %5 = arith.addf %2, %4 : vector<16x256xf32>
    %cst_5 = arith.constant dense<0.000000e+00> : vector<256xf32>
    %6 = vector.multi_reduction <add>, %5, %cst_5 [0] : vector<16x256xf32> to vector<256xf32>
    %7 = vector.shape_cast %6 : vector<256xf32> to vector<1x256xf32>
    %cst_6 = arith.constant 1.600000e+01 : f32
    %8 = vector.broadcast %cst_6 : f32 to vector<1x256xf32>
    %9 = arith.divf %7, %8 : vector<1x256xf32>
    %10 = vector.broadcast %9 : vector<1x256xf32> to vector<16x256xf32>
    %11 = arith.subf %5, %10 : vector<16x256xf32>
    %12 = arith.mulf %11, %11 : vector<16x256xf32>
    %cst_7 = arith.constant dense<0.000000e+00> : vector<256xf32>
    %13 = vector.multi_reduction <add>, %12, %cst_7 [0] : vector<16x256xf32> to vector<256xf32>
    %14 = vector.shape_cast %13 : vector<256xf32> to vector<1x256xf32>
    %cst_8 = arith.constant 1.600000e+01 : f32
    %15 = vector.broadcast %cst_8 : f32 to vector<1x256xf32>
    %16 = arith.divf %14, %15 : vector<1x256xf32>
    %c0_9 = arith.constant 0 : index
    %c0_10 = arith.constant 0 : index
    %17 = vector.load %arg4[%c0_9, %c0_10] : memref<1x256xf32, #tpu.memory_space<vmem>>, vector<1x256xf32>
    %cst_11 = arith.constant 9.99999974E-6 : f32
    %18 = vector.broadcast %cst_11 : f32 to vector<1x256xf32>
    %19 = arith.addf %16, %18 : vector<1x256xf32>
    %20 = math.rsqrt %19 : vector<1x256xf32>
    %21 = arith.mulf %17, %20 : vector<1x256xf32>
    %22 = vector.broadcast %21 : vector<1x256xf32> to vector<16x256xf32>
    %23 = arith.mulf %11, %22 : vector<16x256xf32>
    %c0_12 = arith.constant 0 : index
    %c0_13 = arith.constant 0 : index
    %24 = vector.load %arg5[%c0_12, %c0_13] : memref<1x256xf32, #tpu.memory_space<vmem>>, vector<1x256xf32>
    %25 = vector.broadcast %24 : vector<1x256xf32> to vector<16x256xf32>
    %26 = arith.addf %23, %25 : vector<16x256xf32>
    %cst_14 = arith.constant 0.000000e+00 : f32
    %27 = vector.broadcast %cst_14 : f32 to vector<16x256xf32>
    %28 = arith.maximumf %26, %27 : vector<16x256xf32>
    %29 = arith.truncf %28 : vector<16x256xf32> to vector<16x256xbf16>
    %c0_15 = arith.constant 0 : index
    %c0_16 = arith.constant 0 : index
    %30 = vector.load %arg6[%c0_15, %c0_16] : memref<256x512xbf16, #tpu.memory_space<vmem>>, vector<256x512xbf16>
    %cst_17 = arith.constant dense<0.000000e+00> : vector<16x512xf32>
    %31 = tpu.matmul %29, %30, %cst_17 {dimension_numbers = #tpu.dot_dimension_numbers<[1], [0], [0], [1], [0, 0, 1, 1], [], []>} : vector<16x256xbf16>, vector<256x512xbf16>, vector<16x512xf32> -> vector<16x512xf32>
    %c0_18 = arith.constant 0 : index
    %c0_19 = arith.constant 0 : index
    %32 = vector.load %arg7[%c0_18, %c0_19] : memref<1x512xf32, #tpu.memory_space<vmem>>, vector<1x512xf32>
    %33 = vector.broadcast %32 : vector<1x512xf32> to vector<16x512xf32>
    %34 = arith.addf %31, %33 : vector<16x512xf32>
    %cst_20 = arith.constant dense<0.000000e+00> : vector<512xf32>
    %35 = vector.multi_reduction <add>, %34, %cst_20 [0] : vector<16x512xf32> to vector<512xf32>
    %36 = vector.shape_cast %35 : vector<512xf32> to vector<1x512xf32>
    %cst_21 = arith.constant 1.600000e+01 : f32
    %37 = vector.broadcast %cst_21 : f32 to vector<1x512xf32>
    %38 = arith.divf %36, %37 : vector<1x512xf32>
    %39 = vector.broadcast %38 : vector<1x512xf32> to vector<16x512xf32>
    %40 = arith.subf %34, %39 : vector<16x512xf32>
    %41 = arith.mulf %40, %40 : vector<16x512xf32>
    %cst_22 = arith.constant dense<0.000000e+00> : vector<512xf32>
    %42 = vector.multi_reduction <add>, %41, %cst_22 [0] : vector<16x512xf32> to vector<512xf32>
    %43 = vector.shape_cast %42 : vector<512xf32> to vector<1x512xf32>
    %cst_23 = arith.constant 1.600000e+01 : f32
    %44 = vector.broadcast %cst_23 : f32 to vector<1x512xf32>
    %45 = arith.divf %43, %44 : vector<1x512xf32>
    %c0_24 = arith.constant 0 : index
    %c0_25 = arith.constant 0 : index
    %46 = vector.load %arg8[%c0_24, %c0_25] : memref<1x512xf32, #tpu.memory_space<vmem>>, vector<1x512xf32>
    %cst_26 = arith.constant 9.99999974E-6 : f32
    %47 = vector.broadcast %cst_26 : f32 to vector<1x512xf32>
    %48 = arith.addf %45, %47 : vector<1x512xf32>
    %49 = math.rsqrt %48 : vector<1x512xf32>
    %50 = arith.mulf %46, %49 : vector<1x512xf32>
    %51 = vector.broadcast %50 : vector<1x512xf32> to vector<16x512xf32>
    %52 = arith.mulf %40, %51 : vector<16x512xf32>
    %c0_27 = arith.constant 0 : index
    %c0_28 = arith.constant 0 : index
    %53 = vector.load %arg9[%c0_27, %c0_28] : memref<1x512xf32, #tpu.memory_space<vmem>>, vector<1x512xf32>
    %54 = vector.broadcast %53 : vector<1x512xf32> to vector<16x512xf32>
    %55 = arith.addf %52, %54 : vector<16x512xf32>
    %cst_29 = arith.constant 0.000000e+00 : f32
    %56 = vector.broadcast %cst_29 : f32 to vector<16x512xf32>
    %57 = arith.maximumf %55, %56 : vector<16x512xf32>
    %58 = arith.truncf %57 : vector<16x512xf32> to vector<16x512xbf16>
    %c0_30 = arith.constant 0 : index
    %c0_31 = arith.constant 0 : index
    %59 = vector.load %arg10[%c0_30, %c0_31] : memref<512x256xbf16, #tpu.memory_space<vmem>>, vector<512x256xbf16>
    %cst_32 = arith.constant dense<0.000000e+00> : vector<16x256xf32>
    %60 = tpu.matmul %58, %59, %cst_32 {dimension_numbers = #tpu.dot_dimension_numbers<[1], [0], [0], [1], [0, 0, 1, 1], [], []>} : vector<16x512xbf16>, vector<512x256xbf16>, vector<16x256xf32> -> vector<16x256xf32>
    %c0_33 = arith.constant 0 : index
    %c0_34 = arith.constant 0 : index
    %61 = vector.load %arg11[%c0_33, %c0_34] : memref<1x256xf32, #tpu.memory_space<vmem>>, vector<1x256xf32>
    %62 = vector.broadcast %61 : vector<1x256xf32> to vector<16x256xf32>
    %63 = arith.addf %60, %62 : vector<16x256xf32>
    %cst_35 = arith.constant dense<0.000000e+00> : vector<256xf32>
    %64 = vector.multi_reduction <add>, %63, %cst_35 [0] : vector<16x256xf32> to vector<256xf32>
    %65 = vector.shape_cast %64 : vector<256xf32> to vector<1x256xf32>
    %cst_36 = arith.constant 1.600000e+01 : f32
    %66 = vector.broadcast %cst_36 : f32 to vector<1x256xf32>
    %67 = arith.divf %65, %66 : vector<1x256xf32>
    %68 = vector.broadcast %67 : vector<1x256xf32> to vector<16x256xf32>
    %69 = arith.subf %63, %68 : vector<16x256xf32>
    %70 = arith.mulf %69, %69 : vector<16x256xf32>
    %cst_37 = arith.constant dense<0.000000e+00> : vector<256xf32>
    %71 = vector.multi_reduction <add>, %70, %cst_37 [0] : vector<16x256xf32> to vector<256xf32>
    %72 = vector.shape_cast %71 : vector<256xf32> to vector<1x256xf32>
    %cst_38 = arith.constant 1.600000e+01 : f32
    %73 = vector.broadcast %cst_38 : f32 to vector<1x256xf32>
    %74 = arith.divf %72, %73 : vector<1x256xf32>
    %c0_39 = arith.constant 0 : index
    %c0_40 = arith.constant 0 : index
    %75 = vector.load %arg12[%c0_39, %c0_40] : memref<1x256xf32, #tpu.memory_space<vmem>>, vector<1x256xf32>
    %cst_41 = arith.constant 9.99999974E-6 : f32
    %76 = vector.broadcast %cst_41 : f32 to vector<1x256xf32>
    %77 = arith.addf %74, %76 : vector<1x256xf32>
    %78 = math.rsqrt %77 : vector<1x256xf32>
    %79 = arith.mulf %75, %78 : vector<1x256xf32>
    %80 = vector.broadcast %79 : vector<1x256xf32> to vector<16x256xf32>
    %81 = arith.mulf %69, %80 : vector<16x256xf32>
    %c0_42 = arith.constant 0 : index
    %c0_43 = arith.constant 0 : index
    %82 = vector.load %arg13[%c0_42, %c0_43] : memref<1x256xf32, #tpu.memory_space<vmem>>, vector<1x256xf32>
    %83 = vector.broadcast %82 : vector<1x256xf32> to vector<16x256xf32>
    %84 = arith.addf %81, %83 : vector<16x256xf32>
    %cst_44 = arith.constant 0.000000e+00 : f32
    %85 = vector.broadcast %cst_44 : f32 to vector<16x256xf32>
    %86 = arith.maximumf %84, %85 : vector<16x256xf32>
    %87 = arith.truncf %86 : vector<16x256xf32> to vector<16x256xbf16>
    %c0_45 = arith.constant 0 : index
    %c0_46 = arith.constant 0 : index
    %88 = vector.load %arg14[%c0_45, %c0_46] : memref<256x128xbf16, #tpu.memory_space<vmem>>, vector<256x128xbf16>
    %cst_47 = arith.constant dense<0.000000e+00> : vector<16x128xf32>
    %89 = tpu.matmul %87, %88, %cst_47 {dimension_numbers = #tpu.dot_dimension_numbers<[1], [0], [0], [1], [0, 0, 1, 1], [], []>} : vector<16x256xbf16>, vector<256x128xbf16>, vector<16x128xf32> -> vector<16x128xf32>
    %c0_48 = arith.constant 0 : index
    %c0_49 = arith.constant 0 : index
    %90 = vector.load %arg15[%c0_48, %c0_49] : memref<1x128xf32, #tpu.memory_space<vmem>>, vector<1x128xf32>
    %91 = vector.broadcast %90 : vector<1x128xf32> to vector<16x128xf32>
    %92 = arith.addf %89, %91 : vector<16x128xf32>
    %93 = arith.truncf %86 : vector<16x256xf32> to vector<16x256xbf16>
    %c0_50 = arith.constant 0 : index
    %c0_51 = arith.constant 0 : index
    %94 = vector.load %arg16[%c0_50, %c0_51] : memref<256x128xbf16, #tpu.memory_space<vmem>>, vector<256x128xbf16>
    %cst_52 = arith.constant dense<0.000000e+00> : vector<16x128xf32>
    %95 = tpu.matmul %93, %94, %cst_52 {dimension_numbers = #tpu.dot_dimension_numbers<[1], [0], [0], [1], [0, 0, 1, 1], [], []>} : vector<16x256xbf16>, vector<256x128xbf16>, vector<16x128xf32> -> vector<16x128xf32>
    %c0_53 = arith.constant 0 : index
    %c0_54 = arith.constant 0 : index
    %96 = vector.load %arg17[%c0_53, %c0_54] : memref<1x128xf32, #tpu.memory_space<vmem>>, vector<1x128xf32>
    %97 = vector.broadcast %96 : vector<1x128xf32> to vector<16x128xf32>
    %98 = arith.addf %95, %97 : vector<16x128xf32>
    %c0_55 = arith.constant 0 : index
    %c0_56 = arith.constant 0 : index
    %99 = vector.load %arg1[%c0_55, %c0_56] : memref<16x128xf32, #tpu.memory_space<vmem>>, vector<16x128xf32>
    %cst_57 = arith.constant 5.000000e-01 : f32
    %100 = vector.broadcast %cst_57 : f32 to vector<16x128xf32>
    %101 = arith.mulf %100, %98 : vector<16x128xf32>
    %102 = math.exp %101 : vector<16x128xf32>
    %103 = arith.mulf %99, %102 : vector<16x128xf32>
    %104 = arith.addf %92, %103 : vector<16x128xf32>
    %105 = arith.truncf %104 : vector<16x128xf32> to vector<16x128xbf16>
    %c0_58 = arith.constant 0 : index
    %c0_59 = arith.constant 0 : index
    %106 = vector.load %arg18[%c0_58, %c0_59] : memref<128x256xbf16, #tpu.memory_space<vmem>>, vector<128x256xbf16>
    %cst_60 = arith.constant dense<0.000000e+00> : vector<16x256xf32>
    %107 = tpu.matmul %105, %106, %cst_60 {dimension_numbers = #tpu.dot_dimension_numbers<[1], [0], [0], [1], [0, 0, 1, 1], [], []>} : vector<16x128xbf16>, vector<128x256xbf16>, vector<16x256xf32> -> vector<16x256xf32>
    %c0_61 = arith.constant 0 : index
    %c0_62 = arith.constant 0 : index
    %108 = vector.load %arg19[%c0_61, %c0_62] : memref<1x256xf32, #tpu.memory_space<vmem>>, vector<1x256xf32>
    %109 = vector.broadcast %108 : vector<1x256xf32> to vector<16x256xf32>
    %110 = arith.addf %107, %109 : vector<16x256xf32>
    %cst_63 = arith.constant 0.000000e+00 : f32
    %111 = vector.broadcast %cst_63 : f32 to vector<16x256xf32>
    %112 = arith.maximumf %110, %111 : vector<16x256xf32>
    %113 = arith.truncf %112 : vector<16x256xf32> to vector<16x256xbf16>
    %c0_64 = arith.constant 0 : index
    %c0_65 = arith.constant 0 : index
    %114 = vector.load %arg20[%c0_64, %c0_65] : memref<256x512xbf16, #tpu.memory_space<vmem>>, vector<256x512xbf16>
    %cst_66 = arith.constant dense<0.000000e+00> : vector<16x512xf32>
    %115 = tpu.matmul %113, %114, %cst_66 {dimension_numbers = #tpu.dot_dimension_numbers<[1], [0], [0], [1], [0, 0, 1, 1], [], []>} : vector<16x256xbf16>, vector<256x512xbf16>, vector<16x512xf32> -> vector<16x512xf32>
    %c0_67 = arith.constant 0 : index
    %c0_68 = arith.constant 0 : index
    %116 = vector.load %arg21[%c0_67, %c0_68] : memref<1x512xf32, #tpu.memory_space<vmem>>, vector<1x512xf32>
    %117 = vector.broadcast %116 : vector<1x512xf32> to vector<16x512xf32>
    %118 = arith.addf %115, %117 : vector<16x512xf32>
    %cst_69 = arith.constant 0.000000e+00 : f32
    %119 = vector.broadcast %cst_69 : f32 to vector<16x512xf32>
    %120 = arith.maximumf %118, %119 : vector<16x512xf32>
    %121 = arith.truncf %120 : vector<16x512xf32> to vector<16x512xbf16>
    %c0_70 = arith.constant 0 : index
    %c0_71 = arith.constant 0 : index
    %122 = vector.load %arg22[%c0_70, %c0_71] : memref<512x256xbf16, #tpu.memory_space<vmem>>, vector<512x256xbf16>
    %cst_72 = arith.constant dense<0.000000e+00> : vector<16x256xf32>
    %123 = tpu.matmul %121, %122, %cst_72 {dimension_numbers = #tpu.dot_dimension_numbers<[1], [0], [0], [1], [0, 0, 1, 1], [], []>} : vector<16x512xbf16>, vector<512x256xbf16>, vector<16x256xf32> -> vector<16x256xf32>
    %c0_73 = arith.constant 0 : index
    %c0_74 = arith.constant 0 : index
    %124 = vector.load %arg23[%c0_73, %c0_74] : memref<1x256xf32, #tpu.memory_space<vmem>>, vector<1x256xf32>
    %125 = vector.broadcast %124 : vector<1x256xf32> to vector<16x256xf32>
    %126 = arith.addf %123, %125 : vector<16x256xf32>
    %cst_75 = arith.constant 0.000000e+00 : f32
    %127 = vector.broadcast %cst_75 : f32 to vector<16x256xf32>
    %128 = arith.maximumf %126, %127 : vector<16x256xf32>
    %129 = arith.truncf %128 : vector<16x256xf32> to vector<16x256xbf16>
    %c0_76 = arith.constant 0 : index
    %c0_77 = arith.constant 0 : index
    %130 = vector.load %arg24[%c0_76, %c0_77] : memref<256x128xbf16, #tpu.memory_space<vmem>>, vector<256x128xbf16>
    %cst_78 = arith.constant dense<0.000000e+00> : vector<16x128xf32>
    %131 = tpu.matmul %129, %130, %cst_78 {dimension_numbers = #tpu.dot_dimension_numbers<[1], [0], [0], [1], [0, 0, 1, 1], [], []>} : vector<16x256xbf16>, vector<256x128xbf16>, vector<16x128xf32> -> vector<16x128xf32>
    %c0_79 = arith.constant 0 : index
    %c0_80 = arith.constant 0 : index
    %132 = vector.load %arg25[%c0_79, %c0_80] : memref<1x128xf32, #tpu.memory_space<vmem>>, vector<1x128xf32>
    %133 = vector.broadcast %132 : vector<1x128xf32> to vector<16x128xf32>
    %134 = arith.addf %131, %133 : vector<16x128xf32>
    %135 = arith.negf %134 : vector<16x128xf32>
    %136 = math.exp %135 : vector<16x128xf32>
    %cst_81 = arith.constant 1.000000e+00 : f32
    %137 = vector.broadcast %cst_81 : f32 to vector<16x128xf32>
    %138 = arith.addf %137, %136 : vector<16x128xf32>
    %139 = arith.divf %137, %138 : vector<16x128xf32>
    %c0_82 = arith.constant 0 : index
    %c0_83 = arith.constant 0 : index
    %140 = vector.load %arg26[%c0_82, %c0_83] : memref<16x128xf32, #tpu.memory_space<vmem>>, vector<16x128xf32>
    tpu.vector_store %arg26[%c0_82, %c0_83], %139 {strides = array<i32>} : memref<16x128xf32, #tpu.memory_space<vmem>>, vector<16x128xf32>,
    %c0_84 = arith.constant 0 : index
    %c0_85 = arith.constant 0 : index
    %141 = vector.load %arg27[%c0_84, %c0_85] : memref<16x128xf32, #tpu.memory_space<vmem>>, vector<16x128xf32>
    tpu.vector_store %arg27[%c0_84, %c0_85], %92 {strides = array<i32>} : memref<16x128xf32, #tpu.memory_space<vmem>>, vector<16x128xf32>,
    %c0_86 = arith.constant 0 : index
    %c0_87 = arith.constant 0 : index
    %142 = vector.load %arg28[%c0_86, %c0_87] : memref<16x128xf32, #tpu.memory_space<vmem>>, vector<16x128xf32>
    tpu.vector_store %arg28[%c0_86, %c0_87], %98 {strides = array<i32>} : memref<16x128xf32, #tpu.memory_space<vmem>>, vector<16x128xf32>,
    return
  }
}

</mosaic_0001>

<llo_original>
// kernel: vae_forward.1
$region0: #{vae_forward.1}
  #allocation0 [shape = 'u32[]', space=smem, size = 0x4, offset = 0x4, fixed_abs, tag = 'smem constant byte address 0x4 - core index']
  #allocation1 [shape = 'u32[144,128]{1,0:T(1,128)}', space=vmem, size = 0x12000, scoped, tag = 'internal scratch']
  %s0 = inlined_call_operand.vmem [shape: bf16[16,128], index: 0, kind: input, shape index: {}]
  %s1 = inlined_call_operand.vmem [shape: f32[16,128], index: 1, kind: input, shape index: {}]
  %s2 = inlined_call_operand.hbm [shape: bf16[128,256], index: 2, kind: input, shape index: {}]
  %s3 = inlined_call_operand.vmem [shape: f32[1,256], index: 3, kind: input, shape index: {}]
  %s4 = inlined_call_operand.hbm [shape: f32[1,256], index: 4, kind: input, shape index: {}]
  %s5 = inlined_call_operand.hbm [shape: f32[1,256], index: 5, kind: input, shape index: {}]
  %s6 = inlined_call_operand.hbm [shape: bf16[256,512], index: 6, kind: input, shape index: {}]
  %s7 = inlined_call_operand.vmem [shape: f32[1,512], index: 7, kind: input, shape index: {}]
  %s8 = inlined_call_operand.vmem [shape: f32[1,512], index: 8, kind: input, shape index: {}]
  %s9 = inlined_call_operand.hbm [shape: f32[1,512], index: 9, kind: input, shape index: {}]
  %s10 = inlined_call_operand.hbm [shape: bf16[512,256], index: 10, kind: input, shape index: {}]
  %s11 = inlined_call_operand.hbm [shape: f32[1,256], index: 11, kind: input, shape index: {}]
  %s12 = inlined_call_operand.hbm [shape: f32[1,256], index: 12, kind: input, shape index: {}]
  %s13 = inlined_call_operand.hbm [shape: f32[1,256], index: 13, kind: input, shape index: {}]
  %s14 = inlined_call_operand.vmem [shape: bf16[256,128], index: 14, kind: input, shape index: {}]
  %s15 = inlined_call_operand.hbm [shape: f32[1,128], index: 15, kind: input, shape index: {}]
  %s16 = inlined_call_operand.hbm [shape: bf16[256,128], index: 16, kind: input, shape index: {}]
  %s17 = inlined_call_operand.hbm [shape: f32[1,128], index: 17, kind: input, shape index: {}]
  %s18 = inlined_call_operand.hbm [shape: bf16[128,256], index: 18, kind: input, shape index: {}]
  %s19 = inlined_call_operand.hbm [shape: f32[1,256], index: 19, kind: input, shape index: {}]
  %s20 = inlined_call_operand.hbm [shape: bf16[256,512], index: 20, kind: input, shape index: {}]
  %s21 = inlined_call_operand.vmem [shape: f32[1,512], index: 21, kind: input, shape index: {}]
  %s22 = inlined_call_operand.hbm [shape: bf16[512,256], index: 22, kind: input, shape index: {}]
  %s23 = inlined_call_operand.vmem [shape: f32[1,256], index: 23, kind: input, shape index: {}]
  %s24 = inlined_call_operand.hbm [shape: bf16[256,128], index: 24, kind: input, shape index: {}]
  %s25 = inlined_call_operand.vmem [shape: f32[1,128], index: 25, kind: input, shape index: {}]
  %s26 = inlined_call_operand.hbm [shape: f32[16,128], index: 26, kind: output, shape index: {0}]
  %s27 = inlined_call_operand.hbm [shape: f32[16,128], index: 27, kind: output, shape index: {1}]
  %s28 = inlined_call_operand.hbm [shape: f32[16,128], index: 28, kind: output, shape index: {2}]
  %29 = xla_tuple %s26, %s27, %s28
  %s30 = sld [smem:[#allocation0]]
  $region198: #{vae_forward.1} parent=0
    _
  %s32 = ssub.s32 1, %s30
  %s33 = scalar_select 0, %s32, %s30
  $region1: #{vae_forward.1} parent=0
    #allocation2 [shape = 'u8[65536]{0}', space=vmem, size = 0x10000, scoped, tag = 'input window, operand 2, single buffered']
    #allocation3 [shape = 's32[1]{0}', space=sflag, size = 0x4, scoped, tag = 'scoped memory for vae_forward.1']
    #allocation4 [shape = 's32[1]{0}', space=sflag, size = 0x4, scoped, tag = 'scoped memory for vae_forward.1']
    #allocation5 [shape = 'u8[1024]{0}', space=vmem, size = 0x400, scoped, tag = 'input window, operand 4, single buffered']
    #allocation6 [shape = 's32[1]{0}', space=sflag, size = 0x4, scoped, tag = 'scoped memory for vae_forward.1']
    #allocation7 [shape = 'u8[1024]{0}', space=vmem, size = 0x400, scoped, tag = 'input window, operand 5, single buffered']
    #allocation8 [shape = 'u8[262144]{0}', space=vmem, size = 0x40000, scoped, tag = 'input window, operand 6, single buffered']
    #allocation9 [shape = 's32[1]{0}', space=sflag, size = 0x4, scoped, tag = 'scoped memory for vae_forward.1']
    #allocation10 [shape = 'u8[2048]{0}', space=vmem, size = 0x800, scoped, tag = 'input window, operand 9, single buffered']
    #allocation11 [shape = 'u8[262144]{0}', space=vmem, size = 0x40000, scoped, tag = 'input window, operand 10, single buffered']
    #allocation12 [shape = 's32[1]{0}', space=sflag, size = 0x4, scoped, tag = 'scoped memory for vae_forward.1']
    #allocation13 [shape = 'u8[1024]{0}', space=vmem, size = 0x400, scoped, tag = 'input window, operand 11, single buffered']
    #allocation14 [shape = 'u8[1024]{0}', space=vmem, size = 0x400, scoped, tag = 'input window, operand 12, single buffered']
    #allocation15 [shape = 's32[1]{0}', space=sflag, size = 0x4, scoped, tag = 'scoped memory for vae_forward.1']
    #allocation16 [shape = 'u8[1024]{0}', space=vmem, size = 0x400, scoped, tag = 'input window, operand 13, single buffered']
    #allocation17 [shape = 'u8[512]{0}', space=vmem, size = 0x400, scoped, tag = 'input window, operand 15, single buffered']
    #allocation18 [shape = 's32[1]{0}', space=sflag, size = 0x4, scoped, tag = 'scoped memory for vae_forward.1']
    #allocation19 [shape = 'u8[65536]{0}', space=vmem, size = 0x10000, scoped, tag = 'input window, operand 16, single buffered']
    #allocation20 [shape = 'u8[512]{0}', space=vmem, size = 0x400, scoped, tag = 'input window, operand 17, single buffered']
    #allocation21 [shape = 's32[1]{0}', space=sflag, size = 0x4, scoped, tag = 'scoped memory for vae_forward.1']
    #allocation22 [shape = 'u8[65536]{0}', space=vmem, size = 0x10000, scoped, tag = 'input window, operand 18, single buffered']
    #allocation23 [shape = 'u8[1024]{0}', space=vmem, size = 0x400, scoped, tag = 'input window, operand 19, single buffered']
    #allocation24 [shape = 's32[1]{0}', space=sflag, size = 0x4, scoped, tag = 'scoped memory for vae_forward.1']
    #allocation25 [shape = 'u8[262144]{0}', space=vmem, size = 0x40000, scoped, tag = 'input window, operand 20, single buffered']
    #allocation26 [shape = 'u8[262144]{0}', space=vmem, size = 0x40000, scoped, tag = 'input window, operand 22, single buffered']
    #allocation27 [shape = 's32[1]{0}', space=sflag, size = 0x4, scoped, tag = 'scoped memory for vae_forward.1']
    #allocation28 [shape = 'u8[65536]{0}', space=vmem, size = 0x10000, scoped, tag = 'input window, operand 24, single buffered']
    #allocation29 [shape = 'u8[8192]{0}', space=vmem, size = 0x2000, scoped, tag = 'output window, operand 0, single buffered']
    #allocation30 [shape = 'u8[8192]{0}', space=vmem, size = 0x2000, scoped, tag = 'output window, operand 1, single buffered']
    #allocation31 [shape = 's32[1]{0}', space=sflag, size = 0x4, scoped, tag = 'scoped memory for vae_forward.1']
    #allocation32 [shape = 'u8[8192]{0}', space=vmem, size = 0x2000, scoped, tag = 'output window, operand 2, single buffered']
    %34 = vsyncpa [#allocation3], 0
    %35 = vsyncpa [#allocation6], 0
    %36 = vsyncpa [#allocation9], 0
    %37 = vsyncpa [#allocation12], 0
    %38 = vsyncpa [#allocation15], 0
    %39 = vsyncpa [#allocation18], 0
    %40 = vsyncpa [#allocation21], 0
    %41 = vsyncpa [#allocation24], 0
    %42 = vsyncpa [#allocation27], 0
    %43 = vsyncpa [#allocation4], 0
    %44 = vsyncpa [#allocation31], 0
    // Predicated region
    $region2: #{vae_forward.1} parent=1 // pred_check
      _
    $region3: #{vae_forward.1} parent=1 // pred_check_branch
      %46 = sbr.rel (0) target = $region5
    $region4: #{vae_forward.1} parent=1 // pred_region
      _
    $region5: #{vae_forward.1} parent=1 // pred_fallthru
      _
    // Predicated region
    $region6: #{vae_forward.1} parent=1 // pred_check
      _
    $region7: #{vae_forward.1} parent=1 // pred_check_branch
      %48 = sbr.rel (0) target = $region9
    $region8: #{vae_forward.1} parent=1 // pred_region
      _
    $region9: #{vae_forward.1} parent=1 // pred_fallthru
      _
    // Predicated region
    $region10: #{vae_forward.1} parent=1 // pred_check
      _
    $region11: #{vae_forward.1} parent=1 // pred_check_branch
      %50 = sbr.rel (0) target = $region13
    $region12: #{vae_forward.1} parent=1 // pred_region
      %s52 = ssub.s32 2048, 2048
      %53 = vsyncadd [#allocation3], %s52
      %s54 = sshll.u32 [#allocation2], 4
      %s55 = int_to_ptr.vmem [resolvable:$true] %s54
      %60 = dma.hbm_to_vmem [thread:$0]  %s2, 2048, %s55, [#allocation3], 128, 128, 8
    $region13: #{vae_forward.1} parent=1 // pred_fallthru
      _
    // Predicated region
    $region14: #{vae_forward.1} parent=1 // pred_check
      _
    $region15: #{vae_forward.1} parent=1 // pred_check_branch
      %62 = sbr.rel (0) target = $region17
    $region16: #{vae_forward.1} parent=1 // pred_region
      _
    $region17: #{vae_forward.1} parent=1 // pred_fallthru
      _
    // Predicated region
    $region18: #{vae_forward.1} parent=1 // pred_check
      _
    $region19: #{vae_forward.1} parent=1 // pred_check_branch
      %64 = sbr.rel (0) target = $region21
    $region20: #{vae_forward.1} parent=1 // pred_region
      %s66 = ssub.s32 32, 32
      %67 = vsyncadd [#allocation6], %s66
      %s69 = sshll.u32 [#allocation5], 4
      %s70 = int_to_ptr.vmem [resolvable:$true] %s69
      %72 = dma.hbm_to_vmem [thread:$0]  %s4, 32, %s70, [#allocation6]
    $region21: #{vae_forward.1} parent=1 // pred_fallthru
      _
    // Predicated region
    $region22: #{vae_forward.1} parent=1 // pred_check
      _
    $region23: #{vae_forward.1} parent=1 // pred_check_branch
      %74 = sbr.rel (0) target = $region25
    $region24: #{vae_forward.1} parent=1 // pred_region
      %s76 = ssub.s32 32, 32
      %77 = vsyncadd [#allocation6], %s76
      %s79 = sshll.u32 [#allocation7], 4
      %s80 = int_to_ptr.vmem [resolvable:$true] %s79
      %82 = dma.hbm_to_vmem [thread:$0]  %s5, 32, %s80, [#allocation6]
    $region25: #{vae_forward.1} parent=1 // pred_fallthru
      _
    // Predicated region
    $region26: #{vae_forward.1} parent=1 // pred_check
      _
    $region27: #{vae_forward.1} parent=1 // pred_check_branch
      %84 = sbr.rel (0) target = $region29
    $region28: #{vae_forward.1} parent=1 // pred_region
      %s86 = ssub.s32 8192, 8192
      %87 = vsyncadd [#allocation9], %s86
      %s88 = sshll.u32 [#allocation8], 4
      %s89 = int_to_ptr.vmem [resolvable:$true] %s88
      %94 = dma.hbm_to_vmem [thread:$0]  %s6, 8192, %s89, [#allocation9], 256, 256, 16
    $region29: #{vae_forward.1} parent=1 // pred_fallthru
      _
    // Predicated region
    $region30: #{vae_forward.1} parent=1 // pred_check
      _
    $region31: #{vae_forward.1} parent=1 // pred_check_branch
      %96 = sbr.rel (0) target = $region33
    $region32: #{vae_forward.1} parent=1 // pred_region
      _
    $region33: #{vae_forward.1} parent=1 // pred_fallthru
      _
    // Predicated region
    $region34: #{vae_forward.1} parent=1 // pred_check
      _
    $region35: #{vae_forward.1} parent=1 // pred_check_branch
      %98 = sbr.rel (0) target = $region37
    $region36: #{vae_forward.1} parent=1 // pred_region
      _
    $region37: #{vae_forward.1} parent=1 // pred_fallthru
      _
    // Predicated region
    $region38: #{vae_forward.1} parent=1 // pred_check
      _
    $region39: #{vae_forward.1} parent=1 // pred_check_branch
      %100 = sbr.rel (0) target = $region41
    $region40: #{vae_forward.1} parent=1 // pred_region
      %s102 = ssub.s32 64, 64
      %103 = vsyncadd [#allocation9], %s102
      %s105 = sshll.u32 [#allocation10], 4
      %s106 = int_to_ptr.vmem [resolvable:$true] %s105
      %108 = dma.hbm_to_vmem [thread:$0]  %s9, 64, %s106, [#allocation9]
    $region41: #{vae_forward.1} parent=1 // pred_fallthru
      _
    // Predicated region
    $region42: #{vae_forward.1} parent=1 // pred_check
      _
    $region43: #{vae_forward.1} parent=1 // pred_check_branch
      %110 = sbr.rel (0) target = $region45
    $region44: #{vae_forward.1} parent=1 // pred_region
      %s112 = ssub.s32 8192, 8192
      %113 = vsyncadd [#allocation12], %s112
      %s114 = sshll.u32 [#allocation11], 4
      %s115 = int_to_ptr.vmem [resolvable:$true] %s114
      %120 = dma.hbm_to_vmem [thread:$0]  %s10, 8192, %s115, [#allocation12], 128, 128, 8
    $region45: #{vae_forward.1} parent=1 // pred_fallthru
      _
    // Predicated region
    $region46: #{vae_forward.1} parent=1 // pred_check
      _
    $region47: #{vae_forward.1} parent=1 // pred_check_branch
      %122 = sbr.rel (0) target = $region49
    $region48: #{vae_forward.1} parent=1 // pred_region
      %s124 = ssub.s32 32, 32
      %125 = vsyncadd [#allocation12], %s124
      %s127 = sshll.u32 [#allocation13], 4
      %s128 = int_to_ptr.vmem [resolvable:$true] %s127
      %130 = dma.hbm_to_vmem [thread:$0]  %s11, 32, %s128, [#allocation12]
    $region49: #{vae_forward.1} parent=1 // pred_fallthru
      _
    // Predicated region
    $region50: #{vae_forward.1} parent=1 // pred_check
      _
    $region51: #{vae_forward.1} parent=1 // pred_check_branch
      %132 = sbr.rel (0) target = $region53
    $region52: #{vae_forward.1} parent=1 // pred_region
      %s134 = ssub.s32 32, 32
      %135 = vsyncadd [#allocation15], %s134
      %s137 = sshll.u32 [#allocation14], 4
      %s138 = int_to_ptr.vmem [resolvable:$true] %s137
      %140 = dma.hbm_to_vmem [thread:$0]  %s12, 32, %s138, [#allocation15]
    $region53: #{vae_forward.1} parent=1 // pred_fallthru
      _
    // Predicated region
    $region54: #{vae_forward.1} parent=1 // pred_check
      _
    $region55: #{vae_forward.1} parent=1 // pred_check_branch
      %142 = sbr.rel (0) target = $region57
    $region56: #{vae_forward.1} parent=1 // pred_region
      %s144 = ssub.s32 32, 32
      %145 = vsyncadd [#allocation15], %s144
      %s147 = sshll.u32 [#allocation16], 4
      %s148 = int_to_ptr.vmem [resolvable:$true] %s147
      %150 = dma.hbm_to_vmem [thread:$0]  %s13, 32, %s148, [#allocation15]
    $region57: #{vae_forward.1} parent=1 // pred_fallthru
      _
    // Predicated region
    $region58: #{vae_forward.1} parent=1 // pred_check
      _
    $region59: #{vae_forward.1} parent=1 // pred_check_branch
      %152 = sbr.rel (0) target = $region61
    $region60: #{vae_forward.1} parent=1 // pred_region
      _
    $region61: #{vae_forward.1} parent=1 // pred_fallthru
      _
    // Predicated region
    $region62: #{vae_forward.1} parent=1 // pred_check
      _
    $region63: #{vae_forward.1} parent=1 // pred_check_branch
      %154 = sbr.rel (0) target = $region65
    $region64: #{vae_forward.1} parent=1 // pred_region
      %s156 = ssub.s32 16, 16
      %157 = vsyncadd [#allocation18], %s156
      %s159 = sshll.u32 [#allocation17], 4
      %s160 = int_to_ptr.vmem [resolvable:$true] %s159
      %162 = dma.hbm_to_vmem [thread:$0]  %s15, 16, %s160, [#allocation18]
    $region65: #{vae_forward.1} parent=1 // pred_fallthru
      _
    // Predicated region
    $region66: #{vae_forward.1} parent=1 // pred_check
      _
    $region67: #{vae_forward.1} parent=1 // pred_check_branch
      %164 = sbr.rel (0) target = $region69
    $region68: #{vae_forward.1} parent=1 // pred_region
      %s166 = ssub.s32 2048, 2048
      %167 = vsyncadd [#allocation18], %s166
      %s168 = sshll.u32 [#allocation19], 4
      %s169 = int_to_ptr.vmem [resolvable:$true] %s168
      %174 = dma.hbm_to_vmem [thread:$0]  %s16, 2048, %s169, [#allocation18], 64, 64, 4
    $region69: #{vae_forward.1} parent=1 // pred_fallthru
      _
    // Predicated region
    $region70: #{vae_forward.1} parent=1 // pred_check
      _
    $region71: #{vae_forward.1} parent=1 // pred_check_branch
      %176 = sbr.rel (0) target = $region73
    $region72: #{vae_forward.1} parent=1 // pred_region
      %s178 = ssub.s32 16, 16
      %179 = vsyncadd [#allocation21], %s178
      %s181 = sshll.u32 [#allocation20], 4
      %s182 = int_to_ptr.vmem [resolvable:$true] %s181
      %184 = dma.hbm_to_vmem [thread:$0]  %s17, 16, %s182, [#allocation21]
    $region73: #{vae_forward.1} parent=1 // pred_fallthru
      _
    // Predicated region
    $region74: #{vae_forward.1} parent=1 // pred_check
      _
    $region75: #{vae_forward.1} parent=1 // pred_check_branch
      %186 = sbr.rel (0) target = $region77
    $region76: #{vae_forward.1} parent=1 // pred_region
      %s188 = ssub.s32 2048, 2048
      %189 = vsyncadd [#allocation21], %s188
      %s190 = sshll.u32 [#allocation22], 4
      %s191 = int_to_ptr.vmem [resolvable:$true] %s190
      %196 = dma.hbm_to_vmem [thread:$0]  %s18, 2048, %s191, [#allocation21], 128, 128, 8
    $region77: #{vae_forward.1} parent=1 // pred_fallthru
      _
    // Predicated region
    $region78: #{vae_forward.1} parent=1 // pred_check
      _
    $region79: #{vae_forward.1} parent=1 // pred_check_branch
      %198 = sbr.rel (0) target = $region81
    $region80: #{vae_forward.1} parent=1 // pred_region
      %s200 = ssub.s32 32, 32
      %201 = vsyncadd [#allocation24], %s200
      %s203 = sshll.u32 [#allocation23], 4
      %s204 = int_to_ptr.vmem [resolvable:$true] %s203
      %206 = dma.hbm_to_vmem [thread:$0]  %s19, 32, %s204, [#allocation24]
    $region81: #{vae_forward.1} parent=1 // pred_fallthru
      _
    // Predicated region
    $region82: #{vae_forward.1} parent=1 // pred_check
      _
    $region83: #{vae_forward.1} parent=1 // pred_check_branch
      %208 = sbr.rel (0) target = $region85
    $region84: #{vae_forward.1} parent=1 // pred_region
      %s210 = ssub.s32 8192, 8192
      %211 = vsyncadd [#allocation24], %s210
      %s212 = sshll.u32 [#allocation25], 4
      %s213 = int_to_ptr.vmem [resolvable:$true] %s212
      %218 = dma.hbm_to_vmem [thread:$0]  %s20, 8192, %s213, [#allocation24], 256, 256, 16
    $region85: #{vae_forward.1} parent=1 // pred_fallthru
      _
    // Predicated region
    $region86: #{vae_forward.1} parent=1 // pred_check
      _
    $region87: #{vae_forward.1} parent=1 // pred_check_branch
      %220 = sbr.rel (0) target = $region89
    $region88: #{vae_forward.1} parent=1 // pred_region
      _
    $region89: #{vae_forward.1} parent=1 // pred_fallthru
      _
    // Predicated region
    $region90: #{vae_forward.1} parent=1 // pred_check
      _
    $region91: #{vae_forward.1} parent=1 // pred_check_branch
      %222 = sbr.rel (0) target = $region93
    $region92: #{vae_forward.1} parent=1 // pred_region
      %s224 = ssub.s32 8192, 8192
      %225 = vsyncadd [#allocation27], %s224
      %s226 = sshll.u32 [#allocation26], 4
      %s227 = int_to_ptr.vmem [resolvable:$true] %s226
      %232 = dma.hbm_to_vmem [thread:$0]  %s22, 8192, %s227, [#allocation27], 128, 128, 8
    $region93: #{vae_forward.1} parent=1 // pred_fallthru
      _
    // Predicated region
    $region94: #{vae_forward.1} parent=1 // pred_check
      _
    $region95: #{vae_forward.1} parent=1 // pred_check_branch
      %234 = sbr.rel (0) target = $region97
    $region96: #{vae_forward.1} parent=1 // pred_region
      _
    $region97: #{vae_forward.1} parent=1 // pred_fallthru
      _
    // Predicated region
    $region98: #{vae_forward.1} parent=1 // pred_check
      _
    $region99: #{vae_forward.1} parent=1 // pred_check_branch
      %236 = sbr.rel (0) target = $region101
    $region100: #{vae_forward.1} parent=1 // pred_region
      %s238 = ssub.s32 2048, 2048
      %239 = vsyncadd [#allocation27], %s238
      %s240 = sshll.u32 [#allocation28], 4
      %s241 = int_to_ptr.vmem [resolvable:$true] %s240
      %246 = dma.hbm_to_vmem [thread:$0]  %s24, 2048, %s241, [#allocation27], 64, 64, 4
    $region101: #{vae_forward.1} parent=1 // pred_fallthru
      _
    // Predicated region
    $region102: #{vae_forward.1} parent=1 // pred_check
      _
    $region103: #{vae_forward.1} parent=1 // pred_check_branch
      %248 = sbr.rel (0) target = $region105
    $region104: #{vae_forward.1} parent=1 // pred_region
      _
    $region105: #{vae_forward.1} parent=1 // pred_fallthru
      _
    // Predicated region
    $region106: #{vae_forward.1} parent=1 // pred_check
      _
    $region107: #{vae_forward.1} parent=1 // pred_check_branch
      %250 = sbr.rel (0) target = $region109
    $region108: #{vae_forward.1} parent=1 // pred_region
      %251 = dma.done [#allocation3], 2048
    $region109: #{vae_forward.1} parent=1 // pred_fallthru
      _
    // Predicated region
    $region110: #{vae_forward.1} parent=1 // pred_check
      _
    $region111: #{vae_forward.1} parent=1 // pred_check_branch
      %253 = sbr.rel (0) target = $region113
    $region112: #{vae_forward.1} parent=1 // pred_region
      %254 = dma.done [#allocation6], 32
    $region113: #{vae_forward.1} parent=1 // pred_fallthru
      _
    // Predicated region
    $region114: #{vae_forward.1} parent=1 // pred_check
      _
    $region115: #{vae_forward.1} parent=1 // pred_check_branch
      %256 = sbr.rel (0) target = $region117
    $region116: #{vae_forward.1} parent=1 // pred_region
      %257 = dma.done [#allocation6], 32
    $region117: #{vae_forward.1} parent=1 // pred_fallthru
      _
    // Predicated region
    $region118: #{vae_forward.1} parent=1 // pred_check
      _
    $region119: #{vae_forward.1} parent=1 // pred_check_branch
      %259 = sbr.rel (0) target = $region121
    $region120: #{vae_forward.1} parent=1 // pred_region
      %260 = dma.done [#allocation9], 8192
    $region121: #{vae_forward.1} parent=1 // pred_fallthru
      _
    // Predicated region
    $region122: #{vae_forward.1} parent=1 // pred_check
      _
    $region123: #{vae_forward.1} parent=1 // pred_check_branch
      %262 = sbr.rel (0) target = $region125
    $region124: #{vae_forward.1} parent=1 // pred_region
      %263 = dma.done [#allocation9], 64
    $region125: #{vae_forward.1} parent=1 // pred_fallthru
      _
    // Predicated region
    $region126: #{vae_forward.1} parent=1 // pred_check
      _
    $region127: #{vae_forward.1} parent=1 // pred_check_branch
      %265 = sbr.rel (0) target = $region129
    $region128: #{vae_forward.1} parent=1 // pred_region
      %266 = dma.done [#allocation12], 8192
    $region129: #{vae_forward.1} parent=1 // pred_fallthru
      _
    // Predicated region
    $region130: #{vae_forward.1} parent=1 // pred_check
      _
    $region131: #{vae_forward.1} parent=1 // pred_check_branch
      %268 = sbr.rel (0) target = $region133
    $region132: #{vae_forward.1} parent=1 // pred_region
      %269 = dma.done [#allocation12], 32
    $region133: #{vae_forward.1} parent=1 // pred_fallthru
      _
    // Predicated region
    $region134: #{vae_forward.1} parent=1 // pred_check
      _
    $region135: #{vae_forward.1} parent=1 // pred_check_branch
      %271 = sbr.rel (0) target = $region137
    $region136: #{vae_forward.1} parent=1 // pred_region
      %272 = dma.done [#allocation15], 32
    $region137: #{vae_forward.1} parent=1 // pred_fallthru
      _
    // Predicated region
    $region138: #{vae_forward.1} parent=1 // pred_check
      _
    $region139: #{vae_forward.1} parent=1 // pred_check_branch
      %274 = sbr.rel (0) target = $region141
    $region140: #{vae_forward.1} parent=1 // pred_region
      %275 = dma.done [#allocation15], 32
    $region141: #{vae_forward.1} parent=1 // pred_fallthru
      _
    // Predicated region
    $region142: #{vae_forward.1} parent=1 // pred_check
      _
    $region143: #{vae_forward.1} parent=1 // pred_check_branch
      %277 = sbr.rel (0) target = $region145
    $region144: #{vae_forward.1} parent=1 // pred_region
      %278 = dma.done [#allocation18], 16
    $region145: #{vae_forward.1} parent=1 // pred_fallthru
      _
    // Predicated region
    $region146: #{vae_forward.1} parent=1 // pred_check
      _
    $region147: #{vae_forward.1} parent=1 // pred_check_branch
      %280 = sbr.rel (0) target = $region149
    $region148: #{vae_forward.1} parent=1 // pred_region
      %281 = dma.done [#allocation18], 2048
    $region149: #{vae_forward.1} parent=1 // pred_fallthru
      _
    // Predicated region
    $region150: #{vae_forward.1} parent=1 // pred_check
      _
    $region151: #{vae_forward.1} parent=1 // pred_check_branch
      %283 = sbr.rel (0) target = $region153
    $region152: #{vae_forward.1} parent=1 // pred_region
      %284 = dma.done [#allocation21], 16
    $region153: #{vae_forward.1} parent=1 // pred_fallthru
      _
    // Predicated region
    $region154: #{vae_forward.1} parent=1 // pred_check
      _
    $region155: #{vae_forward.1} parent=1 // pred_check_branch
      %286 = sbr.rel (0) target = $region157
    $region156: #{vae_forward.1} parent=1 // pred_region
      %287 = dma.done [#allocation21], 2048
    $region157: #{vae_forward.1} parent=1 // pred_fallthru
      _
    // Predicated region
    $region158: #{vae_forward.1} parent=1 // pred_check
      _
    $region159: #{vae_forward.1} parent=1 // pred_check_branch
      %289 = sbr.rel (0) target = $region161
    $region160: #{vae_forward.1} parent=1 // pred_region
      %290 = dma.done [#allocation24], 32
    $region161: #{vae_forward.1} parent=1 // pred_fallthru
      _
    // Predicated region
    $region162: #{vae_forward.1} parent=1 // pred_check
      _
    $region163: #{vae_forward.1} parent=1 // pred_check_branch
      %292 = sbr.rel (0) target = $region165
    $region164: #{vae_forward.1} parent=1 // pred_region
      %293 = dma.done [#allocation24], 8192
    $region165: #{vae_forward.1} parent=1 // pred_fallthru
      _
    // Predicated region
    $region166: #{vae_forward.1} parent=1 // pred_check
      _
    $region167: #{vae_forward.1} parent=1 // pred_check_branch
      %295 = sbr.rel (0) target = $region169
    $region168: #{vae_forward.1} parent=1 // pred_region
      %296 = dma.done [#allocation27], 8192
    $region169: #{vae_forward.1} parent=1 // pred_fallthru
      _
    // Predicated region
    $region170: #{vae_forward.1} parent=1 // pred_check
      _
    $region171: #{vae_forward.1} parent=1 // pred_check_branch
      %298 = sbr.rel (0) target = $region173
    $region172: #{vae_forward.1} parent=1 // pred_region
      %299 = dma.done [#allocation27], 2048
    $region173: #{vae_forward.1} parent=1 // pred_fallthru
      _
    %v301 = vld [vmem:[%s0] sm:$0xf]
    %v302 = vld [vmem:[%s0 + $0x4] sm:$0xf]
    %v303 = vld [vmem:[#allocation2] sm:$0xff]
    %v304 = vld [vmem:[#allocation2 + $0x8] sm:$0xff]
    %v305 = vld [vmem:[#allocation2 + $0x10] sm:$0xff]
    %v306 = vld [vmem:[#allocation2 + $0x18] sm:$0xff]
    %v307 = vld [vmem:[#allocation2 + $0x20] sm:$0xff]
    %v308 = vld [vmem:[#allocation2 + $0x28] sm:$0xff]
    %v309 = vld [vmem:[#allocation2 + $0x30] sm:$0xff]
    %v310 = vld [vmem:[#allocation2 + $0x38] sm:$0xff]
    %v311 = vld [vmem:[#allocation2 + $0x40] sm:$0xff]
    %v312 = vld [vmem:[#allocation2 + $0x48] sm:$0xff]
    %v313 = vld [vmem:[#allocation2 + $0x50] sm:$0xff]
    %v314 = vld [vmem:[#allocation2 + $0x58] sm:$0xff]
    %v315 = vld [vmem:[#allocation2 + $0x60] sm:$0xff]
    %v316 = vld [vmem:[#allocation2 + $0x68] sm:$0xff]
    %v317 = vld [vmem:[#allocation2 + $0x70] sm:$0xff]
    %v318 = vld [vmem:[#allocation2 + $0x78] sm:$0xff]
    %v319 = vld [vmem:[%s3] sm:$0x3]
    %v321 = vlaneseq
    %v322 = vshrl.u32 %v321, 7
    %v323 = vsub.s32 0, %v322
    %v324 = vrot.slane %v319, %v323
    %v325 = vlaneseq
    %v326 = vshrl.u32 %v325, 7
    %v327 = vsub.s32 1, %v326
    %v328 = vrot.slane %v319, %v327
    %v333 = vunpack.c.l.b16 %v301
    %v334 = vunpack.c.l.b16 %v302
    %v335 = vpack.c.b16 %v334, %v333
    %v353 = vunpack.c.l.b16 %v303
    %v354 = vunpack.c.h.b16 %v303
    %v355 = vunpack.c.l.b16 %v304
    %v356 = vunpack.c.h.b16 %v304
    %v357 = vunpack.c.l.b16 %v305
    %v358 = vunpack.c.h.b16 %v305
    %v359 = vunpack.c.l.b16 %v306
    %v360 = vunpack.c.h.b16 %v306
    %v361 = vunpack.c.l.b16 %v307
    %v362 = vunpack.c.h.b16 %v307
    %v363 = vunpack.c.l.b16 %v308
    %v364 = vunpack.c.h.b16 %v308
    %v365 = vunpack.c.l.b16 %v309
    %v366 = vunpack.c.h.b16 %v309
    %v367 = vunpack.c.l.b16 %v310
    %v368 = vunpack.c.h.b16 %v310
    %v369 = vunpack.c.l.b16 %v311
    %v370 = vunpack.c.h.b16 %v311
    %v371 = vunpack.c.l.b16 %v312
    %v372 = vunpack.c.h.b16 %v312
    %v373 = vunpack.c.l.b16 %v313
    %v374 = vunpack.c.h.b16 %v313
    %v375 = vunpack.c.l.b16 %v314
    %v376 = vunpack.c.h.b16 %v314
    %v377 = vunpack.c.l.b16 %v315
    %v378 = vunpack.c.h.b16 %v315
    %v379 = vunpack.c.l.b16 %v316
    %v380 = vunpack.c.h.b16 %v316
    %v381 = vunpack.c.l.b16 %v317
    %v382 = vunpack.c.h.b16 %v317
    %v383 = vunpack.c.l.b16 %v318
    %v384 = vunpack.c.h.b16 %v318
    %v385 = vpack.c.b16 %v355, %v353
    %v386 = vpack.c.b16 %v356, %v354
    %v387 = vpack.c.b16 %v359, %v357
    %v388 = vpack.c.b16 %v360, %v358
    %v389 = vpack.c.b16 %v363, %v361
    %v390 = vpack.c.b16 %v364, %v362
    %v391 = vpack.c.b16 %v367, %v365
    %v392 = vpack.c.b16 %v368, %v366
    %v393 = vpack.c.b16 %v371, %v369
    %v394 = vpack.c.b16 %v372, %v370
    %v395 = vpack.c.b16 %v375, %v373
    %v396 = vpack.c.b16 %v376, %v374
    %v397 = vpack.c.b16 %v379, %v377
    %v398 = vpack.c.b16 %v380, %v378
    %v399 = vpack.c.b16 %v383, %v381
    %v400 = vpack.c.b16 %v384, %v382
    %417 = vmatprep.subr.bf16.mxu0 %v386
    %418 = vmatpush1.bf16.msra.mxu0 %v385
    %419 = vmatprep.subr.bf16.mxu0 %v388
    %420 = vmatpush1.bf16.msra.mxu0 %v387
    %421 = vmatprep.subr.bf16.mxu0 %v390
    %422 = vmatpush1.bf16.msra.mxu0 %v389
    %423 = vmatprep.subr.bf16.mxu0 %v392
    %424 = vmatpush1.bf16.msra.mxu0 %v391
    %425 = vmatprep.subr.bf16.mxu0 %v394
    %426 = vmatpush1.bf16.msra.mxu0 %v393
    %427 = vmatprep.subr.bf16.mxu0 %v396
    %428 = vmatpush1.bf16.msra.mxu0 %v395
    %429 = vmatprep.subr.bf16.mxu0 %v398
    %430 = vmatpush1.bf16.msra.mxu0 %v397
    %431 = vmatprep.subr.bf16.mxu0 %v400
    %432 = vmatpush1.bf16.msra.mxu0 %v399
    %433 = vmatprep.subr.bf16.mxu0 0
    %434 = vmatpush1.bf16.msra.mxu0 0
    %435 = vmatprep.subr.bf16.mxu0 0
    %436 = vmatpush1.bf16.msra.mxu0 0
    %437 = vmatprep.subr.bf16.mxu0 0
    %438 = vmatpush1.bf16.msra.mxu0 0
    %439 = vmatprep.subr.bf16.mxu0 0
    %440 = vmatpush1.bf16.msra.mxu0 0
    %441 = vmatprep.subr.bf16.mxu0 0
    %442 = vmatpush1.bf16.msra.mxu0 0
    %443 = vmatprep.subr.bf16.mxu0 0
    %444 = vmatpush1.bf16.msra.mxu0 0
    %445 = vmatprep.subr.bf16.mxu0 0
    %446 = vmatpush1.bf16.msra.mxu0 0
    %447 = vmatprep.subr.bf16.mxu0 0
    %448 = vmatpush1.bf16.msra.mxu0 0
    %449 = vmatprep.mubr.bf16.mxu0 0
    %450 = vmatmul.mubr.bf16.gmra.mrb[0].mxu0 %v335
    %v451 = vpop.f32.mrb[0].mxu0
    %v452 = vadd.f32 %v324, %v451
    %v453 = vpop.f32.mrb[0].mxu0
    %v454 = vadd.f32 %v328, %v453
    %v455 = vpop.f32.mrb[0].mxu0
    %v456 = vadd.f32 %v324, %v455
    %v457 = vpop.f32.mrb[0].mxu0
    %v458 = vadd.f32 %v328, %v457
    %459 = vdwg.mxu0
    %v460 = vadd.f32 %v452, %v456
    %v461 = vrot.slane %v460, 4
    %v462 = vadd.f32 %v460, %v461
    %v463 = vrot.slane %v462, 2
    %v464 = vadd.f32 %v462, %v463
    %v465 = vrot.slane %v464, 1
    %v466 = vadd.f32 %v464, %v465
    %v467 = vadd.f32 %v454, %v458
    %v468 = vrot.slane %v467, 4
    %v469 = vadd.f32 %v467, %v468
    %v470 = vrot.slane %v469, 2
    %v471 = vadd.f32 %v469, %v470
    %v472 = vrot.slane %v471, 1
    %v473 = vadd.f32 %v471, %v472
    %v474 = vrcp.pop 16.0
    %v475 = vmul.f32 %v466, %v474
    %v476 = vmul.f32 %v473, %v474
    %v477 = vsub.f32 %v452, %v475
    %v478 = vsub.f32 %v454, %v476
    %v479 = vsub.f32 %v456, %v475
    %v480 = vsub.f32 %v458, %v476
    %v481 = vmul.f32 %v477, %v477
    %v482 = vmul.f32 %v478, %v478
    %v483 = vmul.f32 %v479, %v479
    %v484 = vmul.f32 %v480, %v480
    %v485 = vadd.f32 %v481, %v483
    %v486 = vrot.slane %v485, 4
    %v487 = vadd.f32 %v485, %v486
    %v488 = vrot.slane %v487, 2
    %v489 = vadd.f32 %v487, %v488
    %v490 = vrot.slane %v489, 1
    %v491 = vadd.f32 %v489, %v490
    %v492 = vadd.f32 %v482, %v484
    %v493 = vrot.slane %v492, 4
    %v494 = vadd.f32 %v492, %v493
    %v495 = vrot.slane %v494, 2
    %v496 = vadd.f32 %v494, %v495
    %v497 = vrot.slane %v496, 1
    %v498 = vadd.f32 %v496, %v497
    %v499 = vmul.f32 %v491, %v474
    %v500 = vmul.f32 %v498, %v474
    %v501 = vld [vmem:[#allocation5] sm:$0x3]
    %v502 = vadd.f32 %v499, 1e-05
    %v503 = vadd.f32 %v500, 1e-05
    %v504 = vrsqrt.pop %v502
    %v505 = vrsqrt.pop %v503
    %v508 = vcombine.low %v504, %v505
    %v510 = vunpack.c.l.s4 1966171168
    %v511 = vunpack.c.0.s8 %v510
    %v512 = vlaneseq
    %v513 = vshrl.u32 %v512, 7
    %v514 = vsub.s32 %v511, %v513
    %v515 = vrot.slane %v508, %v514
    %v517 = vunpack.c.l.s4 1966171168
    %v518 = vunpack.c.0.s8 %v517
    %v519 = vlaneseq
    %v520 = vshrl.u32 %v519, 7
    %v521 = vsub.s32 %v518, %v520
    %v522 = vrot.slane %v515, %v521
    %v524 = vmul.f32 %v501, %v522
    %v526 = vlaneseq
    %v527 = vshrl.u32 %v526, 7
    %v528 = vsub.s32 0, %v527
    %v529 = vrot.slane %v524, %v528
    %v530 = vlaneseq
    %v531 = vshrl.u32 %v530, 7
    %v532 = vsub.s32 1, %v531
    %v533 = vrot.slane %v524, %v532
    %v536 = vmul.f32 %v477, %v529
    %v537 = vmul.f32 %v478, %v533
    %v538 = vmul.f32 %v479, %v529
    %v539 = vmul.f32 %v480, %v533
    %v540 = vld [vmem:[#allocation7] sm:$0x3]
    %v542 = vlaneseq
    %v543 = vshrl.u32 %v542, 7
    %v544 = vsub.s32 0, %v543
    %v545 = vrot.slane %v540, %v544
    %v546 = vlaneseq
    %v547 = vshrl.u32 %v546, 7
    %v548 = vsub.s32 1, %v547
    %v549 = vrot.slane %v540, %v548
    %v552 = vadd.f32 %v536, %v545
    %v553 = vadd.f32 %v537, %v549
    %v554 = vadd.f32 %v538, %v545
    %v555 = vadd.f32 %v539, %v549
    %v556 = vmax.f32 %v552, 0.0
    %v557 = vmax.f32 %v553, 0.0
    %v558 = vmax.f32 %v554, 0.0
    %v559 = vmax.f32 %v555, 0.0
    %v560 = vpack.c.bf16 %v558, %v556
    %v561 = vpack.c.bf16 %v559, %v557
    %v562 = vld [vmem:[#allocation8] sm:$0xff]
    %v563 = vld [vmem:[#allocation8 + $0x8] sm:$0xff]
    %v564 = vld [vmem:[#allocation8 + $0x10] sm:$0xff]
    %v565 = vld [vmem:[#allocation8 + $0x18] sm:$0xff]
    %v566 = vld [vmem:[#allocation8 + $0x20] sm:$0xff]
    %v567 = vld [vmem:[#allocation8 + $0x28] sm:$0xff]
    %v568 = vld [vmem:[#allocation8 + $0x30] sm:$0xff]
    %v569 = vld [vmem:[#allocation8 + $0x38] sm:$0xff]
    %v570 = vld [vmem:[#allocation8 + $0x40] sm:$0xff]
    %v571 = vld [vmem:[#allocation8 + $0x48] sm:$0xff]
    %v572 = vld [vmem:[#allocation8 + $0x50] sm:$0xff]
    %v573 = vld [vmem:[#allocation8 + $0x58] sm:$0xff]
    %v574 = vld [vmem:[#allocation8 + $0x60] sm:$0xff]
    %v575 = vld [vmem:[#allocation8 + $0x68] sm:$0xff]
    %v576 = vld [vmem:[#allocation8 + $0x70] sm:$0xff]
    %v577 = vld [vmem:[#allocation8 + $0x78] sm:$0xff]
    %v578 = vld [vmem:[#allocation8 + $0x80] sm:$0xff]
    %v579 = vld [vmem:[#allocation8 + $0x88] sm:$0xff]
    %v580 = vld [vmem:[#allocation8 + $0x90] sm:$0xff]
    %v581 = vld [vmem:[#allocation8 + $0x98] sm:$0xff]
    %v582 = vld [vmem:[#allocation8 + $0xa0] sm:$0xff]
    %v583 = vld [vmem:[#allocation8 + $0xa8] sm:$0xff]
    %v584 = vld [vmem:[#allocation8 + $0xb0] sm:$0xff]
    %v585 = vld [vmem:[#allocation8 + $0xb8] sm:$0xff]
    %v586 = vld [vmem:[#allocation8 + $0xc0] sm:$0xff]
    %v587 = vld [vmem:[#allocation8 + $0xc8] sm:$0xff]
    %v588 = vld [vmem:[#allocation8 + $0xd0] sm:$0xff]
    %v589 = vld [vmem:[#allocation8 + $0xd8] sm:$0xff]
    %v590 = vld [vmem:[#allocation8 + $0xe0] sm:$0xff]
    %v591 = vld [vmem:[#allocation8 + $0xe8] sm:$0xff]
    %v592 = vld [vmem:[#allocation8 + $0xf0] sm:$0xff]
    %v593 = vld [vmem:[#allocation8 + $0xf8] sm:$0xff]
    %v594 = vld [vmem:[#allocation8 + $0x100] sm:$0xff]
    %v595 = vld [vmem:[#allocation8 + $0x108] sm:$0xff]
    %v596 = vld [vmem:[#allocation8 + $0x110] sm:$0xff]
    %v597 = vld [vmem:[#allocation8 + $0x118] sm:$0xff]
    %v598 = vld [vmem:[#allocation8 + $0x120] sm:$0xff]
    %v599 = vld [vmem:[#allocation8 + $0x128] sm:$0xff]
    %v600 = vld [vmem:[#allocation8 + $0x130] sm:$0xff]
    %v601 = vld [vmem:[#allocation8 + $0x138] sm:$0xff]
    %v602 = vld [vmem:[#allocation8 + $0x140] sm:$0xff]
    %v603 = vld [vmem:[#allocation8 + $0x148] sm:$0xff]
    %v604 = vld [vmem:[#allocation8 + $0x150] sm:$0xff]
    %v605 = vld [vmem:[#allocation8 + $0x158] sm:$0xff]
    %v606 = vld [vmem:[#allocation8 + $0x160] sm:$0xff]
    %v607 = vld [vmem:[#allocation8 + $0x168] sm:$0xff]
    %v608 = vld [vmem:[#allocation8 + $0x170] sm:$0xff]
    %v609 = vld [vmem:[#allocation8 + $0x178] sm:$0xff]
    %v610 = vld [vmem:[#allocation8 + $0x180] sm:$0xff]
    %v611 = vld [vmem:[#allocation8 + $0x188] sm:$0xff]
    %v612 = vld [vmem:[#allocation8 + $0x190] sm:$0xff]
    %v613 = vld [vmem:[#allocation8 + $0x198] sm:$0xff]
    %v614 = vld [vmem:[#allocation8 + $0x1a0] sm:$0xff]
    %v615 = vld [vmem:[#allocation8 + $0x1a8] sm:$0xff]
    %v616 = vld [vmem:[#allocation8 + $0x1b0] sm:$0xff]
    %v617 = vld [vmem:[#allocation8 + $0x1b8] sm:$0xff]
    %v618 = vld [vmem:[#allocation8 + $0x1c0] sm:$0xff]
    %v619 = vld [vmem:[#allocation8 + $0x1c8] sm:$0xff]
    %v620 = vld [vmem:[#allocation8 + $0x1d0] sm:$0xff]
    %v621 = vld [vmem:[#allocation8 + $0x1d8] sm:$0xff]
    %v622 = vld [vmem:[#allocation8 + $0x1e0] sm:$0xff]
    %v623 = vld [vmem:[#allocation8 + $0x1e8] sm:$0xff]
    %v624 = vld [vmem:[#allocation8 + $0x1f0] sm:$0xff]
    %v625 = vld [vmem:[#allocation8 + $0x1f8] sm:$0xff]
    %v626 = vld [vmem:[%s7] sm:$0xf]
    %v628 = vlaneseq
    %v629 = vshrl.u32 %v628, 7
    %v630 = vsub.s32 0, %v629
    %v631 = vrot.slane %v626, %v630
    %v632 = vlaneseq
    %v633 = vshrl.u32 %v632, 7
    %v634 = vsub.s32 1, %v633
    %v635 = vrot.slane %v626, %v634
    %v636 = vlaneseq
    %v637 = vshrl.u32 %v636, 7
    %v638 = vsub.s32 2, %v637
    %v639 = vrot.slane %v626, %v638
    %v640 = vlaneseq
    %v641 = vshrl.u32 %v640, 7
    %v642 = vsub.s32 3, %v641
    %v643 = vrot.slane %v626, %v642
    %v712 = vunpack.c.l.b16 %v562
    %v713 = vunpack.c.h.b16 %v562
    %v714 = vunpack.c.l.b16 %v563
    %v715 = vunpack.c.h.b16 %v563
    %v716 = vunpack.c.l.b16 %v564
    %v717 = vunpack.c.h.b16 %v564
    %v718 = vunpack.c.l.b16 %v565
    %v719 = vunpack.c.h.b16 %v565
    %v720 = vunpack.c.l.b16 %v566
    %v721 = vunpack.c.h.b16 %v566
    %v722 = vunpack.c.l.b16 %v567
    %v723 = vunpack.c.h.b16 %v567
    %v724 = vunpack.c.l.b16 %v568
    %v725 = vunpack.c.h.b16 %v568
    %v726 = vunpack.c.l.b16 %v569
    %v727 = vunpack.c.h.b16 %v569
    %v728 = vunpack.c.l.b16 %v570
    %v729 = vunpack.c.h.b16 %v570
    %v730 = vunpack.c.l.b16 %v571
    %v731 = vunpack.c.h.b16 %v571
    %v732 = vunpack.c.l.b16 %v572
    %v733 = vunpack.c.h.b16 %v572
    %v734 = vunpack.c.l.b16 %v573
    %v735 = vunpack.c.h.b16 %v573
    %v736 = vunpack.c.l.b16 %v574
    %v737 = vunpack.c.h.b16 %v574
    %v738 = vunpack.c.l.b16 %v575
    %v739 = vunpack.c.h.b16 %v575
    %v740 = vunpack.c.l.b16 %v576
    %v741 = vunpack.c.h.b16 %v576
    %v742 = vunpack.c.l.b16 %v577
    %v743 = vunpack.c.h.b16 %v577
    %v744 = vunpack.c.l.b16 %v578
    %v745 = vunpack.c.h.b16 %v578
    %v746 = vunpack.c.l.b16 %v579
    %v747 = vunpack.c.h.b16 %v579
    %v748 = vunpack.c.l.b16 %v580
    %v749 = vunpack.c.h.b16 %v580
    %v750 = vunpack.c.l.b16 %v581
    %v751 = vunpack.c.h.b16 %v581
    %v752 = vunpack.c.l.b16 %v582
    %v753 = vunpack.c.h.b16 %v582
    %v754 = vunpack.c.l.b16 %v583
    %v755 = vunpack.c.h.b16 %v583
    %v756 = vunpack.c.l.b16 %v584
    %v757 = vunpack.c.h.b16 %v584
    %v758 = vunpack.c.l.b16 %v585
    %v759 = vunpack.c.h.b16 %v585
    %v760 = vunpack.c.l.b16 %v586
    %v761 = vunpack.c.h.b16 %v586
    %v762 = vunpack.c.l.b16 %v587
    %v763 = vunpack.c.h.b16 %v587
    %v764 = vunpack.c.l.b16 %v588
    %v765 = vunpack.c.h.b16 %v588
    %v766 = vunpack.c.l.b16 %v589
    %v767 = vunpack.c.h.b16 %v589
    %v768 = vunpack.c.l.b16 %v590
    %v769 = vunpack.c.h.b16 %v590
    %v770 = vunpack.c.l.b16 %v591
    %v771 = vunpack.c.h.b16 %v591
    %v772 = vunpack.c.l.b16 %v592
    %v773 = vunpack.c.h.b16 %v592
    %v774 = vunpack.c.l.b16 %v593
    %v775 = vunpack.c.h.b16 %v593
    %v776 = vunpack.c.l.b16 %v594
    %v777 = vunpack.c.h.b16 %v594
    %v778 = vunpack.c.l.b16 %v595
    %v779 = vunpack.c.h.b16 %v595
    %v780 = vunpack.c.l.b16 %v596
    %v781 = vunpack.c.h.b16 %v596
    %v782 = vunpack.c.l.b16 %v597
    %v783 = vunpack.c.h.b16 %v597
    %v784 = vunpack.c.l.b16 %v598
    %v785 = vunpack.c.h.b16 %v598
    %v786 = vunpack.c.l.b16 %v599
    %v787 = vunpack.c.h.b16 %v599
    %v788 = vunpack.c.l.b16 %v600
    %v789 = vunpack.c.h.b16 %v600
    %v790 = vunpack.c.l.b16 %v601
    %v791 = vunpack.c.h.b16 %v601
    %v792 = vunpack.c.l.b16 %v602
    %v793 = vunpack.c.h.b16 %v602
    %v794 = vunpack.c.l.b16 %v603
    %v795 = vunpack.c.h.b16 %v603
    %v796 = vunpack.c.l.b16 %v604
    %v797 = vunpack.c.h.b16 %v604
    %v798 = vunpack.c.l.b16 %v605
    %v799 = vunpack.c.h.b16 %v605
    %v800 = vunpack.c.l.b16 %v606
    %v801 = vunpack.c.h.b16 %v606
    %v802 = vunpack.c.l.b16 %v607
    %v803 = vunpack.c.h.b16 %v607
    %v804 = vunpack.c.l.b16 %v608
    %v805 = vunpack.c.h.b16 %v608
    %v806 = vunpack.c.l.b16 %v609
    %v807 = vunpack.c.h.b16 %v609
    %v808 = vunpack.c.l.b16 %v610
    %v809 = vunpack.c.h.b16 %v610
    %v810 = vunpack.c.l.b16 %v611
    %v811 = vunpack.c.h.b16 %v611
    %v812 = vunpack.c.l.b16 %v612
    %v813 = vunpack.c.h.b16 %v612
    %v814 = vunpack.c.l.b16 %v613
    %v815 = vunpack.c.h.b16 %v613
    %v816 = vunpack.c.l.b16 %v614
    %v817 = vunpack.c.h.b16 %v614
    %v818 = vunpack.c.l.b16 %v615
    %v819 = vunpack.c.h.b16 %v615
    %v820 = vunpack.c.l.b16 %v616
    %v821 = vunpack.c.h.b16 %v616
    %v822 = vunpack.c.l.b16 %v617
    %v823 = vunpack.c.h.b16 %v617
    %v824 = vunpack.c.l.b16 %v618
    %v825 = vunpack.c.h.b16 %v618
    %v826 = vunpack.c.l.b16 %v619
    %v827 = vunpack.c.h.b16 %v619
    %v828 = vunpack.c.l.b16 %v620
    %v829 = vunpack.c.h.b16 %v620
    %v830 = vunpack.c.l.b16 %v621
    %v831 = vunpack.c.h.b16 %v621
    %v832 = vunpack.c.l.b16 %v622
    %v833 = vunpack.c.h.b16 %v622
    %v834 = vunpack.c.l.b16 %v623
    %v835 = vunpack.c.h.b16 %v623
    %v836 = vunpack.c.l.b16 %v624
    %v837 = vunpack.c.h.b16 %v624
    %v838 = vunpack.c.l.b16 %v625
    %v839 = vunpack.c.h.b16 %v625
    %v840 = vpack.c.b16 %v716, %v712
    %v841 = vpack.c.b16 %v717, %v713
    %v842 = vpack.c.b16 %v718, %v714
    %v843 = vpack.c.b16 %v719, %v715
    %v844 = vpack.c.b16 %v724, %v720
    %v845 = vpack.c.b16 %v725, %v721
    %v846 = vpack.c.b16 %v726, %v722
    %v847 = vpack.c.b16 %v727, %v723
    %v848 = vpack.c.b16 %v732, %v728
    %v849 = vpack.c.b16 %v733, %v729
    %v850 = vpack.c.b16 %v734, %v730
    %v851 = vpack.c.b16 %v735, %v731
    %v852 = vpack.c.b16 %v740, %v736
    %v853 = vpack.c.b16 %v741, %v737
    %v854 = vpack.c.b16 %v742, %v738
    %v855 = vpack.c.b16 %v743, %v739
    %v856 = vpack.c.b16 %v748, %v744
    %v857 = vpack.c.b16 %v749, %v745
    %v858 = vpack.c.b16 %v750, %v746
    %v859 = vpack.c.b16 %v751, %v747
    %v860 = vpack.c.b16 %v756, %v752
    %v861 = vpack.c.b16 %v757, %v753
    %v862 = vpack.c.b16 %v758, %v754
    %v863 = vpack.c.b16 %v759, %v755
    %v864 = vpack.c.b16 %v764, %v760
    %v865 = vpack.c.b16 %v765, %v761
    %v866 = vpack.c.b16 %v766, %v762
    %v867 = vpack.c.b16 %v767, %v763
    %v868 = vpack.c.b16 %v772, %v768
    %v869 = vpack.c.b16 %v773, %v769
    %v870 = vpack.c.b16 %v774, %v770
    %v871 = vpack.c.b16 %v775, %v771
    %v872 = vpack.c.b16 %v780, %v776
    %v873 = vpack.c.b16 %v781, %v777
    %v874 = vpack.c.b16 %v782, %v778
    %v875 = vpack.c.b16 %v783, %v779
    %v876 = vpack.c.b16 %v788, %v784
    %v877 = vpack.c.b16 %v789, %v785
    %v878 = vpack.c.b16 %v790, %v786
    %v879 = vpack.c.b16 %v791, %v787
    %v880 = vpack.c.b16 %v796, %v792
    %v881 = vpack.c.b16 %v797, %v793
    %v882 = vpack.c.b16 %v798, %v794
    %v883 = vpack.c.b16 %v799, %v795
    %v884 = vpack.c.b16 %v804, %v800
    %v885 = vpack.c.b16 %v805, %v801
    %v886 = vpack.c.b16 %v806, %v802
    %v887 = vpack.c.b16 %v807, %v803
    %v888 = vpack.c.b16 %v812, %v808
    %v889 = vpack.c.b16 %v813, %v809
    %v890 = vpack.c.b16 %v814, %v810
    %v891 = vpack.c.b16 %v815, %v811
    %v892 = vpack.c.b16 %v820, %v816
    %v893 = vpack.c.b16 %v821, %v817
    %v894 = vpack.c.b16 %v822, %v818
    %v895 = vpack.c.b16 %v823, %v819
    %v896 = vpack.c.b16 %v828, %v824
    %v897 = vpack.c.b16 %v829, %v825
    %v898 = vpack.c.b16 %v830, %v826
    %v899 = vpack.c.b16 %v831, %v827
    %v900 = vpack.c.b16 %v836, %v832
    %v901 = vpack.c.b16 %v837, %v833
    %v902 = vpack.c.b16 %v838, %v834
    %v903 = vpack.c.b16 %v839, %v835
    %968 = vmatprep.subr.bf16.mxu0 %v841
    %969 = vmatpush1.bf16.msra.mxu0 %v840
    %970 = vmatprep.subr.bf16.mxu0 %v845
    %971 = vmatpush1.bf16.msra.mxu0 %v844
    %972 = vmatprep.subr.bf16.mxu0 %v849
    %973 = vmatpush1.bf16.msra.mxu0 %v848
    %974 = vmatprep.subr.bf16.mxu0 %v853
    %975 = vmatpush1.bf16.msra.mxu0 %v852
    %976 = vmatprep.subr.bf16.mxu0 %v857
    %977 = vmatpush1.bf16.msra.mxu0 %v856
    %978 = vmatprep.subr.bf16.mxu0 %v861
    %979 = vmatpush1.bf16.msra.mxu0 %v860
    %980 = vmatprep.subr.bf16.mxu0 %v865
    %981 = vmatpush1.bf16.msra.mxu0 %v864
    %982 = vmatprep.subr.bf16.mxu0 %v869
    %983 = vmatpush1.bf16.msra.mxu0 %v868
    %984 = vmatprep.subr.bf16.mxu0 %v873
    %985 = vmatpush1.bf16.msra.mxu0 %v872
    %986 = vmatprep.subr.bf16.mxu0 %v877
    %987 = vmatpush1.bf16.msra.mxu0 %v876
    %988 = vmatprep.subr.bf16.mxu0 %v881
    %989 = vmatpush1.bf16.msra.mxu0 %v880
    %990 = vmatprep.subr.bf16.mxu0 %v885
    %991 = vmatpush1.bf16.msra.mxu0 %v884
    %992 = vmatprep.subr.bf16.mxu0 %v889
    %993 = vmatpush1.bf16.msra.mxu0 %v888
    %994 = vmatprep.subr.bf16.mxu0 %v893
    %995 = vmatpush1.bf16.msra.mxu0 %v892
    %996 = vmatprep.subr.bf16.mxu0 %v897
    %997 = vmatpush1.bf16.msra.mxu0 %v896
    %998 = vmatprep.subr.bf16.mxu0 %v901
    %999 = vmatpush1.bf16.msra.mxu0 %v900
    %1000 = vmatprep.mubr.bf16.mxu0 %v561
    %1001 = vmatmul.mubr.bf16.gmra.mrb[0].mxu0 %v560
    %v1002 = vpop.f32.mrb[0].mxu0
    %v1003 = vadd.f32 %v631, %v1002
    %v1004 = vpop.f32.mrb[0].mxu0
    %v1005 = vadd.f32 %v635, %v1004
    %v1006 = vpop.f32.mrb[0].mxu0
    %v1007 = vadd.f32 %v631, %v1006
    %v1008 = vpop.f32.mrb[0].mxu0
    %v1009 = vadd.f32 %v635, %v1008
    %1010 = vdwg.mxu0
    %1011 = vmatprep.subr.bf16.mxu0 %v843
    %1012 = vmatpush1.bf16.msra.mxu0 %v842
    %1013 = vmatprep.subr.bf16.mxu0 %v847
    %1014 = vmatpush1.bf16.msra.mxu0 %v846
    %1015 = vmatprep.subr.bf16.mxu0 %v851
    %1016 = vmatpush1.bf16.msra.mxu0 %v850
    %1017 = vmatprep.subr.bf16.mxu0 %v855
    %1018 = vmatpush1.bf16.msra.mxu0 %v854
    %1019 = vmatprep.subr.bf16.mxu0 %v859
    %1020 = vmatpush1.bf16.msra.mxu0 %v858
    %1021 = vmatprep.subr.bf16.mxu0 %v863
    %1022 = vmatpush1.bf16.msra.mxu0 %v862
    %1023 = vmatprep.subr.bf16.mxu0 %v867
    %1024 = vmatpush1.bf16.msra.mxu0 %v866
    %1025 = vmatprep.subr.bf16.mxu0 %v871
    %1026 = vmatpush1.bf16.msra.mxu0 %v870
    %1027 = vmatprep.subr.bf16.mxu0 %v875
    %1028 = vmatpush1.bf16.msra.mxu0 %v874
    %1029 = vmatprep.subr.bf16.mxu0 %v879
    %1030 = vmatpush1.bf16.msra.mxu0 %v878
    %1031 = vmatprep.subr.bf16.mxu0 %v883
    %1032 = vmatpush1.bf16.msra.mxu0 %v882
    %1033 = vmatprep.subr.bf16.mxu0 %v887
    %1034 = vmatpush1.bf16.msra.mxu0 %v886
    %1035 = vmatprep.subr.bf16.mxu0 %v891
    %1036 = vmatpush1.bf16.msra.mxu0 %v890
    %1037 = vmatprep.subr.bf16.mxu0 %v895
    %1038 = vmatpush1.bf16.msra.mxu0 %v894
    %1039 = vmatprep.subr.bf16.mxu0 %v899
    %1040 = vmatpush1.bf16.msra.mxu0 %v898
    %1041 = vmatprep.subr.bf16.mxu0 %v903
    %1042 = vmatpush1.bf16.msra.mxu0 %v902
    %1043 = vmatprep.mubr.bf16.mxu0 %v561
    %1044 = vmatmul.mubr.bf16.gmra.mrb[0].mxu0 %v560
    %v1045 = vpop.f32.mrb[0].mxu0
    %v1046 = vadd.f32 %v639, %v1045
    %v1047 = vpop.f32.mrb[0].mxu0
    %v1048 = vadd.f32 %v643, %v1047
    %v1049 = vpop.f32.mrb[0].mxu0
    %v1050 = vadd.f32 %v639, %v1049
    %v1051 = vpop.f32.mrb[0].mxu0
    %v1052 = vadd.f32 %v643, %v1051
    %1053 = vdwg.mxu0
    %v1054 = vadd.f32 %v1003, %v1007
    %v1055 = vrot.slane %v1054, 4
    %v1056 = vadd.f32 %v1054, %v1055
    %v1057 = vrot.slane %v1056, 2
    %v1058 = vadd.f32 %v1056, %v1057
    %v1059 = vrot.slane %v1058, 1
    %v1060 = vadd.f32 %v1058, %v1059
    %v1061 = vadd.f32 %v1005, %v1009
    %v1062 = vrot.slane %v1061, 4
    %v1063 = vadd.f32 %v1061, %v1062
    %v1064 = vrot.slane %v1063, 2
    %v1065 = vadd.f32 %v1063, %v1064
    %v1066 = vrot.slane %v1065, 1
    %v1067 = vadd.f32 %v1065, %v1066
    %v1068 = vadd.f32 %v1046, %v1050
    %v1069 = vrot.slane %v1068, 4
    %v1070 = vadd.f32 %v1068, %v1069
    %v1071 = vrot.slane %v1070, 2
    %v1072 = vadd.f32 %v1070, %v1071
    %v1073 = vrot.slane %v1072, 1
    %v1074 = vadd.f32 %v1072, %v1073
    %v1075 = vadd.f32 %v1048, %v1052
    %v1076 = vrot.slane %v1075, 4
    %v1077 = vadd.f32 %v1075, %v1076
    %v1078 = vrot.slane %v1077, 2
    %v1079 = vadd.f32 %v1077, %v1078
    %v1080 = vrot.slane %v1079, 1
    %v1081 = vadd.f32 %v1079, %v1080
    %v1082 = vmul.f32 %v1060, %v474
    %v1083 = vmul.f32 %v1067, %v474
    %v1084 = vmul.f32 %v1074, %v474
    %v1085 = vmul.f32 %v1081, %v474
    %v1086 = vsub.f32 %v1003, %v1082
    %v1087 = vsub.f32 %v1005, %v1083
    %v1088 = vsub.f32 %v1046, %v1084
    %v1089 = vsub.f32 %v1048, %v1085
    %v1090 = vsub.f32 %v1007, %v1082
    %v1091 = vsub.f32 %v1009, %v1083
    %v1092 = vsub.f32 %v1050, %v1084
    %v1093 = vsub.f32 %v1052, %v1085
    %v1094 = vmul.f32 %v1086, %v1086
    %v1095 = vmul.f32 %v1087, %v1087
    %v1096 = vmul.f32 %v1088, %v1088
    %v1097 = vmul.f32 %v1089, %v1089
    %v1098 = vmul.f32 %v1090, %v1090
    %v1099 = vmul.f32 %v1091, %v1091
    %v1100 = vmul.f32 %v1092, %v1092
    %v1101 = vmul.f32 %v1093, %v1093
    %v1102 = vadd.f32 %v1094, %v1098
    %v1103 = vrot.slane %v1102, 4
    %v1104 = vadd.f32 %v1102, %v1103
    %v1105 = vrot.slane %v1104, 2
    %v1106 = vadd.f32 %v1104, %v1105
    %v1107 = vrot.slane %v1106, 1
    %v1108 = vadd.f32 %v1106, %v1107
    %v1109 = vadd.f32 %v1095, %v1099
    %v1110 = vrot.slane %v1109, 4
    %v1111 = vadd.f32 %v1109, %v1110
    %v1112 = vrot.slane %v1111, 2
    %v1113 = vadd.f32 %v1111, %v1112
    %v1114 = vrot.slane %v1113, 1
    %v1115 = vadd.f32 %v1113, %v1114
    %v1116 = vadd.f32 %v1096, %v1100
    %v1117 = vrot.slane %v1116, 4
    %v1118 = vadd.f32 %v1116, %v1117
    %v1119 = vrot.slane %v1118, 2
    %v1120 = vadd.f32 %v1118, %v1119
    %v1121 = vrot.slane %v1120, 1
    %v1122 = vadd.f32 %v1120, %v1121
    %v1123 = vadd.f32 %v1097, %v1101
    %v1124 = vrot.slane %v1123, 4
    %v1125 = vadd.f32 %v1123, %v1124
    %v1126 = vrot.slane %v1125, 2
    %v1127 = vadd.f32 %v1125, %v1126
    %v1128 = vrot.slane %v1127, 1
    %v1129 = vadd.f32 %v1127, %v1128
    %v1130 = vmul.f32 %v1108, %v474
    %v1131 = vmul.f32 %v1115, %v474
    %v1132 = vmul.f32 %v1122, %v474
    %v1133 = vmul.f32 %v1129, %v474
    %v1134 = vld [vmem:[%s8] sm:$0xf]
    %v1135 = vadd.f32 %v1130, 1e-05
    %v1136 = vadd.f32 %v1131, 1e-05
    %v1137 = vadd.f32 %v1132, 1e-05
    %v1138 = vadd.f32 %v1133, 1e-05
    %v1139 = vrsqrt.pop %v1135
    %v1140 = vrsqrt.pop %v1136
    %v1141 = vrsqrt.pop %v1137
    %v1142 = vrsqrt.pop %v1138
    %v1147 = vcombine.low %v1139, %v1140
    %v1148 = vcombine.low %v1141, %v1142
    %v1150 = vunpack.c.l.s4 1966171168
    %v1151 = vunpack.c.0.s8 %v1150
    %v1152 = vlaneseq
    %v1153 = vshrl.u32 %v1152, 7
    %v1154 = vsub.s32 %v1151, %v1153
    %v1155 = vrot.slane %v1147, %v1154
    %v1157 = vunpack.c.l.s4 1966171168
    %v1158 = vunpack.c.0.s8 %v1157
    %v1159 = vlaneseq
    %v1160 = vshrl.u32 %v1159, 7
    %v1161 = vsub.s32 %v1158, %v1160
    %v1162 = vrot.slane %v1148, %v1161
    %v1163 = vcombine.low %v1155, %v1162
    %v1165 = vunpack.c.l.s4 1966171168
    %v1166 = vunpack.c.0.s8 %v1165
    %v1167 = vlaneseq
    %v1168 = vshrl.u32 %v1167, 7
    %v1169 = vsub.s32 %v1166, %v1168
    %v1170 = vrot.slane %v1163, %v1169
    %v1172 = vmul.f32 %v1134, %v1170
    %v1174 = vlaneseq
    %v1175 = vshrl.u32 %v1174, 7
    %v1176 = vsub.s32 0, %v1175
    %v1177 = vrot.slane %v1172, %v1176
    %v1178 = vlaneseq
    %v1179 = vshrl.u32 %v1178, 7
    %v1180 = vsub.s32 1, %v1179
    %v1181 = vrot.slane %v1172, %v1180
    %v1182 = vlaneseq
    %v1183 = vshrl.u32 %v1182, 7
    %v1184 = vsub.s32 2, %v1183
    %v1185 = vrot.slane %v1172, %v1184
    %v1186 = vlaneseq
    %v1187 = vshrl.u32 %v1186, 7
    %v1188 = vsub.s32 3, %v1187
    %v1189 = vrot.slane %v1172, %v1188
    %v1194 = vmul.f32 %v1086, %v1177
    %v1195 = vmul.f32 %v1087, %v1181
    %v1196 = vmul.f32 %v1088, %v1185
    %v1197 = vmul.f32 %v1089, %v1189
    %v1198 = vmul.f32 %v1090, %v1177
    %v1199 = vmul.f32 %v1091, %v1181
    %v1200 = vmul.f32 %v1092, %v1185
    %v1201 = vmul.f32 %v1093, %v1189
    %v1202 = vld [vmem:[#allocation10] sm:$0xf]
    %v1204 = vlaneseq
    %v1205 = vshrl.u32 %v1204, 7
    %v1206 = vsub.s32 0, %v1205
    %v1207 = vrot.slane %v1202, %v1206
    %v1208 = vlaneseq
    %v1209 = vshrl.u32 %v1208, 7
    %v1210 = vsub.s32 1, %v1209
    %v1211 = vrot.slane %v1202, %v1210
    %v1212 = vlaneseq
    %v1213 = vshrl.u32 %v1212, 7
    %v1214 = vsub.s32 2, %v1213
    %v1215 = vrot.slane %v1202, %v1214
    %v1216 = vlaneseq
    %v1217 = vshrl.u32 %v1216, 7
    %v1218 = vsub.s32 3, %v1217
    %v1219 = vrot.slane %v1202, %v1218
    %v1224 = vadd.f32 %v1194, %v1207
    %v1225 = vadd.f32 %v1195, %v1211
    %v1226 = vadd.f32 %v1196, %v1215
    %v1227 = vadd.f32 %v1197, %v1219
    %v1228 = vadd.f32 %v1198, %v1207
    %v1229 = vadd.f32 %v1199, %v1211
    %v1230 = vadd.f32 %v1200, %v1215
    %v1231 = vadd.f32 %v1201, %v1219
    %v1232 = vmax.f32 %v1224, 0.0
    %v1233 = vmax.f32 %v1225, 0.0
    %v1234 = vmax.f32 %v1226, 0.0
    %v1235 = vmax.f32 %v1227, 0.0
    %v1236 = vmax.f32 %v1228, 0.0
    %v1237 = vmax.f32 %v1229, 0.0
    %v1238 = vmax.f32 %v1230, 0.0
    %v1239 = vmax.f32 %v1231, 0.0
    %v1240 = vpack.c.bf16 %v1236, %v1232
    %v1241 = vpack.c.bf16 %v1237, %v1233
    %v1242 = vpack.c.bf16 %v1238, %v1234
    %v1243 = vpack.c.bf16 %v1239, %v1235
    %v1244 = vld [vmem:[#allocation11] sm:$0xff]
    %v1245 = vld [vmem:[#allocation11 + $0x8] sm:$0xff]
    %v1246 = vld [vmem:[#allocation11 + $0x10] sm:$0xff]
    %v1247 = vld [vmem:[#allocation11 + $0x18] sm:$0xff]
    %v1248 = vld [vmem:[#allocation11 + $0x20] sm:$0xff]
    %v1249 = vld [vmem:[#allocation11 + $0x28] sm:$0xff]
    %v1250 = vld [vmem:[#allocation11 + $0x30] sm:$0xff]
    %v1251 = vld [vmem:[#allocation11 + $0x38] sm:$0xff]
    %v1252 = vld [vmem:[#allocation11 + $0x40] sm:$0xff]
    %v1253 = vld [vmem:[#allocation11 + $0x48] sm:$0xff]
    %v1254 = vld [vmem:[#allocation11 + $0x50] sm:$0xff]
    %v1255 = vld [vmem:[#allocation11 + $0x58] sm:$0xff]
    %v1256 = vld [vmem:[#allocation11 + $0x60] sm:$0xff]
    %v1257 = vld [vmem:[#allocation11 + $0x68] sm:$0xff]
    %v1258 = vld [vmem:[#allocation11 + $0x70] sm:$0xff]
    %v1259 = vld [vmem:[#allocation11 + $0x78] sm:$0xff]
    %v1260 = vld [vmem:[#allocation11 + $0x80] sm:$0xff]
    %v1261 = vld [vmem:[#allocation11 + $0x88] sm:$0xff]
    %v1262 = vld [vmem:[#allocation11 + $0x90] sm:$0xff]
    %v1263 = vld [vmem:[#allocation11 + $0x98] sm:$0xff]
    %v1264 = vld [vmem:[#allocation11 + $0xa0] sm:$0xff]
    %v1265 = vld [vmem:[#allocation11 + $0xa8] sm:$0xff]
    %v1266 = vld [vmem:[#allocation11 + $0xb0] sm:$0xff]
    %v1267 = vld [vmem:[#allocation11 + $0xb8] sm:$0xff]
    %v1268 = vld [vmem:[#allocation11 + $0xc0] sm:$0xff]
    %v1269 = vld [vmem:[#allocation11 + $0xc8] sm:$0xff]
    %v1270 = vld [vmem:[#allocation11 + $0xd0] sm:$0xff]
    %v1271 = vld [vmem:[#allocation11 + $0xd8] sm:$0xff]
    %v1272 = vld [vmem:[#allocation11 + $0xe0] sm:$0xff]
    %v1273 = vld [vmem:[#allocation11 + $0xe8] sm:$0xff]
    %v1274 = vld [vmem:[#allocation11 + $0xf0] sm:$0xff]
    %v1275 = vld [vmem:[#allocation11 + $0xf8] sm:$0xff]
    %v1276 = vld [vmem:[#allocation11 + $0x100] sm:$0xff]
    %v1277 = vld [vmem:[#allocation11 + $0x108] sm:$0xff]
    %v1278 = vld [vmem:[#allocation11 + $0x110] sm:$0xff]
    %v1279 = vld [vmem:[#allocation11 + $0x118] sm:$0xff]
    %v1280 = vld [vmem:[#allocation11 + $0x120] sm:$0xff]
    %v1281 = vld [vmem:[#allocation11 + $0x128] sm:$0xff]
    %v1282 = vld [vmem:[#allocation11 + $0x130] sm:$0xff]
    %v1283 = vld [vmem:[#allocation11 + $0x138] sm:$0xff]
    %v1284 = vld [vmem:[#allocation11 + $0x140] sm:$0xff]
    %v1285 = vld [vmem:[#allocation11 + $0x148] sm:$0xff]
    %v1286 = vld [vmem:[#allocation11 + $0x150] sm:$0xff]
    %v1287 = vld [vmem:[#allocation11 + $0x158] sm:$0xff]
    %v1288 = vld [vmem:[#allocation11 + $0x160] sm:$0xff]
    %v1289 = vld [vmem:[#allocation11 + $0x168] sm:$0xff]
    %v1290 = vld [vmem:[#allocation11 + $0x170] sm:$0xff]
    %v1291 = vld [vmem:[#allocation11 + $0x178] sm:$0xff]
    %v1292 = vld [vmem:[#allocation11 + $0x180] sm:$0xff]
    %v1293 = vld [vmem:[#allocation11 + $0x188] sm:$0xff]
    %v1294 = vld [vmem:[#allocation11 + $0x190] sm:$0xff]
    %v1295 = vld [vmem:[#allocation11 + $0x198] sm:$0xff]
    %v1296 = vld [vmem:[#allocation11 + $0x1a0] sm:$0xff]
    %v1297 = vld [vmem:[#allocation11 + $0x1a8] sm:$0xff]
    %v1298 = vld [vmem:[#allocation11 + $0x1b0] sm:$0xff]
    %v1299 = vld [vmem:[#allocation11 + $0x1b8] sm:$0xff]
    %v1300 = vld [vmem:[#allocation11 + $0x1c0] sm:$0xff]
    %v1301 = vld [vmem:[#allocation11 + $0x1c8] sm:$0xff]
    %v1302 = vld [vmem:[#allocation11 + $0x1d0] sm:$0xff]
    %v1303 = vld [vmem:[#allocation11 + $0x1d8] sm:$0xff]
    %v1304 = vld [vmem:[#allocation11 + $0x1e0] sm:$0xff]
    %v1305 = vld [vmem:[#allocation11 + $0x1e8] sm:$0xff]
    %v1306 = vld [vmem:[#allocation11 + $0x1f0] sm:$0xff]
    %v1307 = vld [vmem:[#allocation11 + $0x1f8] sm:$0xff]
    %v1308 = vld [vmem:[#allocation13] sm:$0x3]
    %v1310 = vlaneseq
    %v1311 = vshrl.u32 %v1310, 7
    %v1312 = vsub.s32 0, %v1311
    %v1313 = vrot.slane %v1308, %v1312
    %v1314 = vlaneseq
    %v1315 = vshrl.u32 %v1314, 7
    %v1316 = vsub.s32 1, %v1315
    %v1317 = vrot.slane %v1308, %v1316
    %v1384 = vunpack.c.l.b16 %v1244
    %v1385 = vunpack.c.h.b16 %v1244
    %v1386 = vunpack.c.l.b16 %v1245
    %v1387 = vunpack.c.h.b16 %v1245
    %v1388 = vunpack.c.l.b16 %v1246
    %v1389 = vunpack.c.h.b16 %v1246
    %v1390 = vunpack.c.l.b16 %v1247
    %v1391 = vunpack.c.h.b16 %v1247
    %v1392 = vunpack.c.l.b16 %v1248
    %v1393 = vunpack.c.h.b16 %v1248
    %v1394 = vunpack.c.l.b16 %v1249
    %v1395 = vunpack.c.h.b16 %v1249
    %v1396 = vunpack.c.l.b16 %v1250
    %v1397 = vunpack.c.h.b16 %v1250
    %v1398 = vunpack.c.l.b16 %v1251
    %v1399 = vunpack.c.h.b16 %v1251
    %v1400 = vunpack.c.l.b16 %v1252
    %v1401 = vunpack.c.h.b16 %v1252
    %v1402 = vunpack.c.l.b16 %v1253
    %v1403 = vunpack.c.h.b16 %v1253
    %v1404 = vunpack.c.l.b16 %v1254
    %v1405 = vunpack.c.h.b16 %v1254
    %v1406 = vunpack.c.l.b16 %v1255
    %v1407 = vunpack.c.h.b16 %v1255
    %v1408 = vunpack.c.l.b16 %v1256
    %v1409 = vunpack.c.h.b16 %v1256
    %v1410 = vunpack.c.l.b16 %v1257
    %v1411 = vunpack.c.h.b16 %v1257
    %v1412 = vunpack.c.l.b16 %v1258
    %v1413 = vunpack.c.h.b16 %v1258
    %v1414 = vunpack.c.l.b16 %v1259
    %v1415 = vunpack.c.h.b16 %v1259
    %v1416 = vunpack.c.l.b16 %v1260
    %v1417 = vunpack.c.h.b16 %v1260
    %v1418 = vunpack.c.l.b16 %v1261
    %v1419 = vunpack.c.h.b16 %v1261
    %v1420 = vunpack.c.l.b16 %v1262
    %v1421 = vunpack.c.h.b16 %v1262
    %v1422 = vunpack.c.l.b16 %v1263
    %v1423 = vunpack.c.h.b16 %v1263
    %v1424 = vunpack.c.l.b16 %v1264
    %v1425 = vunpack.c.h.b16 %v1264
    %v1426 = vunpack.c.l.b16 %v1265
    %v1427 = vunpack.c.h.b16 %v1265
    %v1428 = vunpack.c.l.b16 %v1266
    %v1429 = vunpack.c.h.b16 %v1266
    %v1430 = vunpack.c.l.b16 %v1267
    %v1431 = vunpack.c.h.b16 %v1267
    %v1432 = vunpack.c.l.b16 %v1268
    %v1433 = vunpack.c.h.b16 %v1268
    %v1434 = vunpack.c.l.b16 %v1269
    %v1435 = vunpack.c.h.b16 %v1269
    %v1436 = vunpack.c.l.b16 %v1270
    %v1437 = vunpack.c.h.b16 %v1270
    %v1438 = vunpack.c.l.b16 %v1271
    %v1439 = vunpack.c.h.b16 %v1271
    %v1440 = vunpack.c.l.b16 %v1272
    %v1441 = vunpack.c.h.b16 %v1272
    %v1442 = vunpack.c.l.b16 %v1273
    %v1443 = vunpack.c.h.b16 %v1273
    %v1444 = vunpack.c.l.b16 %v1274
    %v1445 = vunpack.c.h.b16 %v1274
    %v1446 = vunpack.c.l.b16 %v1275
    %v1447 = vunpack.c.h.b16 %v1275
    %v1448 = vunpack.c.l.b16 %v1276
    %v1449 = vunpack.c.h.b16 %v1276
    %v1450 = vunpack.c.l.b16 %v1277
    %v1451 = vunpack.c.h.b16 %v1277
    %v1452 = vunpack.c.l.b16 %v1278
    %v1453 = vunpack.c.h.b16 %v1278
    %v1454 = vunpack.c.l.b16 %v1279
    %v1455 = vunpack.c.h.b16 %v1279
    %v1456 = vunpack.c.l.b16 %v1280
    %v1457 = vunpack.c.h.b16 %v1280
    %v1458 = vunpack.c.l.b16 %v1281
    %v1459 = vunpack.c.h.b16 %v1281
    %v1460 = vunpack.c.l.b16 %v1282
    %v1461 = vunpack.c.h.b16 %v1282
    %v1462 = vunpack.c.l.b16 %v1283
    %v1463 = vunpack.c.h.b16 %v1283
    %v1464 = vunpack.c.l.b16 %v1284
    %v1465 = vunpack.c.h.b16 %v1284
    %v1466 = vunpack.c.l.b16 %v1285
    %v1467 = vunpack.c.h.b16 %v1285
    %v1468 = vunpack.c.l.b16 %v1286
    %v1469 = vunpack.c.h.b16 %v1286
    %v1470 = vunpack.c.l.b16 %v1287
    %v1471 = vunpack.c.h.b16 %v1287
    %v1472 = vunpack.c.l.b16 %v1288
    %v1473 = vunpack.c.h.b16 %v1288
    %v1474 = vunpack.c.l.b16 %v1289
    %v1475 = vunpack.c.h.b16 %v1289
    %v1476 = vunpack.c.l.b16 %v1290
    %v1477 = vunpack.c.h.b16 %v1290
    %v1478 = vunpack.c.l.b16 %v1291
    %v1479 = vunpack.c.h.b16 %v1291
    %v1480 = vunpack.c.l.b16 %v1292
    %v1481 = vunpack.c.h.b16 %v1292
    %v1482 = vunpack.c.l.b16 %v1293
    %v1483 = vunpack.c.h.b16 %v1293
    %v1484 = vunpack.c.l.b16 %v1294
    %v1485 = vunpack.c.h.b16 %v1294
    %v1486 = vunpack.c.l.b16 %v1295
    %v1487 = vunpack.c.h.b16 %v1295
    %v1488 = vunpack.c.l.b16 %v1296
    %v1489 = vunpack.c.h.b16 %v1296
    %v1490 = vunpack.c.l.b16 %v1297
    %v1491 = vunpack.c.h.b16 %v1297
    %v1492 = vunpack.c.l.b16 %v1298
    %v1493 = vunpack.c.h.b16 %v1298
    %v1494 = vunpack.c.l.b16 %v1299
    %v1495 = vunpack.c.h.b16 %v1299
    %v1496 = vunpack.c.l.b16 %v1300
    %v1497 = vunpack.c.h.b16 %v1300
    %v1498 = vunpack.c.l.b16 %v1301
    %v1499 = vunpack.c.h.b16 %v1301
    %v1500 = vunpack.c.l.b16 %v1302
    %v1501 = vunpack.c.h.b16 %v1302
    %v1502 = vunpack.c.l.b16 %v1303
    %v1503 = vunpack.c.h.b16 %v1303
    %v1504 = vunpack.c.l.b16 %v1304
    %v1505 = vunpack.c.h.b16 %v1304
    %v1506 = vunpack.c.l.b16 %v1305
    %v1507 = vunpack.c.h.b16 %v1305
    %v1508 = vunpack.c.l.b16 %v1306
    %v1509 = vunpack.c.h.b16 %v1306
    %v1510 = vunpack.c.l.b16 %v1307
    %v1511 = vunpack.c.h.b16 %v1307
    %v1512 = vpack.c.b16 %v1386, %v1384
    %v1513 = vpack.c.b16 %v1387, %v1385
    %v1514 = vpack.c.b16 %v1390, %v1388
    %v1515 = vpack.c.b16 %v1391, %v1389
    %v1516 = vpack.c.b16 %v1394, %v1392
    %v1517 = vpack.c.b16 %v1395, %v1393
    %v1518 = vpack.c.b16 %v1398, %v1396
    %v1519 = vpack.c.b16 %v1399, %v1397
    %v1520 = vpack.c.b16 %v1402, %v1400
    %v1521 = vpack.c.b16 %v1403, %v1401
    %v1522 = vpack.c.b16 %v1406, %v1404
    %v1523 = vpack.c.b16 %v1407, %v1405
    %v1524 = vpack.c.b16 %v1410, %v1408
    %v1525 = vpack.c.b16 %v1411, %v1409
    %v1526 = vpack.c.b16 %v1414, %v1412
    %v1527 = vpack.c.b16 %v1415, %v1413
    %v1528 = vpack.c.b16 %v1418, %v1416
    %v1529 = vpack.c.b16 %v1419, %v1417
    %v1530 = vpack.c.b16 %v1422, %v1420
    %v1531 = vpack.c.b16 %v1423, %v1421
    %v1532 = vpack.c.b16 %v1426, %v1424
    %v1533 = vpack.c.b16 %v1427, %v1425
    %v1534 = vpack.c.b16 %v1430, %v1428
    %v1535 = vpack.c.b16 %v1431, %v1429
    %v1536 = vpack.c.b16 %v1434, %v1432
    %v1537 = vpack.c.b16 %v1435, %v1433
    %v1538 = vpack.c.b16 %v1438, %v1436
    %v1539 = vpack.c.b16 %v1439, %v1437
    %v1540 = vpack.c.b16 %v1442, %v1440
    %v1541 = vpack.c.b16 %v1443, %v1441
    %v1542 = vpack.c.b16 %v1446, %v1444
    %v1543 = vpack.c.b16 %v1447, %v1445
    %v1544 = vpack.c.b16 %v1450, %v1448
    %v1545 = vpack.c.b16 %v1451, %v1449
    %v1546 = vpack.c.b16 %v1454, %v1452
    %v1547 = vpack.c.b16 %v1455, %v1453
    %v1548 = vpack.c.b16 %v1458, %v1456
    %v1549 = vpack.c.b16 %v1459, %v1457
    %v1550 = vpack.c.b16 %v1462, %v1460
    %v1551 = vpack.c.b16 %v1463, %v1461
    %v1552 = vpack.c.b16 %v1466, %v1464
    %v1553 = vpack.c.b16 %v1467, %v1465
    %v1554 = vpack.c.b16 %v1470, %v1468
    %v1555 = vpack.c.b16 %v1471, %v1469
    %v1556 = vpack.c.b16 %v1474, %v1472
    %v1557 = vpack.c.b16 %v1475, %v1473
    %v1558 = vpack.c.b16 %v1478, %v1476
    %v1559 = vpack.c.b16 %v1479, %v1477
    %v1560 = vpack.c.b16 %v1482, %v1480
    %v1561 = vpack.c.b16 %v1483, %v1481
    %v1562 = vpack.c.b16 %v1486, %v1484
    %v1563 = vpack.c.b16 %v1487, %v1485
    %v1564 = vpack.c.b16 %v1490, %v1488
    %v1565 = vpack.c.b16 %v1491, %v1489
    %v1566 = vpack.c.b16 %v1494, %v1492
    %v1567 = vpack.c.b16 %v1495, %v1493
    %v1568 = vpack.c.b16 %v1498, %v1496
    %v1569 = vpack.c.b16 %v1499, %v1497
    %v1570 = vpack.c.b16 %v1502, %v1500
    %v1571 = vpack.c.b16 %v1503, %v1501
    %v1572 = vpack.c.b16 %v1506, %v1504
    %v1573 = vpack.c.b16 %v1507, %v1505
    %v1574 = vpack.c.b16 %v1510, %v1508
    %v1575 = vpack.c.b16 %v1511, %v1509
    %1640 = vmatprep.subr.bf16.mxu0 %v1513
    %1641 = vmatpush1.bf16.msra.mxu0 %v1512
    %1642 = vmatprep.subr.bf16.mxu0 %v1515
    %1643 = vmatpush1.bf16.msra.mxu0 %v1514
    %1644 = vmatprep.subr.bf16.mxu0 %v1517
    %1645 = vmatpush1.bf16.msra.mxu0 %v1516
    %1646 = vmatprep.subr.bf16.mxu0 %v1519
    %1647 = vmatpush1.bf16.msra.mxu0 %v1518
    %1648 = vmatprep.subr.bf16.mxu0 %v1521
    %1649 = vmatpush1.bf16.msra.mxu0 %v1520
    %1650 = vmatprep.subr.bf16.mxu0 %v1523
    %1651 = vmatpush1.bf16.msra.mxu0 %v1522
    %1652 = vmatprep.subr.bf16.mxu0 %v1525
    %1653 = vmatpush1.bf16.msra.mxu0 %v1524
    %1654 = vmatprep.subr.bf16.mxu0 %v1527
    %1655 = vmatpush1.bf16.msra.mxu0 %v1526
    %1656 = vmatprep.subr.bf16.mxu0 %v1529
    %1657 = vmatpush1.bf16.msra.mxu0 %v1528
    %1658 = vmatprep.subr.bf16.mxu0 %v1531
    %1659 = vmatpush1.bf16.msra.mxu0 %v1530
    %1660 = vmatprep.subr.bf16.mxu0 %v1533
    %1661 = vmatpush1.bf16.msra.mxu0 %v1532
    %1662 = vmatprep.subr.bf16.mxu0 %v1535
    %1663 = vmatpush1.bf16.msra.mxu0 %v1534
    %1664 = vmatprep.subr.bf16.mxu0 %v1537
    %1665 = vmatpush1.bf16.msra.mxu0 %v1536
    %1666 = vmatprep.subr.bf16.mxu0 %v1539
    %1667 = vmatpush1.bf16.msra.mxu0 %v1538
    %1668 = vmatprep.subr.bf16.mxu0 %v1541
    %1669 = vmatpush1.bf16.msra.mxu0 %v1540
    %1670 = vmatprep.subr.bf16.mxu0 %v1543
    %1671 = vmatpush1.bf16.msra.mxu0 %v1542
    %1672 = vmatprep.mubr.bf16.mxu0 %v1241
    %1673 = vmatmul.mubr.bf16.gmra.mrb[0].mxu0 %v1240
    %v1674 = vpop.f32.mrb[0].mxu0
    %v1675 = vadd.f32 %v1313, %v1674
    %v1676 = vpop.f32.mrb[0].mxu0
    %v1677 = vadd.f32 %v1317, %v1676
    %v1678 = vpop.f32.mrb[0].mxu0
    %v1679 = vadd.f32 %v1313, %v1678
    %v1680 = vpop.f32.mrb[0].mxu0
    %v1681 = vadd.f32 %v1317, %v1680
    %1682 = vdwg.mxu0
    %1683 = vmatprep.subr.bf16.mxu0 %v1545
    %1684 = vmatpush1.bf16.msra.mxu0 %v1544
    %1685 = vmatprep.subr.bf16.mxu0 %v1547
    %1686 = vmatpush1.bf16.msra.mxu0 %v1546
    %1687 = vmatprep.subr.bf16.mxu0 %v1549
    %1688 = vmatpush1.bf16.msra.mxu0 %v1548
    %1689 = vmatprep.subr.bf16.mxu0 %v1551
    %1690 = vmatpush1.bf16.msra.mxu0 %v1550
    %1691 = vmatprep.subr.bf16.mxu0 %v1553
    %1692 = vmatpush1.bf16.msra.mxu0 %v1552
    %1693 = vmatprep.subr.bf16.mxu0 %v1555
    %1694 = vmatpush1.bf16.msra.mxu0 %v1554
    %1695 = vmatprep.subr.bf16.mxu0 %v1557
    %1696 = vmatpush1.bf16.msra.mxu0 %v1556
    %1697 = vmatprep.subr.bf16.mxu0 %v1559
    %1698 = vmatpush1.bf16.msra.mxu0 %v1558
    %1699 = vmatprep.subr.bf16.mxu0 %v1561
    %1700 = vmatpush1.bf16.msra.mxu0 %v1560
    %1701 = vmatprep.subr.bf16.mxu0 %v1563
    %1702 = vmatpush1.bf16.msra.mxu0 %v1562
    %1703 = vmatprep.subr.bf16.mxu0 %v1565
    %1704 = vmatpush1.bf16.msra.mxu0 %v1564
    %1705 = vmatprep.subr.bf16.mxu0 %v1567
    %1706 = vmatpush1.bf16.msra.mxu0 %v1566
    %1707 = vmatprep.subr.bf16.mxu0 %v1569
    %1708 = vmatpush1.bf16.msra.mxu0 %v1568
    %1709 = vmatprep.subr.bf16.mxu0 %v1571
    %1710 = vmatpush1.bf16.msra.mxu0 %v1570
    %1711 = vmatprep.subr.bf16.mxu0 %v1573
    %1712 = vmatpush1.bf16.msra.mxu0 %v1572
    %1713 = vmatprep.subr.bf16.mxu0 %v1575
    %1714 = vmatpush1.bf16.msra.mxu0 %v1574
    %1715 = vmatprep.mubr.bf16.mxu0 %v1243
    %1716 = vmatmul.mubr.bf16.gmra.mrb[0].mxu0 %v1242
    %v1717 = vpop.f32.mrb[0].mxu0
    %v1718 = vadd.f32 %v1675, %v1717
    %v1719 = vpop.f32.mrb[0].mxu0
    %v1720 = vadd.f32 %v1677, %v1719
    %v1721 = vpop.f32.mrb[0].mxu0
    %v1722 = vadd.f32 %v1679, %v1721
    %v1723 = vpop.f32.mrb[0].mxu0
    %v1724 = vadd.f32 %v1681, %v1723
    %1725 = vdwg.mxu0
    %v1726 = vadd.f32 %v1718, %v1722
    %v1727 = vrot.slane %v1726, 4
    %v1728 = vadd.f32 %v1726, %v1727
    %v1729 = vrot.slane %v1728, 2
    %v1730 = vadd.f32 %v1728, %v1729
    %v1731 = vrot.slane %v1730, 1
    %v1732 = vadd.f32 %v1730, %v1731
    %v1733 = vadd.f32 %v1720, %v1724
    %v1734 = vrot.slane %v1733, 4
    %v1735 = vadd.f32 %v1733, %v1734
    %v1736 = vrot.slane %v1735, 2
    %v1737 = vadd.f32 %v1735, %v1736
    %v1738 = vrot.slane %v1737, 1
    %v1739 = vadd.f32 %v1737, %v1738
    %v1740 = vmul.f32 %v1732, %v474
    %v1741 = vmul.f32 %v1739, %v474
    %v1742 = vsub.f32 %v1718, %v1740
    %v1743 = vsub.f32 %v1720, %v1741
    %v1744 = vsub.f32 %v1722, %v1740
    %v1745 = vsub.f32 %v1724, %v1741
    %v1746 = vmul.f32 %v1742, %v1742
    %v1747 = vmul.f32 %v1743, %v1743
    %v1748 = vmul.f32 %v1744, %v1744
    %v1749 = vmul.f32 %v1745, %v1745
    %v1750 = vadd.f32 %v1746, %v1748
    %v1751 = vrot.slane %v1750, 4
    %v1752 = vadd.f32 %v1750, %v1751
    %v1753 = vrot.slane %v1752, 2
    %v1754 = vadd.f32 %v1752, %v1753
    %v1755 = vrot.slane %v1754, 1
    %v1756 = vadd.f32 %v1754, %v1755
    %v1757 = vadd.f32 %v1747, %v1749
    %v1758 = vrot.slane %v1757, 4
    %v1759 = vadd.f32 %v1757, %v1758
    %v1760 = vrot.slane %v1759, 2
    %v1761 = vadd.f32 %v1759, %v1760
    %v1762 = vrot.slane %v1761, 1
    %v1763 = vadd.f32 %v1761, %v1762
    %v1764 = vmul.f32 %v1756, %v474
    %v1765 = vmul.f32 %v1763, %v474
    %v1766 = vld [vmem:[#allocation14] sm:$0x3]
    %v1767 = vadd.f32 %v1764, 1e-05
    %v1768 = vadd.f32 %v1765, 1e-05
    %v1769 = vrsqrt.pop %v1767
    %v1770 = vrsqrt.pop %v1768
    %v1773 = vcombine.low %v1769, %v1770
    %v1775 = vunpack.c.l.s4 1966171168
    %v1776 = vunpack.c.0.s8 %v1775
    %v1777 = vlaneseq
    %v1778 = vshrl.u32 %v1777, 7
    %v1779 = vsub.s32 %v1776, %v1778
    %v1780 = vrot.slane %v1773, %v1779
    %v1782 = vunpack.c.l.s4 1966171168
    %v1783 = vunpack.c.0.s8 %v1782
    %v1784 = vlaneseq
    %v1785 = vshrl.u32 %v1784, 7
    %v1786 = vsub.s32 %v1783, %v1785
    %v1787 = vrot.slane %v1780, %v1786
    %v1789 = vmul.f32 %v1766, %v1787
    %v1791 = vlaneseq
    %v1792 = vshrl.u32 %v1791, 7
    %v1793 = vsub.s32 0, %v1792
    %v1794 = vrot.slane %v1789, %v1793
    %v1795 = vlaneseq
    %v1796 = vshrl.u32 %v1795, 7
    %v1797 = vsub.s32 1, %v1796
    %v1798 = vrot.slane %v1789, %v1797
    %v1801 = vmul.f32 %v1742, %v1794
    %v1802 = vmul.f32 %v1743, %v1798
    %v1803 = vmul.f32 %v1744, %v1794
    %v1804 = vmul.f32 %v1745, %v1798
    %v1805 = vld [vmem:[#allocation16] sm:$0x3]
    %v1807 = vlaneseq
    %v1808 = vshrl.u32 %v1807, 7
    %v1809 = vsub.s32 0, %v1808
    %v1810 = vrot.slane %v1805, %v1809
    %v1811 = vlaneseq
    %v1812 = vshrl.u32 %v1811, 7
    %v1813 = vsub.s32 1, %v1812
    %v1814 = vrot.slane %v1805, %v1813
    %v1817 = vadd.f32 %v1801, %v1810
    %v1818 = vadd.f32 %v1802, %v1814
    %v1819 = vadd.f32 %v1803, %v1810
    %v1820 = vadd.f32 %v1804, %v1814
    %v1821 = vmax.f32 %v1817, 0.0
    %v1822 = vmax.f32 %v1818, 0.0
    %v1823 = vmax.f32 %v1819, 0.0
    %v1824 = vmax.f32 %v1820, 0.0
    %v1825 = vpack.c.bf16 %v1823, %v1821
    %v1826 = vpack.c.bf16 %v1824, %v1822
    %v1827 = vld [vmem:[%s14] sm:$0xf]
    %v1828 = vld [vmem:[%s14 + $0x4] sm:$0xf]
    %v1829 = vld [vmem:[%s14 + $0x8] sm:$0xf]
    %v1830 = vld [vmem:[%s14 + $0xc] sm:$0xf]
    %v1831 = vld [vmem:[%s14 + $0x10] sm:$0xf]
    %v1832 = vld [vmem:[%s14 + $0x14] sm:$0xf]
    %v1833 = vld [vmem:[%s14 + $0x18] sm:$0xf]
    %v1834 = vld [vmem:[%s14 + $0x1c] sm:$0xf]
    %v1835 = vld [vmem:[%s14 + $0x20] sm:$0xf]
    %v1836 = vld [vmem:[%s14 + $0x24] sm:$0xf]
    %v1837 = vld [vmem:[%s14 + $0x28] sm:$0xf]
    %v1838 = vld [vmem:[%s14 + $0x2c] sm:$0xf]
    %v1839 = vld [vmem:[%s14 + $0x30] sm:$0xf]
    %v1840 = vld [vmem:[%s14 + $0x34] sm:$0xf]
    %v1841 = vld [vmem:[%s14 + $0x38] sm:$0xf]
    %v1842 = vld [vmem:[%s14 + $0x3c] sm:$0xf]
    %v1843 = vld [vmem:[%s14 + $0x40] sm:$0xf]
    %v1844 = vld [vmem:[%s14 + $0x44] sm:$0xf]
    %v1845 = vld [vmem:[%s14 + $0x48] sm:$0xf]
    %v1846 = vld [vmem:[%s14 + $0x4c] sm:$0xf]
    %v1847 = vld [vmem:[%s14 + $0x50] sm:$0xf]
    %v1848 = vld [vmem:[%s14 + $0x54] sm:$0xf]
    %v1849 = vld [vmem:[%s14 + $0x58] sm:$0xf]
    %v1850 = vld [vmem:[%s14 + $0x5c] sm:$0xf]
    %v1851 = vld [vmem:[%s14 + $0x60] sm:$0xf]
    %v1852 = vld [vmem:[%s14 + $0x64] sm:$0xf]
    %v1853 = vld [vmem:[%s14 + $0x68] sm:$0xf]
    %v1854 = vld [vmem:[%s14 + $0x6c] sm:$0xf]
    %v1855 = vld [vmem:[%s14 + $0x70] sm:$0xf]
    %v1856 = vld [vmem:[%s14 + $0x74] sm:$0xf]
    %v1857 = vld [vmem:[%s14 + $0x78] sm:$0xf]
    %v1858 = vld [vmem:[%s14 + $0x7c] sm:$0xf]
    %v1859 = vld [vmem:[#allocation17] sm:$0x1]
    %v1861 = vlaneseq
    %v1862 = vshrl.u32 %v1861, 7
    %v1863 = vsub.s32 0, %v1862
    %v1864 = vrot.slane %v1859, %v1863
    %v1898 = vunpack.c.l.b16 %v1827
    %v1899 = vunpack.c.l.b16 %v1828
    %v1900 = vunpack.c.l.b16 %v1829
    %v1901 = vunpack.c.l.b16 %v1830
    %v1902 = vunpack.c.l.b16 %v1831
    %v1903 = vunpack.c.l.b16 %v1832
    %v1904 = vunpack.c.l.b16 %v1833
    %v1905 = vunpack.c.l.b16 %v1834
    %v1906 = vunpack.c.l.b16 %v1835
    %v1907 = vunpack.c.l.b16 %v1836
    %v1908 = vunpack.c.l.b16 %v1837
    %v1909 = vunpack.c.l.b16 %v1838
    %v1910 = vunpack.c.l.b16 %v1839
    %v1911 = vunpack.c.l.b16 %v1840
    %v1912 = vunpack.c.l.b16 %v1841
    %v1913 = vunpack.c.l.b16 %v1842
    %v1914 = vunpack.c.l.b16 %v1843
    %v1915 = vunpack.c.l.b16 %v1844
    %v1916 = vunpack.c.l.b16 %v1845
    %v1917 = vunpack.c.l.b16 %v1846
    %v1918 = vunpack.c.l.b16 %v1847
    %v1919 = vunpack.c.l.b16 %v1848
    %v1920 = vunpack.c.l.b16 %v1849
    %v1921 = vunpack.c.l.b16 %v1850
    %v1922 = vunpack.c.l.b16 %v1851
    %v1923 = vunpack.c.l.b16 %v1852
    %v1924 = vunpack.c.l.b16 %v1853
    %v1925 = vunpack.c.l.b16 %v1854
    %v1926 = vunpack.c.l.b16 %v1855
    %v1927 = vunpack.c.l.b16 %v1856
    %v1928 = vunpack.c.l.b16 %v1857
    %v1929 = vunpack.c.l.b16 %v1858
    %v1930 = vpack.c.b16 %v1899, %v1898
    %v1931 = vpack.c.b16 %v1901, %v1900
    %v1932 = vpack.c.b16 %v1903, %v1902
    %v1933 = vpack.c.b16 %v1905, %v1904
    %v1934 = vpack.c.b16 %v1907, %v1906
    %v1935 = vpack.c.b16 %v1909, %v1908
    %v1936 = vpack.c.b16 %v1911, %v1910
    %v1937 = vpack.c.b16 %v1913, %v1912
    %v1938 = vpack.c.b16 %v1915, %v1914
    %v1939 = vpack.c.b16 %v1917, %v1916
    %v1940 = vpack.c.b16 %v1919, %v1918
    %v1941 = vpack.c.b16 %v1921, %v1920
    %v1942 = vpack.c.b16 %v1923, %v1922
    %v1943 = vpack.c.b16 %v1925, %v1924
    %v1944 = vpack.c.b16 %v1927, %v1926
    %v1945 = vpack.c.b16 %v1929, %v1928
    %1962 = vmatprep.subr.bf16.mxu0 0
    %1963 = vmatpush1.bf16.msra.mxu0 %v1930
    %1964 = vmatprep.subr.bf16.mxu0 0
    %1965 = vmatpush1.bf16.msra.mxu0 %v1931
    %1966 = vmatprep.subr.bf16.mxu0 0
    %1967 = vmatpush1.bf16.msra.mxu0 %v1932
    %1968 = vmatprep.subr.bf16.mxu0 0
    %1969 = vmatpush1.bf16.msra.mxu0 %v1933
    %1970 = vmatprep.subr.bf16.mxu0 0
    %1971 = vmatpush1.bf16.msra.mxu0 %v1934
    %1972 = vmatprep.subr.bf16.mxu0 0
    %1973 = vmatpush1.bf16.msra.mxu0 %v1935
    %1974 = vmatprep.subr.bf16.mxu0 0
    %1975 = vmatpush1.bf16.msra.mxu0 %v1936
    %1976 = vmatprep.subr.bf16.mxu0 0
    %1977 = vmatpush1.bf16.msra.mxu0 %v1937
    %1978 = vmatprep.subr.bf16.mxu0 0
    %1979 = vmatpush1.bf16.msra.mxu0 %v1938
    %1980 = vmatprep.subr.bf16.mxu0 0
    %1981 = vmatpush1.bf16.msra.mxu0 %v1939
    %1982 = vmatprep.subr.bf16.mxu0 0
    %1983 = vmatpush1.bf16.msra.mxu0 %v1940
    %1984 = vmatprep.subr.bf16.mxu0 0
    %1985 = vmatpush1.bf16.msra.mxu0 %v1941
    %1986 = vmatprep.subr.bf16.mxu0 0
    %1987 = vmatpush1.bf16.msra.mxu0 %v1942
    %1988 = vmatprep.subr.bf16.mxu0 0
    %1989 = vmatpush1.bf16.msra.mxu0 %v1943
    %1990 = vmatprep.subr.bf16.mxu0 0
    %1991 = vmatpush1.bf16.msra.mxu0 %v1944
    %1992 = vmatprep.subr.bf16.mxu0 0
    %1993 = vmatpush1.bf16.msra.mxu0 %v1945
    %1994 = vmatprep.mubr.bf16.mxu0 %v1826
    %1995 = vmatmul.mubr.bf16.gmra.mrb[0].mxu0 %v1825
    %v1996 = vpop.f32.mrb[0].mxu0
    %v1997 = vadd.f32 %v1864, %v1996
    %v1998 = vpop.f32.mrb[0].mxu0
    %v1999 = vpop.f32.mrb[0].mxu0
    %v2000 = vadd.f32 %v1864, %v1999
    %v2001 = vpop.f32.mrb[0].mxu0
    %2002 = vdwg.mxu0
    %v2003 = vld [vmem:[#allocation19] sm:$0xf]
    %v2004 = vld [vmem:[#allocation19 + $0x4] sm:$0xf]
    %v2005 = vld [vmem:[#allocation19 + $0x8] sm:$0xf]
    %v2006 = vld [vmem:[#allocation19 + $0xc] sm:$0xf]
    %v2007 = vld [vmem:[#allocation19 + $0x10] sm:$0xf]
    %v2008 = vld [vmem:[#allocation19 + $0x14] sm:$0xf]
    %v2009 = vld [vmem:[#allocation19 + $0x18] sm:$0xf]
    %v2010 = vld [vmem:[#allocation19 + $0x1c] sm:$0xf]
    %v2011 = vld [vmem:[#allocation19 + $0x20] sm:$0xf]
    %v2012 = vld [vmem:[#allocation19 + $0x24] sm:$0xf]
    %v2013 = vld [vmem:[#allocation19 + $0x28] sm:$0xf]
    %v2014 = vld [vmem:[#allocation19 + $0x2c] sm:$0xf]
    %v2015 = vld [vmem:[#allocation19 + $0x30] sm:$0xf]
    %v2016 = vld [vmem:[#allocation19 + $0x34] sm:$0xf]
    %v2017 = vld [vmem:[#allocation19 + $0x38] sm:$0xf]
    %v2018 = vld [vmem:[#allocation19 + $0x3c] sm:$0xf]
    %v2019 = vld [vmem:[#allocation19 + $0x40] sm:$0xf]
    %v2020 = vld [vmem:[#allocation19 + $0x44] sm:$0xf]
    %v2021 = vld [vmem:[#allocation19 + $0x48] sm:$0xf]
    %v2022 = vld [vmem:[#allocation19 + $0x4c] sm:$0xf]
    %v2023 = vld [vmem:[#allocation19 + $0x50] sm:$0xf]
    %v2024 = vld [vmem:[#allocation19 + $0x54] sm:$0xf]
    %v2025 = vld [vmem:[#allocation19 + $0x58] sm:$0xf]
    %v2026 = vld [vmem:[#allocation19 + $0x5c] sm:$0xf]
    %v2027 = vld [vmem:[#allocation19 + $0x60] sm:$0xf]
    %v2028 = vld [vmem:[#allocation19 + $0x64] sm:$0xf]
    %v2029 = vld [vmem:[#allocation19 + $0x68] sm:$0xf]
    %v2030 = vld [vmem:[#allocation19 + $0x6c] sm:$0xf]
    %v2031 = vld [vmem:[#allocation19 + $0x70] sm:$0xf]
    %v2032 = vld [vmem:[#allocation19 + $0x74] sm:$0xf]
    %v2033 = vld [vmem:[#allocation19 + $0x78] sm:$0xf]
    %v2034 = vld [vmem:[#allocation19 + $0x7c] sm:$0xf]
    %v2035 = vld [vmem:[#allocation20] sm:$0x1]
    %v2037 = vlaneseq
    %v2038 = vshrl.u32 %v2037, 7
    %v2039 = vsub.s32 0, %v2038
    %v2040 = vrot.slane %v2035, %v2039
    %v2074 = vunpack.c.l.b16 %v2003
    %v2075 = vunpack.c.l.b16 %v2004
    %v2076 = vunpack.c.l.b16 %v2005
    %v2077 = vunpack.c.l.b16 %v2006
    %v2078 = vunpack.c.l.b16 %v2007
    %v2079 = vunpack.c.l.b16 %v2008
    %v2080 = vunpack.c.l.b16 %v2009
    %v2081 = vunpack.c.l.b16 %v2010
    %v2082 = vunpack.c.l.b16 %v2011
    %v2083 = vunpack.c.l.b16 %v2012
    %v2084 = vunpack.c.l.b16 %v2013
    %v2085 = vunpack.c.l.b16 %v2014
    %v2086 = vunpack.c.l.b16 %v2015
    %v2087 = vunpack.c.l.b16 %v2016
    %v2088 = vunpack.c.l.b16 %v2017
    %v2089 = vunpack.c.l.b16 %v2018
    %v2090 = vunpack.c.l.b16 %v2019
    %v2091 = vunpack.c.l.b16 %v2020
    %v2092 = vunpack.c.l.b16 %v2021
    %v2093 = vunpack.c.l.b16 %v2022
    %v2094 = vunpack.c.l.b16 %v2023
    %v2095 = vunpack.c.l.b16 %v2024
    %v2096 = vunpack.c.l.b16 %v2025
    %v2097 = vunpack.c.l.b16 %v2026
    %v2098 = vunpack.c.l.b16 %v2027
    %v2099 = vunpack.c.l.b16 %v2028
    %v2100 = vunpack.c.l.b16 %v2029
    %v2101 = vunpack.c.l.b16 %v2030
    %v2102 = vunpack.c.l.b16 %v2031
    %v2103 = vunpack.c.l.b16 %v2032
    %v2104 = vunpack.c.l.b16 %v2033
    %v2105 = vunpack.c.l.b16 %v2034
    %v2106 = vpack.c.b16 %v2075, %v2074
    %v2107 = vpack.c.b16 %v2077, %v2076
    %v2108 = vpack.c.b16 %v2079, %v2078
    %v2109 = vpack.c.b16 %v2081, %v2080
    %v2110 = vpack.c.b16 %v2083, %v2082
    %v2111 = vpack.c.b16 %v2085, %v2084
    %v2112 = vpack.c.b16 %v2087, %v2086
    %v2113 = vpack.c.b16 %v2089, %v2088
    %v2114 = vpack.c.b16 %v2091, %v2090
    %v2115 = vpack.c.b16 %v2093, %v2092
    %v2116 = vpack.c.b16 %v2095, %v2094
    %v2117 = vpack.c.b16 %v2097, %v2096
    %v2118 = vpack.c.b16 %v2099, %v2098
    %v2119 = vpack.c.b16 %v2101, %v2100
    %v2120 = vpack.c.b16 %v2103, %v2102
    %v2121 = vpack.c.b16 %v2105, %v2104
    %2138 = vmatprep.subr.bf16.mxu0 0
    %2139 = vmatpush1.bf16.msra.mxu0 %v2106
    %2140 = vmatprep.subr.bf16.mxu0 0
    %2141 = vmatpush1.bf16.msra.mxu0 %v2107
    %2142 = vmatprep.subr.bf16.mxu0 0
    %2143 = vmatpush1.bf16.msra.mxu0 %v2108
    %2144 = vmatprep.subr.bf16.mxu0 0
    %2145 = vmatpush1.bf16.msra.mxu0 %v2109
    %2146 = vmatprep.subr.bf16.mxu0 0
    %2147 = vmatpush1.bf16.msra.mxu0 %v2110
    %2148 = vmatprep.subr.bf16.mxu0 0
    %2149 = vmatpush1.bf16.msra.mxu0 %v2111
    %2150 = vmatprep.subr.bf16.mxu0 0
    %2151 = vmatpush1.bf16.msra.mxu0 %v2112
    %2152 = vmatprep.subr.bf16.mxu0 0
    %2153 = vmatpush1.bf16.msra.mxu0 %v2113
    %2154 = vmatprep.subr.bf16.mxu0 0
    %2155 = vmatpush1.bf16.msra.mxu0 %v2114
    %2156 = vmatprep.subr.bf16.mxu0 0
    %2157 = vmatpush1.bf16.msra.mxu0 %v2115
    %2158 = vmatprep.subr.bf16.mxu0 0
    %2159 = vmatpush1.bf16.msra.mxu0 %v2116
    %2160 = vmatprep.subr.bf16.mxu0 0
    %2161 = vmatpush1.bf16.msra.mxu0 %v2117
    %2162 = vmatprep.subr.bf16.mxu0 0
    %2163 = vmatpush1.bf16.msra.mxu0 %v2118
    %2164 = vmatprep.subr.bf16.mxu0 0
    %2165 = vmatpush1.bf16.msra.mxu0 %v2119
    %2166 = vmatprep.subr.bf16.mxu0 0
    %2167 = vmatpush1.bf16.msra.mxu0 %v2120
    %2168 = vmatprep.subr.bf16.mxu0 0
    %2169 = vmatpush1.bf16.msra.mxu0 %v2121
    %2170 = vmatprep.mubr.bf16.mxu0 %v1826
    %2171 = vmatmul.mubr.bf16.gmra.mrb[0].mxu0 %v1825
    %v2172 = vpop.f32.mrb[0].mxu0
    %v2173 = vadd.f32 %v2040, %v2172
    %v2174 = vpop.f32.mrb[0].mxu0
    %v2175 = vpop.f32.mrb[0].mxu0
    %v2176 = vadd.f32 %v2040, %v2175
    %v2177 = vpop.f32.mrb[0].mxu0
    %2178 = vdwg.mxu0
    %v2179 = vld [vmem:[%s1] sm:$0xff]
    %v2180 = vld [vmem:[%s1 + $0x8] sm:$0xff]
    %v2181 = vmul.f32 %v2173, 0.5
    %v2182 = vmul.f32 %v2176, 0.5
    %v2183 = vmul.f32 %v2181, 1.442695
    %v2184 = vpow.pop %v2183
    %v2185 = vmul.f32 %v2182, 1.442695
    %v2186 = vpow.pop %v2185
    %v2187 = vmul.f32 %v2179, %v2184
    %v2188 = vmul.f32 %v2180, %v2186
    %v2189 = vadd.f32 %v1997, %v2187
    %v2190 = vadd.f32 %v2000, %v2188
    %v2191 = vpack.c.bf16 %v2190, %v2189
    %v2192 = vld [vmem:[#allocation22] sm:$0xff]
    %v2193 = vld [vmem:[#allocation22 + $0x8] sm:$0xff]
    %v2194 = vld [vmem:[#allocation22 + $0x10] sm:$0xff]
    %v2195 = vld [vmem:[#allocation22 + $0x18] sm:$0xff]
    %v2196 = vld [vmem:[#allocation22 + $0x20] sm:$0xff]
    %v2197 = vld [vmem:[#allocation22 + $0x28] sm:$0xff]
    %v2198 = vld [vmem:[#allocation22 + $0x30] sm:$0xff]
    %v2199 = vld [vmem:[#allocation22 + $0x38] sm:$0xff]
    %v2200 = vld [vmem:[#allocation22 + $0x40] sm:$0xff]
    %v2201 = vld [vmem:[#allocation22 + $0x48] sm:$0xff]
    %v2202 = vld [vmem:[#allocation22 + $0x50] sm:$0xff]
    %v2203 = vld [vmem:[#allocation22 + $0x58] sm:$0xff]
    %v2204 = vld [vmem:[#allocation22 + $0x60] sm:$0xff]
    %v2205 = vld [vmem:[#allocation22 + $0x68] sm:$0xff]
    %v2206 = vld [vmem:[#allocation22 + $0x70] sm:$0xff]
    %v2207 = vld [vmem:[#allocation22 + $0x78] sm:$0xff]
    %v2208 = vld [vmem:[#allocation23] sm:$0x3]
    %v2210 = vlaneseq
    %v2211 = vshrl.u32 %v2210, 7
    %v2212 = vsub.s32 0, %v2211
    %v2213 = vrot.slane %v2208, %v2212
    %v2214 = vlaneseq
    %v2215 = vshrl.u32 %v2214, 7
    %v2216 = vsub.s32 1, %v2215
    %v2217 = vrot.slane %v2208, %v2216
    %v2236 = vunpack.c.l.b16 %v2192
    %v2237 = vunpack.c.h.b16 %v2192
    %v2238 = vunpack.c.l.b16 %v2193
    %v2239 = vunpack.c.h.b16 %v2193
    %v2240 = vunpack.c.l.b16 %v2194
    %v2241 = vunpack.c.h.b16 %v2194
    %v2242 = vunpack.c.l.b16 %v2195
    %v2243 = vunpack.c.h.b16 %v2195
    %v2244 = vunpack.c.l.b16 %v2196
    %v2245 = vunpack.c.h.b16 %v2196
    %v2246 = vunpack.c.l.b16 %v2197
    %v2247 = vunpack.c.h.b16 %v2197
    %v2248 = vunpack.c.l.b16 %v2198
    %v2249 = vunpack.c.h.b16 %v2198
    %v2250 = vunpack.c.l.b16 %v2199
    %v2251 = vunpack.c.h.b16 %v2199
    %v2252 = vunpack.c.l.b16 %v2200
    %v2253 = vunpack.c.h.b16 %v2200
    %v2254 = vunpack.c.l.b16 %v2201
    %v2255 = vunpack.c.h.b16 %v2201
    %v2256 = vunpack.c.l.b16 %v2202
    %v2257 = vunpack.c.h.b16 %v2202
    %v2258 = vunpack.c.l.b16 %v2203
    %v2259 = vunpack.c.h.b16 %v2203
    %v2260 = vunpack.c.l.b16 %v2204
    %v2261 = vunpack.c.h.b16 %v2204
    %v2262 = vunpack.c.l.b16 %v2205
    %v2263 = vunpack.c.h.b16 %v2205
    %v2264 = vunpack.c.l.b16 %v2206
    %v2265 = vunpack.c.h.b16 %v2206
    %v2266 = vunpack.c.l.b16 %v2207
    %v2267 = vunpack.c.h.b16 %v2207
    %v2268 = vpack.c.b16 %v2238, %v2236
    %v2269 = vpack.c.b16 %v2239, %v2237
    %v2270 = vpack.c.b16 %v2242, %v2240
    %v2271 = vpack.c.b16 %v2243, %v2241
    %v2272 = vpack.c.b16 %v2246, %v2244
    %v2273 = vpack.c.b16 %v2247, %v2245
    %v2274 = vpack.c.b16 %v2250, %v2248
    %v2275 = vpack.c.b16 %v2251, %v2249
    %v2276 = vpack.c.b16 %v2254, %v2252
    %v2277 = vpack.c.b16 %v2255, %v2253
    %v2278 = vpack.c.b16 %v2258, %v2256
    %v2279 = vpack.c.b16 %v2259, %v2257
    %v2280 = vpack.c.b16 %v2262, %v2260
    %v2281 = vpack.c.b16 %v2263, %v2261
    %v2282 = vpack.c.b16 %v2266, %v2264
    %v2283 = vpack.c.b16 %v2267, %v2265
    %2300 = vmatprep.subr.bf16.mxu0 %v2269
    %2301 = vmatpush1.bf16.msra.mxu0 %v2268
    %2302 = vmatprep.subr.bf16.mxu0 %v2271
    %2303 = vmatpush1.bf16.msra.mxu0 %v2270
    %2304 = vmatprep.subr.bf16.mxu0 %v2273
    %2305 = vmatpush1.bf16.msra.mxu0 %v2272
    %2306 = vmatprep.subr.bf16.mxu0 %v2275
    %2307 = vmatpush1.bf16.msra.mxu0 %v2274
    %2308 = vmatprep.subr.bf16.mxu0 %v2277
    %2309 = vmatpush1.bf16.msra.mxu0 %v2276
    %2310 = vmatprep.subr.bf16.mxu0 %v2279
    %2311 = vmatpush1.bf16.msra.mxu0 %v2278
    %2312 = vmatprep.subr.bf16.mxu0 %v2281
    %2313 = vmatpush1.bf16.msra.mxu0 %v2280
    %2314 = vmatprep.subr.bf16.mxu0 %v2283
    %2315 = vmatpush1.bf16.msra.mxu0 %v2282
    %2316 = vmatprep.subr.bf16.mxu0 0
    %2317 = vmatpush1.bf16.msra.mxu0 0
    %2318 = vmatprep.subr.bf16.mxu0 0
    %2319 = vmatpush1.bf16.msra.mxu0 0
    %2320 = vmatprep.subr.bf16.mxu0 0
    %2321 = vmatpush1.bf16.msra.mxu0 0
    %2322 = vmatprep.subr.bf16.mxu0 0
    %2323 = vmatpush1.bf16.msra.mxu0 0
    %2324 = vmatprep.subr.bf16.mxu0 0
    %2325 = vmatpush1.bf16.msra.mxu0 0
    %2326 = vmatprep.subr.bf16.mxu0 0
    %2327 = vmatpush1.bf16.msra.mxu0 0
    %2328 = vmatprep.subr.bf16.mxu0 0
    %2329 = vmatpush1.bf16.msra.mxu0 0
    %2330 = vmatprep.subr.bf16.mxu0 0
    %2331 = vmatpush1.bf16.msra.mxu0 0
    %2332 = vmatprep.mubr.bf16.mxu0 0
    %2333 = vmatmul.mubr.bf16.gmra.mrb[0].mxu0 %v2191
    %v2334 = vpop.f32.mrb[0].mxu0
    %v2335 = vadd.f32 %v2213, %v2334
    %v2336 = vpop.f32.mrb[0].mxu0
    %v2337 = vadd.f32 %v2217, %v2336
    %v2338 = vpop.f32.mrb[0].mxu0
    %v2339 = vadd.f32 %v2213, %v2338
    %v2340 = vpop.f32.mrb[0].mxu0
    %v2341 = vadd.f32 %v2217, %v2340
    %2342 = vdwg.mxu0
    %v2343 = vmax.f32 %v2335, 0.0
    %v2344 = vmax.f32 %v2337, 0.0
    %v2345 = vmax.f32 %v2339, 0.0
    %v2346 = vmax.f32 %v2341, 0.0
    %v2347 = vpack.c.bf16 %v2345, %v2343
    %v2348 = vpack.c.bf16 %v2346, %v2344
    %v2349 = vld [vmem:[#allocation25] sm:$0xff]
    %v2350 = vld [vmem:[#allocation25 + $0x8] sm:$0xff]
    %v2351 = vld [vmem:[#allocation25 + $0x10] sm:$0xff]
    %v2352 = vld [vmem:[#allocation25 + $0x18] sm:$0xff]
    %v2353 = vld [vmem:[#allocation25 + $0x20] sm:$0xff]
    %v2354 = vld [vmem:[#allocation25 + $0x28] sm:$0xff]
    %v2355 = vld [vmem:[#allocation25 + $0x30] sm:$0xff]
    %v2356 = vld [vmem:[#allocation25 + $0x38] sm:$0xff]
    %v2357 = vld [vmem:[#allocation25 + $0x40] sm:$0xff]
    %v2358 = vld [vmem:[#allocation25 + $0x48] sm:$0xff]
    %v2359 = vld [vmem:[#allocation25 + $0x50] sm:$0xff]
    %v2360 = vld [vmem:[#allocation25 + $0x58] sm:$0xff]
    %v2361 = vld [vmem:[#allocation25 + $0x60] sm:$0xff]
    %v2362 = vld [vmem:[#allocation25 + $0x68] sm:$0xff]
    %v2363 = vld [vmem:[#allocation25 + $0x70] sm:$0xff]
    %v2364 = vld [vmem:[#allocation25 + $0x78] sm:$0xff]
    %v2365 = vld [vmem:[#allocation25 + $0x80] sm:$0xff]
    %v2366 = vld [vmem:[#allocation25 + $0x88] sm:$0xff]
    %v2367 = vld [vmem:[#allocation25 + $0x90] sm:$0xff]
    %v2368 = vld [vmem:[#allocation25 + $0x98] sm:$0xff]
    %v2369 = vld [vmem:[#allocation25 + $0xa0] sm:$0xff]
    %v2370 = vld [vmem:[#allocation25 + $0xa8] sm:$0xff]
    %v2371 = vld [vmem:[#allocation25 + $0xb0] sm:$0xff]
    %v2372 = vld [vmem:[#allocation25 + $0xb8] sm:$0xff]
    %v2373 = vld [vmem:[#allocation25 + $0xc0] sm:$0xff]
    %v2374 = vld [vmem:[#allocation25 + $0xc8] sm:$0xff]
    %v2375 = vld [vmem:[#allocation25 + $0xd0] sm:$0xff]
    %v2376 = vld [vmem:[#allocation25 + $0xd8] sm:$0xff]
    %v2377 = vld [vmem:[#allocation25 + $0xe0] sm:$0xff]
    %v2378 = vld [vmem:[#allocation25 + $0xe8] sm:$0xff]
    %v2379 = vld [vmem:[#allocation25 + $0xf0] sm:$0xff]
    %v2380 = vld [vmem:[#allocation25 + $0xf8] sm:$0xff]
    %v2381 = vld [vmem:[#allocation25 + $0x100] sm:$0xff]
    %v2382 = vld [vmem:[#allocation25 + $0x108] sm:$0xff]
    %v2383 = vld [vmem:[#allocation25 + $0x110] sm:$0xff]
    %v2384 = vld [vmem:[#allocation25 + $0x118] sm:$0xff]
    %v2385 = vld [vmem:[#allocation25 + $0x120] sm:$0xff]
    %v2386 = vld [vmem:[#allocation25 + $0x128] sm:$0xff]
    %v2387 = vld [vmem:[#allocation25 + $0x130] sm:$0xff]
    %v2388 = vld [vmem:[#allocation25 + $0x138] sm:$0xff]
    %v2389 = vld [vmem:[#allocation25 + $0x140] sm:$0xff]
    %v2390 = vld [vmem:[#allocation25 + $0x148] sm:$0xff]
    %v2391 = vld [vmem:[#allocation25 + $0x150] sm:$0xff]
    %v2392 = vld [vmem:[#allocation25 + $0x158] sm:$0xff]
    %v2393 = vld [vmem:[#allocation25 + $0x160] sm:$0xff]
    %v2394 = vld [vmem:[#allocation25 + $0x168] sm:$0xff]
    %v2395 = vld [vmem:[#allocation25 + $0x170] sm:$0xff]
    %v2396 = vld [vmem:[#allocation25 + $0x178] sm:$0xff]
    %v2397 = vld [vmem:[#allocation25 + $0x180] sm:$0xff]
    %v2398 = vld [vmem:[#allocation25 + $0x188] sm:$0xff]
    %v2399 = vld [vmem:[#allocation25 + $0x190] sm:$0xff]
    %v2400 = vld [vmem:[#allocation25 + $0x198] sm:$0xff]
    %v2401 = vld [vmem:[#allocation25 + $0x1a0] sm:$0xff]
    %v2402 = vld [vmem:[#allocation25 + $0x1a8] sm:$0xff]
    %v2403 = vld [vmem:[#allocation25 + $0x1b0] sm:$0xff]
    %v2404 = vld [vmem:[#allocation25 + $0x1b8] sm:$0xff]
    %v2405 = vld [vmem:[#allocation25 + $0x1c0] sm:$0xff]
    %v2406 = vld [vmem:[#allocation25 + $0x1c8] sm:$0xff]
    %v2407 = vld [vmem:[#allocation25 + $0x1d0] sm:$0xff]
    %v2408 = vld [vmem:[#allocation25 + $0x1d8] sm:$0xff]
    %v2409 = vld [vmem:[#allocation25 + $0x1e0] sm:$0xff]
    %v2410 = vld [vmem:[#allocation25 + $0x1e8] sm:$0xff]
    %v2411 = vld [vmem:[#allocation25 + $0x1f0] sm:$0xff]
    %v2412 = vld [vmem:[#allocation25 + $0x1f8] sm:$0xff]
    %v2413 = vld [vmem:[%s21] sm:$0xf]
    %v2415 = vlaneseq
    %v2416 = vshrl.u32 %v2415, 7
    %v2417 = vsub.s32 0, %v2416
    %v2418 = vrot.slane %v2413, %v2417
    %v2419 = vlaneseq
    %v2420 = vshrl.u32 %v2419, 7
    %v2421 = vsub.s32 1, %v2420
    %v2422 = vrot.slane %v2413, %v2421
    %v2423 = vlaneseq
    %v2424 = vshrl.u32 %v2423, 7
    %v2425 = vsub.s32 2, %v2424
    %v2426 = vrot.slane %v2413, %v2425
    %v2427 = vlaneseq
    %v2428 = vshrl.u32 %v2427, 7
    %v2429 = vsub.s32 3, %v2428
    %v2430 = vrot.slane %v2413, %v2429
    %v2499 = vunpack.c.l.b16 %v2349
    %v2500 = vunpack.c.h.b16 %v2349
    %v2501 = vunpack.c.l.b16 %v2350
    %v2502 = vunpack.c.h.b16 %v2350
    %v2503 = vunpack.c.l.b16 %v2351
    %v2504 = vunpack.c.h.b16 %v2351
    %v2505 = vunpack.c.l.b16 %v2352
    %v2506 = vunpack.c.h.b16 %v2352
    %v2507 = vunpack.c.l.b16 %v2353
    %v2508 = vunpack.c.h.b16 %v2353
    %v2509 = vunpack.c.l.b16 %v2354
    %v2510 = vunpack.c.h.b16 %v2354
    %v2511 = vunpack.c.l.b16 %v2355
    %v2512 = vunpack.c.h.b16 %v2355
    %v2513 = vunpack.c.l.b16 %v2356
    %v2514 = vunpack.c.h.b16 %v2356
    %v2515 = vunpack.c.l.b16 %v2357
    %v2516 = vunpack.c.h.b16 %v2357
    %v2517 = vunpack.c.l.b16 %v2358
    %v2518 = vunpack.c.h.b16 %v2358
    %v2519 = vunpack.c.l.b16 %v2359
    %v2520 = vunpack.c.h.b16 %v2359
    %v2521 = vunpack.c.l.b16 %v2360
    %v2522 = vunpack.c.h.b16 %v2360
    %v2523 = vunpack.c.l.b16 %v2361
    %v2524 = vunpack.c.h.b16 %v2361
    %v2525 = vunpack.c.l.b16 %v2362
    %v2526 = vunpack.c.h.b16 %v2362
    %v2527 = vunpack.c.l.b16 %v2363
    %v2528 = vunpack.c.h.b16 %v2363
    %v2529 = vunpack.c.l.b16 %v2364
    %v2530 = vunpack.c.h.b16 %v2364
    %v2531 = vunpack.c.l.b16 %v2365
    %v2532 = vunpack.c.h.b16 %v2365
    %v2533 = vunpack.c.l.b16 %v2366
    %v2534 = vunpack.c.h.b16 %v2366
    %v2535 = vunpack.c.l.b16 %v2367
    %v2536 = vunpack.c.h.b16 %v2367
    %v2537 = vunpack.c.l.b16 %v2368
    %v2538 = vunpack.c.h.b16 %v2368
    %v2539 = vunpack.c.l.b16 %v2369
    %v2540 = vunpack.c.h.b16 %v2369
    %v2541 = vunpack.c.l.b16 %v2370
    %v2542 = vunpack.c.h.b16 %v2370
    %v2543 = vunpack.c.l.b16 %v2371
    %v2544 = vunpack.c.h.b16 %v2371
    %v2545 = vunpack.c.l.b16 %v2372
    %v2546 = vunpack.c.h.b16 %v2372
    %v2547 = vunpack.c.l.b16 %v2373
    %v2548 = vunpack.c.h.b16 %v2373
    %v2549 = vunpack.c.l.b16 %v2374
    %v2550 = vunpack.c.h.b16 %v2374
    %v2551 = vunpack.c.l.b16 %v2375
    %v2552 = vunpack.c.h.b16 %v2375
    %v2553 = vunpack.c.l.b16 %v2376
    %v2554 = vunpack.c.h.b16 %v2376
    %v2555 = vunpack.c.l.b16 %v2377
    %v2556 = vunpack.c.h.b16 %v2377
    %v2557 = vunpack.c.l.b16 %v2378
    %v2558 = vunpack.c.h.b16 %v2378
    %v2559 = vunpack.c.l.b16 %v2379
    %v2560 = vunpack.c.h.b16 %v2379
    %v2561 = vunpack.c.l.b16 %v2380
    %v2562 = vunpack.c.h.b16 %v2380
    %v2563 = vunpack.c.l.b16 %v2381
    %v2564 = vunpack.c.h.b16 %v2381
    %v2565 = vunpack.c.l.b16 %v2382
    %v2566 = vunpack.c.h.b16 %v2382
    %v2567 = vunpack.c.l.b16 %v2383
    %v2568 = vunpack.c.h.b16 %v2383
    %v2569 = vunpack.c.l.b16 %v2384
    %v2570 = vunpack.c.h.b16 %v2384
    %v2571 = vunpack.c.l.b16 %v2385
    %v2572 = vunpack.c.h.b16 %v2385
    %v2573 = vunpack.c.l.b16 %v2386
    %v2574 = vunpack.c.h.b16 %v2386
    %v2575 = vunpack.c.l.b16 %v2387
    %v2576 = vunpack.c.h.b16 %v2387
    %v2577 = vunpack.c.l.b16 %v2388
    %v2578 = vunpack.c.h.b16 %v2388
    %v2579 = vunpack.c.l.b16 %v2389
    %v2580 = vunpack.c.h.b16 %v2389
    %v2581 = vunpack.c.l.b16 %v2390
    %v2582 = vunpack.c.h.b16 %v2390
    %v2583 = vunpack.c.l.b16 %v2391
    %v2584 = vunpack.c.h.b16 %v2391
    %v2585 = vunpack.c.l.b16 %v2392
    %v2586 = vunpack.c.h.b16 %v2392
    %v2587 = vunpack.c.l.b16 %v2393
    %v2588 = vunpack.c.h.b16 %v2393
    %v2589 = vunpack.c.l.b16 %v2394
    %v2590 = vunpack.c.h.b16 %v2394
    %v2591 = vunpack.c.l.b16 %v2395
    %v2592 = vunpack.c.h.b16 %v2395
    %v2593 = vunpack.c.l.b16 %v2396
    %v2594 = vunpack.c.h.b16 %v2396
    %v2595 = vunpack.c.l.b16 %v2397
    %v2596 = vunpack.c.h.b16 %v2397
    %v2597 = vunpack.c.l.b16 %v2398
    %v2598 = vunpack.c.h.b16 %v2398
    %v2599 = vunpack.c.l.b16 %v2399
    %v2600 = vunpack.c.h.b16 %v2399
    %v2601 = vunpack.c.l.b16 %v2400
    %v2602 = vunpack.c.h.b16 %v2400
    %v2603 = vunpack.c.l.b16 %v2401
    %v2604 = vunpack.c.h.b16 %v2401
    %v2605 = vunpack.c.l.b16 %v2402
    %v2606 = vunpack.c.h.b16 %v2402
    %v2607 = vunpack.c.l.b16 %v2403
    %v2608 = vunpack.c.h.b16 %v2403
    %v2609 = vunpack.c.l.b16 %v2404
    %v2610 = vunpack.c.h.b16 %v2404
    %v2611 = vunpack.c.l.b16 %v2405
    %v2612 = vunpack.c.h.b16 %v2405
    %v2613 = vunpack.c.l.b16 %v2406
    %v2614 = vunpack.c.h.b16 %v2406
    %v2615 = vunpack.c.l.b16 %v2407
    %v2616 = vunpack.c.h.b16 %v2407
    %v2617 = vunpack.c.l.b16 %v2408
    %v2618 = vunpack.c.h.b16 %v2408
    %v2619 = vunpack.c.l.b16 %v2409
    %v2620 = vunpack.c.h.b16 %v2409
    %v2621 = vunpack.c.l.b16 %v2410
    %v2622 = vunpack.c.h.b16 %v2410
    %v2623 = vunpack.c.l.b16 %v2411
    %v2624 = vunpack.c.h.b16 %v2411
    %v2625 = vunpack.c.l.b16 %v2412
    %v2626 = vunpack.c.h.b16 %v2412
    %v2627 = vpack.c.b16 %v2503, %v2499
    %v2628 = vpack.c.b16 %v2504, %v2500
    %v2629 = vpack.c.b16 %v2505, %v2501
    %v2630 = vpack.c.b16 %v2506, %v2502
    %v2631 = vpack.c.b16 %v2511, %v2507
    %v2632 = vpack.c.b16 %v2512, %v2508
    %v2633 = vpack.c.b16 %v2513, %v2509
    %v2634 = vpack.c.b16 %v2514, %v2510
    %v2635 = vpack.c.b16 %v2519, %v2515
    %v2636 = vpack.c.b16 %v2520, %v2516
    %v2637 = vpack.c.b16 %v2521, %v2517
    %v2638 = vpack.c.b16 %v2522, %v2518
    %v2639 = vpack.c.b16 %v2527, %v2523
    %v2640 = vpack.c.b16 %v2528, %v2524
    %v2641 = vpack.c.b16 %v2529, %v2525
    %v2642 = vpack.c.b16 %v2530, %v2526
    %v2643 = vpack.c.b16 %v2535, %v2531
    %v2644 = vpack.c.b16 %v2536, %v2532
    %v2645 = vpack.c.b16 %v2537, %v2533
    %v2646 = vpack.c.b16 %v2538, %v2534
    %v2647 = vpack.c.b16 %v2543, %v2539
    %v2648 = vpack.c.b16 %v2544, %v2540
    %v2649 = vpack.c.b16 %v2545, %v2541
    %v2650 = vpack.c.b16 %v2546, %v2542
    %v2651 = vpack.c.b16 %v2551, %v2547
    %v2652 = vpack.c.b16 %v2552, %v2548
    %v2653 = vpack.c.b16 %v2553, %v2549
    %v2654 = vpack.c.b16 %v2554, %v2550
    %v2655 = vpack.c.b16 %v2559, %v2555
    %v2656 = vpack.c.b16 %v2560, %v2556
    %v2657 = vpack.c.b16 %v2561, %v2557
    %v2658 = vpack.c.b16 %v2562, %v2558
    %v2659 = vpack.c.b16 %v2567, %v2563
    %v2660 = vpack.c.b16 %v2568, %v2564
    %v2661 = vpack.c.b16 %v2569, %v2565
    %v2662 = vpack.c.b16 %v2570, %v2566
    %v2663 = vpack.c.b16 %v2575, %v2571
    %v2664 = vpack.c.b16 %v2576, %v2572
    %v2665 = vpack.c.b16 %v2577, %v2573
    %v2666 = vpack.c.b16 %v2578, %v2574
    %v2667 = vpack.c.b16 %v2583, %v2579
    %v2668 = vpack.c.b16 %v2584, %v2580
    %v2669 = vpack.c.b16 %v2585, %v2581
    %v2670 = vpack.c.b16 %v2586, %v2582
    %v2671 = vpack.c.b16 %v2591, %v2587
    %v2672 = vpack.c.b16 %v2592, %v2588
    %v2673 = vpack.c.b16 %v2593, %v2589
    %v2674 = vpack.c.b16 %v2594, %v2590
    %v2675 = vpack.c.b16 %v2599, %v2595
    %v2676 = vpack.c.b16 %v2600, %v2596
    %v2677 = vpack.c.b16 %v2601, %v2597
    %v2678 = vpack.c.b16 %v2602, %v2598
    %v2679 = vpack.c.b16 %v2607, %v2603
    %v2680 = vpack.c.b16 %v2608, %v2604
    %v2681 = vpack.c.b16 %v2609, %v2605
    %v2682 = vpack.c.b16 %v2610, %v2606
    %v2683 = vpack.c.b16 %v2615, %v2611
    %v2684 = vpack.c.b16 %v2616, %v2612
    %v2685 = vpack.c.b16 %v2617, %v2613
    %v2686 = vpack.c.b16 %v2618, %v2614
    %v2687 = vpack.c.b16 %v2623, %v2619
    %v2688 = vpack.c.b16 %v2624, %v2620
    %v2689 = vpack.c.b16 %v2625, %v2621
    %v2690 = vpack.c.b16 %v2626, %v2622
    %2755 = vmatprep.subr.bf16.mxu0 %v2628
    %2756 = vmatpush1.bf16.msra.mxu0 %v2627
    %2757 = vmatprep.subr.bf16.mxu0 %v2632
    %2758 = vmatpush1.bf16.msra.mxu0 %v2631
    %2759 = vmatprep.subr.bf16.mxu0 %v2636
    %2760 = vmatpush1.bf16.msra.mxu0 %v2635
    %2761 = vmatprep.subr.bf16.mxu0 %v2640
    %2762 = vmatpush1.bf16.msra.mxu0 %v2639
    %2763 = vmatprep.subr.bf16.mxu0 %v2644
    %2764 = vmatpush1.bf16.msra.mxu0 %v2643
    %2765 = vmatprep.subr.bf16.mxu0 %v2648
    %2766 = vmatpush1.bf16.msra.mxu0 %v2647
    %2767 = vmatprep.subr.bf16.mxu0 %v2652
    %2768 = vmatpush1.bf16.msra.mxu0 %v2651
    %2769 = vmatprep.subr.bf16.mxu0 %v2656
    %2770 = vmatpush1.bf16.msra.mxu0 %v2655
    %2771 = vmatprep.subr.bf16.mxu0 %v2660
    %2772 = vmatpush1.bf16.msra.mxu0 %v2659
    %2773 = vmatprep.subr.bf16.mxu0 %v2664
    %2774 = vmatpush1.bf16.msra.mxu0 %v2663
    %2775 = vmatprep.subr.bf16.mxu0 %v2668
    %2776 = vmatpush1.bf16.msra.mxu0 %v2667
    %2777 = vmatprep.subr.bf16.mxu0 %v2672
    %2778 = vmatpush1.bf16.msra.mxu0 %v2671
    %2779 = vmatprep.subr.bf16.mxu0 %v2676
    %2780 = vmatpush1.bf16.msra.mxu0 %v2675
    %2781 = vmatprep.subr.bf16.mxu0 %v2680
    %2782 = vmatpush1.bf16.msra.mxu0 %v2679
    %2783 = vmatprep.subr.bf16.mxu0 %v2684
    %2784 = vmatpush1.bf16.msra.mxu0 %v2683
    %2785 = vmatprep.subr.bf16.mxu0 %v2688
    %2786 = vmatpush1.bf16.msra.mxu0 %v2687
    %2787 = vmatprep.mubr.bf16.mxu0 %v2348
    %2788 = vmatmul.mubr.bf16.gmra.mrb[0].mxu0 %v2347
    %v2789 = vpop.f32.mrb[0].mxu0
    %v2790 = vadd.f32 %v2418, %v2789
    %v2791 = vpop.f32.mrb[0].mxu0
    %v2792 = vadd.f32 %v2422, %v2791
    %v2793 = vpop.f32.mrb[0].mxu0
    %v2794 = vadd.f32 %v2418, %v2793
    %v2795 = vpop.f32.mrb[0].mxu0
    %v2796 = vadd.f32 %v2422, %v2795
    %2797 = vdwg.mxu0
    %2798 = vmatprep.subr.bf16.mxu0 %v2630
    %2799 = vmatpush1.bf16.msra.mxu0 %v2629
    %2800 = vmatprep.subr.bf16.mxu0 %v2634
    %2801 = vmatpush1.bf16.msra.mxu0 %v2633
    %2802 = vmatprep.subr.bf16.mxu0 %v2638
    %2803 = vmatpush1.bf16.msra.mxu0 %v2637
    %2804 = vmatprep.subr.bf16.mxu0 %v2642
    %2805 = vmatpush1.bf16.msra.mxu0 %v2641
    %2806 = vmatprep.subr.bf16.mxu0 %v2646
    %2807 = vmatpush1.bf16.msra.mxu0 %v2645
    %2808 = vmatprep.subr.bf16.mxu0 %v2650
    %2809 = vmatpush1.bf16.msra.mxu0 %v2649
    %2810 = vmatprep.subr.bf16.mxu0 %v2654
    %2811 = vmatpush1.bf16.msra.mxu0 %v2653
    %2812 = vmatprep.subr.bf16.mxu0 %v2658
    %2813 = vmatpush1.bf16.msra.mxu0 %v2657
    %2814 = vmatprep.subr.bf16.mxu0 %v2662
    %2815 = vmatpush1.bf16.msra.mxu0 %v2661
    %2816 = vmatprep.subr.bf16.mxu0 %v2666
    %2817 = vmatpush1.bf16.msra.mxu0 %v2665
    %2818 = vmatprep.subr.bf16.mxu0 %v2670
    %2819 = vmatpush1.bf16.msra.mxu0 %v2669
    %2820 = vmatprep.subr.bf16.mxu0 %v2674
    %2821 = vmatpush1.bf16.msra.mxu0 %v2673
    %2822 = vmatprep.subr.bf16.mxu0 %v2678
    %2823 = vmatpush1.bf16.msra.mxu0 %v2677
    %2824 = vmatprep.subr.bf16.mxu0 %v2682
    %2825 = vmatpush1.bf16.msra.mxu0 %v2681
    %2826 = vmatprep.subr.bf16.mxu0 %v2686
    %2827 = vmatpush1.bf16.msra.mxu0 %v2685
    %2828 = vmatprep.subr.bf16.mxu0 %v2690
    %2829 = vmatpush1.bf16.msra.mxu0 %v2689
    %2830 = vmatprep.mubr.bf16.mxu0 %v2348
    %2831 = vmatmul.mubr.bf16.gmra.mrb[0].mxu0 %v2347
    %v2832 = vpop.f32.mrb[0].mxu0
    %v2833 = vadd.f32 %v2426, %v2832
    %v2834 = vpop.f32.mrb[0].mxu0
    %v2835 = vadd.f32 %v2430, %v2834
    %v2836 = vpop.f32.mrb[0].mxu0
    %v2837 = vadd.f32 %v2426, %v2836
    %v2838 = vpop.f32.mrb[0].mxu0
    %v2839 = vadd.f32 %v2430, %v2838
    %2840 = vdwg.mxu0
    %v2841 = vmax.f32 %v2790, 0.0
    %v2842 = vmax.f32 %v2792, 0.0
    %v2843 = vmax.f32 %v2833, 0.0
    %v2844 = vmax.f32 %v2835, 0.0
    %v2845 = vmax.f32 %v2794, 0.0
    %v2846 = vmax.f32 %v2796, 0.0
    %v2847 = vmax.f32 %v2837, 0.0
    %v2848 = vmax.f32 %v2839, 0.0
    %v2849 = vpack.c.bf16 %v2845, %v2841
    %v2850 = vpack.c.bf16 %v2846, %v2842
    %v2851 = vpack.c.bf16 %v2847, %v2843
    %v2852 = vpack.c.bf16 %v2848, %v2844
    %v2853 = vld [vmem:[#allocation26] sm:$0xff]
    %v2854 = vld [vmem:[#allocation26 + $0x8] sm:$0xff]
    %v2855 = vld [vmem:[#allocation26 + $0x10] sm:$0xff]
    %v2856 = vld [vmem:[#allocation26 + $0x18] sm:$0xff]
    %v2857 = vld [vmem:[#allocation26 + $0x20] sm:$0xff]
    %v2858 = vld [vmem:[#allocation26 + $0x28] sm:$0xff]
    %v2859 = vld [vmem:[#allocation26 + $0x30] sm:$0xff]
    %v2860 = vld [vmem:[#allocation26 + $0x38] sm:$0xff]
    %v2861 = vld [vmem:[#allocation26 + $0x40] sm:$0xff]
    %v2862 = vld [vmem:[#allocation26 + $0x48] sm:$0xff]
    %v2863 = vld [vmem:[#allocation26 + $0x50] sm:$0xff]
    %v2864 = vld [vmem:[#allocation26 + $0x58] sm:$0xff]
    %v2865 = vld [vmem:[#allocation26 + $0x60] sm:$0xff]
    %v2866 = vld [vmem:[#allocation26 + $0x68] sm:$0xff]
    %v2867 = vld [vmem:[#allocation26 + $0x70] sm:$0xff]
    %v2868 = vld [vmem:[#allocation26 + $0x78] sm:$0xff]
    %v2869 = vld [vmem:[#allocation26 + $0x80] sm:$0xff]
    %v2870 = vld [vmem:[#allocation26 + $0x88] sm:$0xff]
    %v2871 = vld [vmem:[#allocation26 + $0x90] sm:$0xff]
    %v2872 = vld [vmem:[#allocation26 + $0x98] sm:$0xff]
    %v2873 = vld [vmem:[#allocation26 + $0xa0] sm:$0xff]
    %v2874 = vld [vmem:[#allocation26 + $0xa8] sm:$0xff]
    %v2875 = vld [vmem:[#allocation26 + $0xb0] sm:$0xff]
    %v2876 = vld [vmem:[#allocation26 + $0xb8] sm:$0xff]
    %v2877 = vld [vmem:[#allocation26 + $0xc0] sm:$0xff]
    %v2878 = vld [vmem:[#allocation26 + $0xc8] sm:$0xff]
    %v2879 = vld [vmem:[#allocation26 + $0xd0] sm:$0xff]
    %v2880 = vld [vmem:[#allocation26 + $0xd8] sm:$0xff]
    %v2881 = vld [vmem:[#allocation26 + $0xe0] sm:$0xff]
    %v2882 = vld [vmem:[#allocation26 + $0xe8] sm:$0xff]
    %v2883 = vld [vmem:[#allocation26 + $0xf0] sm:$0xff]
    %v2884 = vld [vmem:[#allocation26 + $0xf8] sm:$0xff]
    %v2885 = vld [vmem:[#allocation26 + $0x100] sm:$0xff]
    %v2886 = vld [vmem:[#allocation26 + $0x108] sm:$0xff]
    %v2887 = vld [vmem:[#allocation26 + $0x110] sm:$0xff]
    %v2888 = vld [vmem:[#allocation26 + $0x118] sm:$0xff]
    %v2889 = vld [vmem:[#allocation26 + $0x120] sm:$0xff]
    %v2890 = vld [vmem:[#allocation26 + $0x128] sm:$0xff]
    %v2891 = vld [vmem:[#allocation26 + $0x130] sm:$0xff]
    %v2892 = vld [vmem:[#allocation26 + $0x138] sm:$0xff]
    %v2893 = vld [vmem:[#allocation26 + $0x140] sm:$0xff]
    %v2894 = vld [vmem:[#allocation26 + $0x148] sm:$0xff]
    %v2895 = vld [vmem:[#allocation26 + $0x150] sm:$0xff]
    %v2896 = vld [vmem:[#allocation26 + $0x158] sm:$0xff]
    %v2897 = vld [vmem:[#allocation26 + $0x160] sm:$0xff]
    %v2898 = vld [vmem:[#allocation26 + $0x168] sm:$0xff]
    %v2899 = vld [vmem:[#allocation26 + $0x170] sm:$0xff]
    %v2900 = vld [vmem:[#allocation26 + $0x178] sm:$0xff]
    %v2901 = vld [vmem:[#allocation26 + $0x180] sm:$0xff]
    %v2902 = vld [vmem:[#allocation26 + $0x188] sm:$0xff]
    %v2903 = vld [vmem:[#allocation26 + $0x190] sm:$0xff]
    %v2904 = vld [vmem:[#allocation26 + $0x198] sm:$0xff]
    %v2905 = vld [vmem:[#allocation26 + $0x1a0] sm:$0xff]
    %v2906 = vld [vmem:[#allocation26 + $0x1a8] sm:$0xff]
    %v2907 = vld [vmem:[#allocation26 + $0x1b0] sm:$0xff]
    %v2908 = vld [vmem:[#allocation26 + $0x1b8] sm:$0xff]
    %v2909 = vld [vmem:[#allocation26 + $0x1c0] sm:$0xff]
    %v2910 = vld [vmem:[#allocation26 + $0x1c8] sm:$0xff]
    %v2911 = vld [vmem:[#allocation26 + $0x1d0] sm:$0xff]
    %v2912 = vld [vmem:[#allocation26 + $0x1d8] sm:$0xff]
    %v2913 = vld [vmem:[#allocation26 + $0x1e0] sm:$0xff]
    %v2914 = vld [vmem:[#allocation26 + $0x1e8] sm:$0xff]
    %v2915 = vld [vmem:[#allocation26 + $0x1f0] sm:$0xff]
    %v2916 = vld [vmem:[#allocation26 + $0x1f8] sm:$0xff]
    %v2917 = vld [vmem:[%s23] sm:$0x3]
    %v2919 = vlaneseq
    %v2920 = vshrl.u32 %v2919, 7
    %v2921 = vsub.s32 0, %v2920
    %v2922 = vrot.slane %v2917, %v2921
    %v2923 = vlaneseq
    %v2924 = vshrl.u32 %v2923, 7
    %v2925 = vsub.s32 1, %v2924
    %v2926 = vrot.slane %v2917, %v2925
    %v2993 = vunpack.c.l.b16 %v2853
    %v2994 = vunpack.c.h.b16 %v2853
    %v2995 = vunpack.c.l.b16 %v2854
    %v2996 = vunpack.c.h.b16 %v2854
    %v2997 = vunpack.c.l.b16 %v2855
    %v2998 = vunpack.c.h.b16 %v2855
    %v2999 = vunpack.c.l.b16 %v2856
    %v3000 = vunpack.c.h.b16 %v2856
    %v3001 = vunpack.c.l.b16 %v2857
    %v3002 = vunpack.c.h.b16 %v2857
    %v3003 = vunpack.c.l.b16 %v2858
    %v3004 = vunpack.c.h.b16 %v2858
    %v3005 = vunpack.c.l.b16 %v2859
    %v3006 = vunpack.c.h.b16 %v2859
    %v3007 = vunpack.c.l.b16 %v2860
    %v3008 = vunpack.c.h.b16 %v2860
    %v3009 = vunpack.c.l.b16 %v2861
    %v3010 = vunpack.c.h.b16 %v2861
    %v3011 = vunpack.c.l.b16 %v2862
    %v3012 = vunpack.c.h.b16 %v2862
    %v3013 = vunpack.c.l.b16 %v2863
    %v3014 = vunpack.c.h.b16 %v2863
    %v3015 = vunpack.c.l.b16 %v2864
    %v3016 = vunpack.c.h.b16 %v2864
    %v3017 = vunpack.c.l.b16 %v2865
    %v3018 = vunpack.c.h.b16 %v2865
    %v3019 = vunpack.c.l.b16 %v2866
    %v3020 = vunpack.c.h.b16 %v2866
    %v3021 = vunpack.c.l.b16 %v2867
    %v3022 = vunpack.c.h.b16 %v2867
    %v3023 = vunpack.c.l.b16 %v2868
    %v3024 = vunpack.c.h.b16 %v2868
    %v3025 = vunpack.c.l.b16 %v2869
    %v3026 = vunpack.c.h.b16 %v2869
    %v3027 = vunpack.c.l.b16 %v2870
    %v3028 = vunpack.c.h.b16 %v2870
    %v3029 = vunpack.c.l.b16 %v2871
    %v3030 = vunpack.c.h.b16 %v2871
    %v3031 = vunpack.c.l.b16 %v2872
    %v3032 = vunpack.c.h.b16 %v2872
    %v3033 = vunpack.c.l.b16 %v2873
    %v3034 = vunpack.c.h.b16 %v2873
    %v3035 = vunpack.c.l.b16 %v2874
    %v3036 = vunpack.c.h.b16 %v2874
    %v3037 = vunpack.c.l.b16 %v2875
    %v3038 = vunpack.c.h.b16 %v2875
    %v3039 = vunpack.c.l.b16 %v2876
    %v3040 = vunpack.c.h.b16 %v2876
    %v3041 = vunpack.c.l.b16 %v2877
    %v3042 = vunpack.c.h.b16 %v2877
    %v3043 = vunpack.c.l.b16 %v2878
    %v3044 = vunpack.c.h.b16 %v2878
    %v3045 = vunpack.c.l.b16 %v2879
    %v3046 = vunpack.c.h.b16 %v2879
    %v3047 = vunpack.c.l.b16 %v2880
    %v3048 = vunpack.c.h.b16 %v2880
    %v3049 = vunpack.c.l.b16 %v2881
    %v3050 = vunpack.c.h.b16 %v2881
    %v3051 = vunpack.c.l.b16 %v2882
    %v3052 = vunpack.c.h.b16 %v2882
    %v3053 = vunpack.c.l.b16 %v2883
    %v3054 = vunpack.c.h.b16 %v2883
    %v3055 = vunpack.c.l.b16 %v2884
    %v3056 = vunpack.c.h.b16 %v2884
    %v3057 = vunpack.c.l.b16 %v2885
    %v3058 = vunpack.c.h.b16 %v2885
    %v3059 = vunpack.c.l.b16 %v2886
    %v3060 = vunpack.c.h.b16 %v2886
    %v3061 = vunpack.c.l.b16 %v2887
    %v3062 = vunpack.c.h.b16 %v2887
    %v3063 = vunpack.c.l.b16 %v2888
    %v3064 = vunpack.c.h.b16 %v2888
    %v3065 = vunpack.c.l.b16 %v2889
    %v3066 = vunpack.c.h.b16 %v2889
    %v3067 = vunpack.c.l.b16 %v2890
    %v3068 = vunpack.c.h.b16 %v2890
    %v3069 = vunpack.c.l.b16 %v2891
    %v3070 = vunpack.c.h.b16 %v2891
    %v3071 = vunpack.c.l.b16 %v2892
    %v3072 = vunpack.c.h.b16 %v2892
    %v3073 = vunpack.c.l.b16 %v2893
    %v3074 = vunpack.c.h.b16 %v2893
    %v3075 = vunpack.c.l.b16 %v2894
    %v3076 = vunpack.c.h.b16 %v2894
    %v3077 = vunpack.c.l.b16 %v2895
    %v3078 = vunpack.c.h.b16 %v2895
    %v3079 = vunpack.c.l.b16 %v2896
    %v3080 = vunpack.c.h.b16 %v2896
    %v3081 = vunpack.c.l.b16 %v2897
    %v3082 = vunpack.c.h.b16 %v2897
    %v3083 = vunpack.c.l.b16 %v2898
    %v3084 = vunpack.c.h.b16 %v2898
    %v3085 = vunpack.c.l.b16 %v2899
    %v3086 = vunpack.c.h.b16 %v2899
    %v3087 = vunpack.c.l.b16 %v2900
    %v3088 = vunpack.c.h.b16 %v2900
    %v3089 = vunpack.c.l.b16 %v2901
    %v3090 = vunpack.c.h.b16 %v2901
    %v3091 = vunpack.c.l.b16 %v2902
    %v3092 = vunpack.c.h.b16 %v2902
    %v3093 = vunpack.c.l.b16 %v2903
    %v3094 = vunpack.c.h.b16 %v2903
    %v3095 = vunpack.c.l.b16 %v2904
    %v3096 = vunpack.c.h.b16 %v2904
    %v3097 = vunpack.c.l.b16 %v2905
    %v3098 = vunpack.c.h.b16 %v2905
    %v3099 = vunpack.c.l.b16 %v2906
    %v3100 = vunpack.c.h.b16 %v2906
    %v3101 = vunpack.c.l.b16 %v2907
    %v3102 = vunpack.c.h.b16 %v2907
    %v3103 = vunpack.c.l.b16 %v2908
    %v3104 = vunpack.c.h.b16 %v2908
    %v3105 = vunpack.c.l.b16 %v2909
    %v3106 = vunpack.c.h.b16 %v2909
    %v3107 = vunpack.c.l.b16 %v2910
    %v3108 = vunpack.c.h.b16 %v2910
    %v3109 = vunpack.c.l.b16 %v2911
    %v3110 = vunpack.c.h.b16 %v2911
    %v3111 = vunpack.c.l.b16 %v2912
    %v3112 = vunpack.c.h.b16 %v2912
    %v3113 = vunpack.c.l.b16 %v2913
    %v3114 = vunpack.c.h.b16 %v2913
    %v3115 = vunpack.c.l.b16 %v2914
    %v3116 = vunpack.c.h.b16 %v2914
    %v3117 = vunpack.c.l.b16 %v2915
    %v3118 = vunpack.c.h.b16 %v2915
    %v3119 = vunpack.c.l.b16 %v2916
    %v3120 = vunpack.c.h.b16 %v2916
    %v3121 = vpack.c.b16 %v2995, %v2993
    %v3122 = vpack.c.b16 %v2996, %v2994
    %v3123 = vpack.c.b16 %v2999, %v2997
    %v3124 = vpack.c.b16 %v3000, %v2998
    %v3125 = vpack.c.b16 %v3003, %v3001
    %v3126 = vpack.c.b16 %v3004, %v3002
    %v3127 = vpack.c.b16 %v3007, %v3005
    %v3128 = vpack.c.b16 %v3008, %v3006
    %v3129 = vpack.c.b16 %v3011, %v3009
    %v3130 = vpack.c.b16 %v3012, %v3010
    %v3131 = vpack.c.b16 %v3015, %v3013
    %v3132 = vpack.c.b16 %v3016, %v3014
    %v3133 = vpack.c.b16 %v3019, %v3017
    %v3134 = vpack.c.b16 %v3020, %v3018
    %v3135 = vpack.c.b16 %v3023, %v3021
    %v3136 = vpack.c.b16 %v3024, %v3022
    %v3137 = vpack.c.b16 %v3027, %v3025
    %v3138 = vpack.c.b16 %v3028, %v3026
    %v3139 = vpack.c.b16 %v3031, %v3029
    %v3140 = vpack.c.b16 %v3032, %v3030
    %v3141 = vpack.c.b16 %v3035, %v3033
    %v3142 = vpack.c.b16 %v3036, %v3034
    %v3143 = vpack.c.b16 %v3039, %v3037
    %v3144 = vpack.c.b16 %v3040, %v3038
    %v3145 = vpack.c.b16 %v3043, %v3041
    %v3146 = vpack.c.b16 %v3044, %v3042
    %v3147 = vpack.c.b16 %v3047, %v3045
    %v3148 = vpack.c.b16 %v3048, %v3046
    %v3149 = vpack.c.b16 %v3051, %v3049
    %v3150 = vpack.c.b16 %v3052, %v3050
    %v3151 = vpack.c.b16 %v3055, %v3053
    %v3152 = vpack.c.b16 %v3056, %v3054
    %v3153 = vpack.c.b16 %v3059, %v3057
    %v3154 = vpack.c.b16 %v3060, %v3058
    %v3155 = vpack.c.b16 %v3063, %v3061
    %v3156 = vpack.c.b16 %v3064, %v3062
    %v3157 = vpack.c.b16 %v3067, %v3065
    %v3158 = vpack.c.b16 %v3068, %v3066
    %v3159 = vpack.c.b16 %v3071, %v3069
    %v3160 = vpack.c.b16 %v3072, %v3070
    %v3161 = vpack.c.b16 %v3075, %v3073
    %v3162 = vpack.c.b16 %v3076, %v3074
    %v3163 = vpack.c.b16 %v3079, %v3077
    %v3164 = vpack.c.b16 %v3080, %v3078
    %v3165 = vpack.c.b16 %v3083, %v3081
    %v3166 = vpack.c.b16 %v3084, %v3082
    %v3167 = vpack.c.b16 %v3087, %v3085
    %v3168 = vpack.c.b16 %v3088, %v3086
    %v3169 = vpack.c.b16 %v3091, %v3089
    %v3170 = vpack.c.b16 %v3092, %v3090
    %v3171 = vpack.c.b16 %v3095, %v3093
    %v3172 = vpack.c.b16 %v3096, %v3094
    %v3173 = vpack.c.b16 %v3099, %v3097
    %v3174 = vpack.c.b16 %v3100, %v3098
    %v3175 = vpack.c.b16 %v3103, %v3101
    %v3176 = vpack.c.b16 %v3104, %v3102
    %v3177 = vpack.c.b16 %v3107, %v3105
    %v3178 = vpack.c.b16 %v3108, %v3106
    %v3179 = vpack.c.b16 %v3111, %v3109
    %v3180 = vpack.c.b16 %v3112, %v3110
    %v3181 = vpack.c.b16 %v3115, %v3113
    %v3182 = vpack.c.b16 %v3116, %v3114
    %v3183 = vpack.c.b16 %v3119, %v3117
    %v3184 = vpack.c.b16 %v3120, %v3118
    %3249 = vmatprep.subr.bf16.mxu0 %v3122
    %3250 = vmatpush1.bf16.msra.mxu0 %v3121
    %3251 = vmatprep.subr.bf16.mxu0 %v3124
    %3252 = vmatpush1.bf16.msra.mxu0 %v3123
    %3253 = vmatprep.subr.bf16.mxu0 %v3126
    %3254 = vmatpush1.bf16.msra.mxu0 %v3125
    %3255 = vmatprep.subr.bf16.mxu0 %v3128
    %3256 = vmatpush1.bf16.msra.mxu0 %v3127
    %3257 = vmatprep.subr.bf16.mxu0 %v3130
    %3258 = vmatpush1.bf16.msra.mxu0 %v3129
    %3259 = vmatprep.subr.bf16.mxu0 %v3132
    %3260 = vmatpush1.bf16.msra.mxu0 %v3131
    %3261 = vmatprep.subr.bf16.mxu0 %v3134
    %3262 = vmatpush1.bf16.msra.mxu0 %v3133
    %3263 = vmatprep.subr.bf16.mxu0 %v3136
    %3264 = vmatpush1.bf16.msra.mxu0 %v3135
    %3265 = vmatprep.subr.bf16.mxu0 %v3138
    %3266 = vmatpush1.bf16.msra.mxu0 %v3137
    %3267 = vmatprep.subr.bf16.mxu0 %v3140
    %3268 = vmatpush1.bf16.msra.mxu0 %v3139
    %3269 = vmatprep.subr.bf16.mxu0 %v3142
    %3270 = vmatpush1.bf16.msra.mxu0 %v3141
    %3271 = vmatprep.subr.bf16.mxu0 %v3144
    %3272 = vmatpush1.bf16.msra.mxu0 %v3143
    %3273 = vmatprep.subr.bf16.mxu0 %v3146
    %3274 = vmatpush1.bf16.msra.mxu0 %v3145
    %3275 = vmatprep.subr.bf16.mxu0 %v3148
    %3276 = vmatpush1.bf16.msra.mxu0 %v3147
    %3277 = vmatprep.subr.bf16.mxu0 %v3150
    %3278 = vmatpush1.bf16.msra.mxu0 %v3149
    %3279 = vmatprep.subr.bf16.mxu0 %v3152
    %3280 = vmatpush1.bf16.msra.mxu0 %v3151
    %3281 = vmatprep.mubr.bf16.mxu0 %v2850
    %3282 = vmatmul.mubr.bf16.gmra.mrb[0].mxu0 %v2849
    %v3283 = vpop.f32.mrb[0].mxu0
    %v3284 = vadd.f32 %v2922, %v3283
    %v3285 = vpop.f32.mrb[0].mxu0
    %v3286 = vadd.f32 %v2926, %v3285
    %v3287 = vpop.f32.mrb[0].mxu0
    %v3288 = vadd.f32 %v2922, %v3287
    %v3289 = vpop.f32.mrb[0].mxu0
    %v3290 = vadd.f32 %v2926, %v3289
    %3291 = vdwg.mxu0
    %3292 = vmatprep.subr.bf16.mxu0 %v3154
    %3293 = vmatpush1.bf16.msra.mxu0 %v3153
    %3294 = vmatprep.subr.bf16.mxu0 %v3156
    %3295 = vmatpush1.bf16.msra.mxu0 %v3155
    %3296 = vmatprep.subr.bf16.mxu0 %v3158
    %3297 = vmatpush1.bf16.msra.mxu0 %v3157
    %3298 = vmatprep.subr.bf16.mxu0 %v3160
    %3299 = vmatpush1.bf16.msra.mxu0 %v3159
    %3300 = vmatprep.subr.bf16.mxu0 %v3162
    %3301 = vmatpush1.bf16.msra.mxu0 %v3161
    %3302 = vmatprep.subr.bf16.mxu0 %v3164
    %3303 = vmatpush1.bf16.msra.mxu0 %v3163
    %3304 = vmatprep.subr.bf16.mxu0 %v3166
    %3305 = vmatpush1.bf16.msra.mxu0 %v3165
    %3306 = vmatprep.subr.bf16.mxu0 %v3168
    %3307 = vmatpush1.bf16.msra.mxu0 %v3167
    %3308 = vmatprep.subr.bf16.mxu0 %v3170
    %3309 = vmatpush1.bf16.msra.mxu0 %v3169
    %3310 = vmatprep.subr.bf16.mxu0 %v3172
    %3311 = vmatpush1.bf16.msra.mxu0 %v3171
    %3312 = vmatprep.subr.bf16.mxu0 %v3174
    %3313 = vmatpush1.bf16.msra.mxu0 %v3173
    %3314 = vmatprep.subr.bf16.mxu0 %v3176
    %3315 = vmatpush1.bf16.msra.mxu0 %v3175
    %3316 = vmatprep.subr.bf16.mxu0 %v3178
    %3317 = vmatpush1.bf16.msra.mxu0 %v3177
    %3318 = vmatprep.subr.bf16.mxu0 %v3180
    %3319 = vmatpush1.bf16.msra.mxu0 %v3179
    %3320 = vmatprep.subr.bf16.mxu0 %v3182
    %3321 = vmatpush1.bf16.msra.mxu0 %v3181
    %3322 = vmatprep.subr.bf16.mxu0 %v3184
    %3323 = vmatpush1.bf16.msra.mxu0 %v3183
    %3324 = vmatprep.mubr.bf16.mxu0 %v2852
    %3325 = vmatmul.mubr.bf16.gmra.mrb[0].mxu0 %v2851
    %v3326 = vpop.f32.mrb[0].mxu0
    %v3327 = vadd.f32 %v3284, %v3326
    %v3328 = vpop.f32.mrb[0].mxu0
    %v3329 = vadd.f32 %v3286, %v3328
    %v3330 = vpop.f32.mrb[0].mxu0
    %v3331 = vadd.f32 %v3288, %v3330
    %v3332 = vpop.f32.mrb[0].mxu0
    %v3333 = vadd.f32 %v3290, %v3332
    %3334 = vdwg.mxu0
    %v3335 = vmax.f32 %v3327, 0.0
    %v3336 = vmax.f32 %v3329, 0.0
    %v3337 = vmax.f32 %v3331, 0.0
    %v3338 = vmax.f32 %v3333, 0.0
    %v3339 = vpack.c.bf16 %v3337, %v3335
    %v3340 = vpack.c.bf16 %v3338, %v3336
    %v3341 = vld [vmem:[#allocation28] sm:$0xf]
    %v3342 = vld [vmem:[#allocation28 + $0x4] sm:$0xf]
    %v3343 = vld [vmem:[#allocation28 + $0x8] sm:$0xf]
    %v3344 = vld [vmem:[#allocation28 + $0xc] sm:$0xf]
    %v3345 = vld [vmem:[#allocation28 + $0x10] sm:$0xf]
    %v3346 = vld [vmem:[#allocation28 + $0x14] sm:$0xf]
    %v3347 = vld [vmem:[#allocation28 + $0x18] sm:$0xf]
    %v3348 = vld [vmem:[#allocation28 + $0x1c] sm:$0xf]
    %v3349 = vld [vmem:[#allocation28 + $0x20] sm:$0xf]
    %v3350 = vld [vmem:[#allocation28 + $0x24] sm:$0xf]
    %v3351 = vld [vmem:[#allocation28 + $0x28] sm:$0xf]
    %v3352 = vld [vmem:[#allocation28 + $0x2c] sm:$0xf]
    %v3353 = vld [vmem:[#allocation28 + $0x30] sm:$0xf]
    %v3354 = vld [vmem:[#allocation28 + $0x34] sm:$0xf]
    %v3355 = vld [vmem:[#allocation28 + $0x38] sm:$0xf]
    %v3356 = vld [vmem:[#allocation28 + $0x3c] sm:$0xf]
    %v3357 = vld [vmem:[#allocation28 + $0x40] sm:$0xf]
    %v3358 = vld [vmem:[#allocation28 + $0x44] sm:$0xf]
    %v3359 = vld [vmem:[#allocation28 + $0x48] sm:$0xf]
    %v3360 = vld [vmem:[#allocation28 + $0x4c] sm:$0xf]
    %v3361 = vld [vmem:[#allocation28 + $0x50] sm:$0xf]
    %v3362 = vld [vmem:[#allocation28 + $0x54] sm:$0xf]
    %v3363 = vld [vmem:[#allocation28 + $0x58] sm:$0xf]
    %v3364 = vld [vmem:[#allocation28 + $0x5c] sm:$0xf]
    %v3365 = vld [vmem:[#allocation28 + $0x60] sm:$0xf]
    %v3366 = vld [vmem:[#allocation28 + $0x64] sm:$0xf]
    %v3367 = vld [vmem:[#allocation28 + $0x68] sm:$0xf]
    %v3368 = vld [vmem:[#allocation28 + $0x6c] sm:$0xf]
    %v3369 = vld [vmem:[#allocation28 + $0x70] sm:$0xf]
    %v3370 = vld [vmem:[#allocation28 + $0x74] sm:$0xf]
    %v3371 = vld [vmem:[#allocation28 + $0x78] sm:$0xf]
    %v3372 = vld [vmem:[#allocation28 + $0x7c] sm:$0xf]
    %v3373 = vld [vmem:[%s25] sm:$0x1]
    %v3375 = vlaneseq
    %v3376 = vshrl.u32 %v3375, 7
    %v3377 = vsub.s32 0, %v3376
    %v3378 = vrot.slane %v3373, %v3377
    %v3412 = vunpack.c.l.b16 %v3341
    %v3413 = vunpack.c.l.b16 %v3342
    %v3414 = vunpack.c.l.b16 %v3343
    %v3415 = vunpack.c.l.b16 %v3344
    %v3416 = vunpack.c.l.b16 %v3345
    %v3417 = vunpack.c.l.b16 %v3346
    %v3418 = vunpack.c.l.b16 %v3347
    %v3419 = vunpack.c.l.b16 %v3348
    %v3420 = vunpack.c.l.b16 %v3349
    %v3421 = vunpack.c.l.b16 %v3350
    %v3422 = vunpack.c.l.b16 %v3351
    %v3423 = vunpack.c.l.b16 %v3352
    %v3424 = vunpack.c.l.b16 %v3353
    %v3425 = vunpack.c.l.b16 %v3354
    %v3426 = vunpack.c.l.b16 %v3355
    %v3427 = vunpack.c.l.b16 %v3356
    %v3428 = vunpack.c.l.b16 %v3357
    %v3429 = vunpack.c.l.b16 %v3358
    %v3430 = vunpack.c.l.b16 %v3359
    %v3431 = vunpack.c.l.b16 %v3360
    %v3432 = vunpack.c.l.b16 %v3361
    %v3433 = vunpack.c.l.b16 %v3362
    %v3434 = vunpack.c.l.b16 %v3363
    %v3435 = vunpack.c.l.b16 %v3364
    %v3436 = vunpack.c.l.b16 %v3365
    %v3437 = vunpack.c.l.b16 %v3366
    %v3438 = vunpack.c.l.b16 %v3367
    %v3439 = vunpack.c.l.b16 %v3368
    %v3440 = vunpack.c.l.b16 %v3369
    %v3441 = vunpack.c.l.b16 %v3370
    %v3442 = vunpack.c.l.b16 %v3371
    %v3443 = vunpack.c.l.b16 %v3372
    %v3444 = vpack.c.b16 %v3413, %v3412
    %v3445 = vpack.c.b16 %v3415, %v3414
    %v3446 = vpack.c.b16 %v3417, %v3416
    %v3447 = vpack.c.b16 %v3419, %v3418
    %v3448 = vpack.c.b16 %v3421, %v3420
    %v3449 = vpack.c.b16 %v3423, %v3422
    %v3450 = vpack.c.b16 %v3425, %v3424
    %v3451 = vpack.c.b16 %v3427, %v3426
    %v3452 = vpack.c.b16 %v3429, %v3428
    %v3453 = vpack.c.b16 %v3431, %v3430
    %v3454 = vpack.c.b16 %v3433, %v3432
    %v3455 = vpack.c.b16 %v3435, %v3434
    %v3456 = vpack.c.b16 %v3437, %v3436
    %v3457 = vpack.c.b16 %v3439, %v3438
    %v3458 = vpack.c.b16 %v3441, %v3440
    %v3459 = vpack.c.b16 %v3443, %v3442
    %3476 = vmatprep.subr.bf16.mxu0 0
    %3477 = vmatpush1.bf16.msra.mxu0 %v3444
    %3478 = vmatprep.subr.bf16.mxu0 0
    %3479 = vmatpush1.bf16.msra.mxu0 %v3445
    %3480 = vmatprep.subr.bf16.mxu0 0
    %3481 = vmatpush1.bf16.msra.mxu0 %v3446
    %3482 = vmatprep.subr.bf16.mxu0 0
    %3483 = vmatpush1.bf16.msra.mxu0 %v3447
    %3484 = vmatprep.subr.bf16.mxu0 0
    %3485 = vmatpush1.bf16.msra.mxu0 %v3448
    %3486 = vmatprep.subr.bf16.mxu0 0
    %3487 = vmatpush1.bf16.msra.mxu0 %v3449
    %3488 = vmatprep.subr.bf16.mxu0 0
    %3489 = vmatpush1.bf16.msra.mxu0 %v3450
    %3490 = vmatprep.subr.bf16.mxu0 0
    %3491 = vmatpush1.bf16.msra.mxu0 %v3451
    %3492 = vmatprep.subr.bf16.mxu0 0
    %3493 = vmatpush1.bf16.msra.mxu0 %v3452
    %3494 = vmatprep.subr.bf16.mxu0 0
    %3495 = vmatpush1.bf16.msra.mxu0 %v3453
    %3496 = vmatprep.subr.bf16.mxu0 0
    %3497 = vmatpush1.bf16.msra.mxu0 %v3454
    %3498 = vmatprep.subr.bf16.mxu0 0
    %3499 = vmatpush1.bf16.msra.mxu0 %v3455
    %3500 = vmatprep.subr.bf16.mxu0 0
    %3501 = vmatpush1.bf16.msra.mxu0 %v3456
    %3502 = vmatprep.subr.bf16.mxu0 0
    %3503 = vmatpush1.bf16.msra.mxu0 %v3457
    %3504 = vmatprep.subr.bf16.mxu0 0
    %3505 = vmatpush1.bf16.msra.mxu0 %v3458
    %3506 = vmatprep.subr.bf16.mxu0 0
    %3507 = vmatpush1.bf16.msra.mxu0 %v3459
    %3508 = vmatprep.mubr.bf16.mxu0 %v3340
    %3509 = vmatmul.mubr.bf16.gmra.mrb[0].mxu0 %v3339
    %v3510 = vpop.f32.mrb[0].mxu0
    %v3511 = vadd.f32 %v3378, %v3510
    %v3512 = vpop.f32.mrb[0].mxu0
    %v3513 = vpop.f32.mrb[0].mxu0
    %v3514 = vadd.f32 %v3378, %v3513
    %v3515 = vpop.f32.mrb[0].mxu0
    %3516 = vdwg.mxu0
    %v3517 = vxor.u32 %v3511, 2147483648
    %v3518 = vxor.u32 %v3514, 2147483648
    %v3519 = vmul.f32 %v3517, 1.442695
    %v3520 = vpow.pop %v3519
    %v3521 = vmul.f32 %v3518, 1.442695
    %v3522 = vpow.pop %v3521
    %v3523 = vadd.f32 %v3520, 1.0
    %v3524 = vadd.f32 %v3522, 1.0
    %v3525 = vrcp.pop %v3523
    %v3526 = vmul.f32 1.0, %v3525
    %v3527 = vrcp.pop %v3524
    %v3528 = vmul.f32 1.0, %v3527
    %3529 = vst [vmem:[#allocation29] sm:$0xff] %v3526
    %3530 = vst [vmem:[#allocation29 + $0x8] sm:$0xff] %v3528
    %3531 = vst [vmem:[#allocation30] sm:$0xff] %v1997
    %3532 = vst [vmem:[#allocation30 + $0x8] sm:$0xff] %v2000
    %3533 = vst [vmem:[#allocation32] sm:$0xff] %v2173
    %3534 = vst [vmem:[#allocation32 + $0x8] sm:$0xff] %v2176
    // Predicated region
    $region174: #{vae_forward.1} parent=1 // pred_check
      _
    $region175: #{vae_forward.1} parent=1 // pred_check_branch
      %3536 = sbr.rel (0) target = $region177
    $region176: #{vae_forward.1} parent=1 // pred_region
      %s3538 = ssub.s32 256, 256
      %3539 = vsyncadd [#allocation4], %s3538
      %s3540 = sshll.u32 [#allocation29], 4
      %s3541 = int_to_ptr.vmem [resolvable:$true] %s3540
      %3546 = dma.vmem_to_hbm [thread:$0]  %s3541, 256, %s26, [#allocation4], 128, 128, 8
    $region177: #{vae_forward.1} parent=1 // pred_fallthru
      _
    // Predicated region
    $region178: #{vae_forward.1} parent=1 // pred_check
      _
    $region179: #{vae_forward.1} parent=1 // pred_check_branch
      %3548 = sbr.rel (0) target = $region181
    $region180: #{vae_forward.1} parent=1 // pred_region
      %s3550 = ssub.s32 256, 256
      %3551 = vsyncadd [#allocation31], %s3550
      %s3552 = sshll.u32 [#allocation30], 4
      %s3553 = int_to_ptr.vmem [resolvable:$true] %s3552
      %3558 = dma.vmem_to_hbm [thread:$0]  %s3553, 256, %s27, [#allocation31], 128, 128, 8
    $region181: #{vae_forward.1} parent=1 // pred_fallthru
      _
    // Predicated region
    $region182: #{vae_forward.1} parent=1 // pred_check
      _
    $region183: #{vae_forward.1} parent=1 // pred_check_branch
      %3560 = sbr.rel (0) target = $region185
    $region184: #{vae_forward.1} parent=1 // pred_region
      %s3562 = ssub.s32 256, 256
      %3563 = vsyncadd [#allocation31], %s3562
      %s3564 = sshll.u32 [#allocation32], 4
      %s3565 = int_to_ptr.vmem [resolvable:$true] %s3564
      %3570 = dma.vmem_to_hbm [thread:$0]  %s3565, 256, %s28, [#allocation31], 128, 128, 8
    $region185: #{vae_forward.1} parent=1 // pred_fallthru
      _
    // Predicated region
    $region186: #{vae_forward.1} parent=1 // pred_check
      _
    $region187: #{vae_forward.1} parent=1 // pred_check_branch
      %3572 = sbr.rel (0) target = $region189
    $region188: #{vae_forward.1} parent=1 // pred_region
      %3573 = dma.done [#allocation4], 256
    $region189: #{vae_forward.1} parent=1 // pred_fallthru
      _
    // Predicated region
    $region190: #{vae_forward.1} parent=1 // pred_check
      _
    $region191: #{vae_forward.1} parent=1 // pred_check_branch
      %3575 = sbr.rel (0) target = $region193
    $region192: #{vae_forward.1} parent=1 // pred_region
      %3576 = dma.done [#allocation31], 256
    $region193: #{vae_forward.1} parent=1 // pred_fallthru
      _
    // Predicated region
    $region194: #{vae_forward.1} parent=1 // pred_check
      _
    $region195: #{vae_forward.1} parent=1 // pred_check_branch
      %3578 = sbr.rel (0) target = $region197
    $region196: #{vae_forward.1} parent=1 // pred_region
      %3579 = dma.done [#allocation31], 256
    $region197: #{vae_forward.1} parent=1 // pred_fallthru
      _
    %3580 = vsyncpa [#allocation3], 1
    %3581 = vsyncpa [#allocation6], 1
    %3582 = vsyncpa [#allocation9], 1
    %3583 = vsyncpa [#allocation12], 1
    %3584 = vsyncpa [#allocation15], 1
    %3585 = vsyncpa [#allocation18], 1
    %3586 = vsyncpa [#allocation21], 1
    %3587 = vsyncpa [#allocation24], 1
    %3588 = vsyncpa [#allocation27], 1
    %3589 = vsyncpa [#allocation4], 1
    %3590 = vsyncpa [#allocation31], 1

</llo_original>
